<compile_context>
chip_gen: v5e
topology: v5e:2x2
jax: 0.10.0
libtpu: 0.0.40
codegen_flags: <defaults>
</compile_context>

<pallas_src>
import math
from functools import partial

import jax
import jax.numpy as jnp
from jax import lax
from jax.experimental import pallas as pl
from jax.experimental.pallas import tpu as pltpu


def _round_up(x, m):
    return (x + m - 1) // m * m


# -----------------------------------------------------------------------------
# Fused encoder kernel: for each node -> maxpool(2,2) -> conv3x3+ReLU -> conv3x3+ReLU
# -----------------------------------------------------------------------------
def _encoder_kernel(x_ref, *refs, meta):
    # x_ref        : (1, H, W, C0) one NHWC image
    # refs (inputs): per node i -> w1 (9*Cin, Cmid) bf16, b1 (1, Cmid) f32,
    #                              w2 (9*Cmid, Cout) bf16, b2 (1, Cout) f32
    # refs (outputs): per node i -> (1, Ho_i*Wp_i, Cout_i) flat, padded-pitch slab
    n_nodes = len(meta)
    param_refs = refs[: 4 * n_nodes]
    out_refs = refs[4 * n_nodes:]

    x = x_ref[0]                                            # (H, W, Cin) f32
    for i, (Ho, Wo, Wp) in enumerate(meta):
        w1_ref, b1_ref, w2_ref, b2_ref = param_refs[4 * i: 4 * i + 4]
        H, W, Cin = x.shape
        Cmid = b1_ref.shape[-1]
        M = Ho * Wp

        # ---- 2x2 / stride-2 max pool (VPU): reshape + reduce, no strided refs ----
        xv = jnp.max(x.reshape(Ho, 2, W, Cin), axis=1)          # (Ho, W, Cin)
        pooled = jnp.max(xv.reshape(Ho, Wo, 2, Cin), axis=2)    # (Ho, Wo, Cin)

        # ---- zero-padded flat slab (row pitch Wp, multiple of 8 sublanes) ----
        # Halo zeros are concat operands (values): no scratch, no memset stores.
        rows = jnp.concatenate(
            [jnp.zeros((Ho, 1, Cin), jnp.float32),               # left pad column
             pooled,
             jnp.zeros((Ho, Wp - Wo - 1, Cin), jnp.float32)],    # right pad + pitch junk
            axis=1)                                              # (Ho, Wp, Cin)
        xpad = jnp.concatenate(
            [jnp.zeros((1, Wp, Cin), jnp.float32),               # top pad row
             rows,
             jnp.zeros((2, Wp, Cin), jnp.float32)],              # bottom pad + spare row
            axis=0)                                              # (Ho+3, Wp, Cin)
        xflat = xpad.reshape((Ho + 3) * Wp, Cin)                 # Wp % 8 == 0 -> trivial merge

        def conv3x3_relu(flat, w_ref, b_ref):
            # im2col: nine shifted views lane-concatenated -> ONE MXU dot, K = 9*C.
            taps = [flat[dy * Wp + dx: dy * Wp + dx + M, :]
                    for dy in range(3) for dx in range(3)]
            a = jnp.concatenate(taps, axis=1).astype(jnp.bfloat16)   # (M, 9*C) bf16
            y = jnp.dot(a, w_ref[...],                               # bf16 x bf16 on MXU
                        preferred_element_type=jnp.float32)          # f32 accumulation
            return jnp.maximum(y + b_ref[...], 0.0)                  # bias + ReLU in f32

        # ---- conv1 + ReLU ----
        y1 = conv3x3_relu(xflat, w1_ref, b1_ref)                     # (M, Cmid) f32
        # Zero the padded-pitch junk columns so this slab (with zero prefix/suffix)
        # doubles as conv2's zero padding.
        col = lax.broadcasted_iota(jnp.int32, (M, 1), 0) % Wp
        y1 = jnp.where(col < Wo, y1, 0.0)
        yflat = jnp.concatenate(
            [jnp.zeros((Wp + 1, Cmid), jnp.float32),
             y1,
             jnp.zeros((2 * Wp - 1, Cmid), jnp.float32)], axis=0)    # ((Ho+3)*Wp, Cmid)

        # ---- conv2 + ReLU ----
        y2 = conv3x3_relu(yflat, w2_ref, b2_ref)                     # (M, Cout) f32

        # Single dense slab store of this node's feature (junk pitch columns are
        # stripped for free in the wrapper).
        out_refs[i][0] = y2.astype(out_refs[i].dtype)

        # Hand off to the next node entirely in VMEM (strip junk columns;
        # Wp % 8 == 0 keeps the split reshape layout-trivial).
        x = y2.reshape(Ho, Wp, y2.shape[-1])[:, :Wo, :]


# --------------------------------------------------------------- forward pass
def encoder_forward(x_nchw, params_list):
    """x_nchw: (N, C, H, W) f32. Returns list of per-node NCHW features."""
    # TODO(synk): the (.., W, Cin=4) NHWC input block has 16-byte inner lines;
    # a channels-on-sublane layout (orientation flip) would give denser DMA
    # lines and lane-dense stores, at the price of lane-merging reshapes.
    x = jnp.transpose(x_nchw, (0, 2, 3, 1)).astype(jnp.float32)      # NCHW -> NHWC
    N, H, W, C0 = x.shape

    args = [x]
    in_specs = [pl.BlockSpec((1, H, W, C0), lambda n: (n, 0, 0, 0))]
    out_shapes, out_specs, meta = [], [], []
    flops, bytes_accessed = 0, x.size * 4

    h, w, cin = H, W, C0
    for p in params_list:
        assert h % 2 == 0 and w % 2 == 0, "MaxPool2d(2,2) path assumes even H, W"
        ho, wo = h // 2, w // 2
        wp = _round_up(wo + 2, 8)          # padded row pitch (multiple of 8 sublanes)
        mi = ho * wp
        cmid = int(p["w1"].shape[0])       # weights are OIHW (PyTorch layout)
        cout = int(p["w2"].shape[0])
        meta.append((ho, wo, wp))

        # OIHW (co, ci, ky, kx) -> (ky, kx, ci, co) -> (9*Cin, Cout); bf16 operands.
        w1m = jnp.transpose(p["w1"], (2, 3, 1, 0)).reshape(9 * cin, cmid).astype(jnp.bfloat16)
        w2m = jnp.transpose(p["w2"], (2, 3, 1, 0)).reshape(9 * cmid, cout).astype(jnp.bfloat16)
        b1v = p["b1"].reshape(1, cmid).astype(jnp.float32)
        b2v = p["b2"].reshape(1, cout).astype(jnp.float32)
        args += [w1m, b1v, w2m, b2v]
        in_specs += [
            pl.BlockSpec((9 * cin, cmid), lambda n: (0, 0)),
            pl.BlockSpec((1, cmid), lambda n: (0, 0)),
            pl.BlockSpec((9 * cmid, cout), lambda n: (0, 0)),
            pl.BlockSpec((1, cout), lambda n: (0, 0)),
        ]
        out_shapes.append(jax.ShapeDtypeStruct((N, mi, cout), jnp.float32))
        out_specs.append(pl.BlockSpec((1, mi, cout), lambda n: (n, 0, 0)))

        flops += 2 * N * ho * wo * 9 * (cin * cmid + cmid * cout)
        bytes_accessed += 4 * N * mi * cout + 2 * (w1m.size + w2m.size) + 4 * (cmid + cout)
        h, w, cin = ho, wo, cout

    outs = pl.pallas_call(
        partial(_encoder_kernel, meta=tuple(meta)),
        grid=(N,),
        in_specs=in_specs,
        out_specs=tuple(out_specs),
        out_shape=tuple(out_shapes),
        compiler_params=pltpu.CompilerParams(
            dimension_semantics=("parallel",),
            vmem_limit_bytes=32 * 1024 * 1024),
        cost_estimate=pl.CostEstimate(flops=int(flops), transcendentals=0,
                                      bytes_accessed=int(bytes_accessed)),
    )(*args)

    feats = []
    for (ho, wo, wp), o in zip(meta, outs):
        cout = o.shape[-1]
        f = o.reshape(N, ho, wp, cout)[:, :, :wo, :]    # strip pitch junk columns (free)
        feats.append(jnp.transpose(f, (0, 3, 1, 2)))    # NHWC -> NCHW
    return feats


# ------------------------------------------------------------ parameter setup
def init_unode_params(key, in_ch, out_ch):
    """Deterministic init mirroring U_Node.__init__ (xavier_normal_ conv weights)."""
    k1, k2, k3, k4 = jax.random.split(key, 4)

    def xavier_normal(k, ci, co):
        std = math.sqrt(2.0 / (ci * 9 + co * 9))
        return std * jax.random.normal(k, (co, ci, 3, 3), jnp.float32)   # OIHW

    w1 = xavier_normal(k1, in_ch, out_ch)
    w2 = xavier_normal(k3, out_ch, out_ch)
    bnd1 = 1.0 / math.sqrt(in_ch * 9)
    bnd2 = 1.0 / math.sqrt(out_ch * 9)
    b1 = jax.random.uniform(k2, (out_ch,), jnp.float32, -bnd1, bnd1)
    b2 = jax.random.uniform(k4, (out_ch,), jnp.float32, -bnd2, bnd2)
    # TODO(synk): U_Node.norm1 (BatchNorm2d) is unused in forward; no params created.
    return dict(w1=w1, b1=b1, w2=w2, b2=b2)


def init_encoder_params(key, in_channels, channels):
    params, cin = [], in_channels
    for c in channels:
        key, sub = jax.random.split(key)
        params.append(init_unode_params(sub, cin, c))
        cin = c
    return params


# ---------------------------------------------------------- pure-JAX reference
def encoder_reference(x_nchw, params_list):
    x = jnp.transpose(x_nchw, (0, 2, 3, 1))
    feats = []
    for p in params_list:
        x = lax.reduce_window(x, -jnp.inf, lax.max, (1, 2, 2, 1), (1, 2, 2, 1), "VALID")
        for w, b in ((p["w1"], p["b1"]), (p["w2"], p["b2"])):
            w_hwio = jnp.transpose(w, (2, 3, 1, 0))
            y = lax.conv_general_dilated(
                x, w_hwio, window_strides=(1, 1), padding="SAME",
                dimension_numbers=("NHWC", "HWIO", "NHWC"),
                precision=lax.Precision.HIGHEST)
            x = jnp.maximum(y + b, 0.0)
        feats.append(jnp.transpose(x, (0, 3, 1, 2)))
    return feats


# ------------------------------------------------------------------------ main
if __name__ == "__main__":
    key = jax.random.PRNGKey(0)
    k_x, k_p = jax.random.split(key)

    # Small shapes consistent with the module: NCHW input, two encoder nodes.
    N, C0, H, W = 2, 4, 16, 16
    channels = [8, 16]

    x = jax.random.normal(k_x, (N, C0, H, W), jnp.float32)
    params = init_encoder_params(k_p, C0, channels)

    feats = encoder_forward(x, params)
    feats = [jax.block_until_ready(f) for f in feats]

    ref = encoder_reference(x, params)
    for f, r in zip(feats, ref):
        assert f.shape == r.shape, (f.shape, r.shape)
        max_err = float(jnp.max(jnp.abs(f - r)))
        # bf16 matmul operands (f32 accumulation) -> ~1e-3..1e-2 abs error budget.
        assert jnp.allclose(f, r, rtol=2e-2, atol=2e-2), \
            f"mismatch vs reference (max abs err {max_err:.3e})"

    print("KERNEL_OK")
</pallas_src>

<mosaic_0001>
module attributes {stable_mosaic.version = 11 : i64} {
  func.func @_encoder_kernel(%arg0: i32, %arg1: memref<1x16x16x4xf32, #tpu.memory_space<vmem>>, %arg2: memref<36x8xbf16, #tpu.memory_space<vmem>>, %arg3: memref<1x8xf32, #tpu.memory_space<vmem>>, %arg4: memref<72x8xbf16, #tpu.memory_space<vmem>>, %arg5: memref<1x8xf32, #tpu.memory_space<vmem>>, %arg6: memref<72x16xbf16, #tpu.memory_space<vmem>>, %arg7: memref<1x16xf32, #tpu.memory_space<vmem>>, %arg8: memref<144x16xbf16, #tpu.memory_space<vmem>>, %arg9: memref<1x16xf32, #tpu.memory_space<vmem>>, %arg10: memref<1x128x8xf32, #tpu.memory_space<vmem>>, %arg11: memref<1x32x16xf32, #tpu.memory_space<vmem>>) attributes {dimension_semantics = [#tpu.dimension_semantics<parallel>], iteration_bounds = array<i64: 2>, scalar_prefetch = 0 : i64, scratch_operands = 0 : i64, tpu.core_type = #tpu.core_type<tc>, window_params = [{transform_indices = @transform_0, window_bounds = array<i64: 1, 16, 16, 4>}, {pipeline_mode = #tpu.pipeline_mode<synchronous>, transform_indices = @transform_1, window_bounds = array<i64: 36, 8>}, {pipeline_mode = #tpu.pipeline_mode<synchronous>, transform_indices = @transform_2, window_bounds = array<i64: 1, 8>}, {pipeline_mode = #tpu.pipeline_mode<synchronous>, transform_indices = @transform_3, window_bounds = array<i64: 72, 8>}, {pipeline_mode = #tpu.pipeline_mode<synchronous>, transform_indices = @transform_4, window_bounds = array<i64: 1, 8>}, {pipeline_mode = #tpu.pipeline_mode<synchronous>, transform_indices = @transform_5, window_bounds = array<i64: 72, 16>}, {pipeline_mode = #tpu.pipeline_mode<synchronous>, transform_indices = @transform_6, window_bounds = array<i64: 1, 16>}, {pipeline_mode = #tpu.pipeline_mode<synchronous>, transform_indices = @transform_7, window_bounds = array<i64: 144, 16>}, {pipeline_mode = #tpu.pipeline_mode<synchronous>, transform_indices = @transform_8, window_bounds = array<i64: 1, 16>}, {transform_indices = @transform_9, window_bounds = array<i64: 1, 128, 8>}, {transform_indices = @transform_10, window_bounds = array<i64: 1, 32, 16>}]} {
    %c0 = arith.constant 0 : index
    %c0_0 = arith.constant 0 : index
    %c0_1 = arith.constant 0 : index
    %c0_2 = arith.constant 0 : index
    %0 = vector.load %arg1[%c0, %c0_0, %c0_1, %c0_2] : memref<1x16x16x4xf32, #tpu.memory_space<vmem>>, vector<1x16x16x4xf32>
    %1 = vector.shape_cast %0 : vector<1x16x16x4xf32> to vector<16x16x4xf32>
    %2 = vector.shape_cast %1 : vector<16x16x4xf32> to vector<8x2x16x4xf32>
    %cst = arith.constant dense<0xFF800000> : vector<8x16x4xf32>
    %3 = vector.multi_reduction <maximumf>, %2, %cst [1] : vector<8x2x16x4xf32> to vector<8x16x4xf32>
    %4 = vector.shape_cast %3 : vector<8x16x4xf32> to vector<8x8x2x4xf32>
    %cst_3 = arith.constant dense<0xFF800000> : vector<8x8x4xf32>
    %5 = vector.multi_reduction <maximumf>, %4, %cst_3 [2] : vector<8x8x2x4xf32> to vector<8x8x4xf32>
    %cst_4 = arith.constant 0.000000e+00 : f32
    %6 = vector.broadcast %cst_4 : f32 to vector<8x1x4xf32>
    %cst_5 = arith.constant 0.000000e+00 : f32
    %7 = vector.broadcast %cst_5 : f32 to vector<8x7x4xf32>
    %8 = tpu.concatenate %6, %5, %7 in 1 : vector<8x1x4xf32>, vector<8x8x4xf32>, vector<8x7x4xf32> -> vector<8x16x4xf32>
    %cst_6 = arith.constant 0.000000e+00 : f32
    %9 = vector.broadcast %cst_6 : f32 to vector<1x16x4xf32>
    %cst_7 = arith.constant 0.000000e+00 : f32
    %10 = vector.broadcast %cst_7 : f32 to vector<2x16x4xf32>
    %11 = tpu.concatenate %9, %8, %10 in 0 : vector<1x16x4xf32>, vector<8x16x4xf32>, vector<2x16x4xf32> -> vector<11x16x4xf32>
    %12 = vector.shape_cast %11 : vector<11x16x4xf32> to vector<176x4xf32>
    %13 = vector.extract_strided_slice %12 {offsets = [0, 0], sizes = [128, 4], strides = [1, 1]} : vector<176x4xf32> to vector<128x4xf32>
    %14 = vector.extract_strided_slice %12 {offsets = [1, 0], sizes = [128, 4], strides = [1, 1]} : vector<176x4xf32> to vector<128x4xf32>
    %15 = vector.extract_strided_slice %12 {offsets = [2, 0], sizes = [128, 4], strides = [1, 1]} : vector<176x4xf32> to vector<128x4xf32>
    %16 = vector.extract_strided_slice %12 {offsets = [16, 0], sizes = [128, 4], strides = [1, 1]} : vector<176x4xf32> to vector<128x4xf32>
    %17 = vector.extract_strided_slice %12 {offsets = [17, 0], sizes = [128, 4], strides = [1, 1]} : vector<176x4xf32> to vector<128x4xf32>
    %18 = vector.extract_strided_slice %12 {offsets = [18, 0], sizes = [128, 4], strides = [1, 1]} : vector<176x4xf32> to vector<128x4xf32>
    %19 = vector.extract_strided_slice %12 {offsets = [32, 0], sizes = [128, 4], strides = [1, 1]} : vector<176x4xf32> to vector<128x4xf32>
    %20 = vector.extract_strided_slice %12 {offsets = [33, 0], sizes = [128, 4], strides = [1, 1]} : vector<176x4xf32> to vector<128x4xf32>
    %21 = vector.extract_strided_slice %12 {offsets = [34, 0], sizes = [128, 4], strides = [1, 1]} : vector<176x4xf32> to vector<128x4xf32>
    %22 = tpu.concatenate %13, %14, %15, %16, %17, %18, %19, %20, %21 in 1 : vector<128x4xf32>, vector<128x4xf32>, vector<128x4xf32>, vector<128x4xf32>, vector<128x4xf32>, vector<128x4xf32>, vector<128x4xf32>, vector<128x4xf32>, vector<128x4xf32> -> vector<128x36xf32>
    %23 = arith.truncf %22 : vector<128x36xf32> to vector<128x36xbf16>
    %c0_8 = arith.constant 0 : index
    %c0_9 = arith.constant 0 : index
    %24 = vector.load %arg2[%c0_8, %c0_9] : memref<36x8xbf16, #tpu.memory_space<vmem>>, vector<36x8xbf16>
    %cst_10 = arith.constant dense<0.000000e+00> : vector<128x8xf32>
    %25 = tpu.matmul %23, %24, %cst_10 {dimension_numbers = #tpu.dot_dimension_numbers<[1], [0], [0], [1], [0, 0, 1, 1], [], []>} : vector<128x36xbf16>, vector<36x8xbf16>, vector<128x8xf32> -> vector<128x8xf32>
    %c0_11 = arith.constant 0 : index
    %c0_12 = arith.constant 0 : index
    %26 = vector.load %arg3[%c0_11, %c0_12] : memref<1x8xf32, #tpu.memory_space<vmem>>, vector<1x8xf32>
    %27 = vector.broadcast %26 : vector<1x8xf32> to vector<128x8xf32>
    %28 = arith.addf %25, %27 : vector<128x8xf32>
    %cst_13 = arith.constant 0.000000e+00 : f32
    %29 = vector.broadcast %cst_13 : f32 to vector<128x8xf32>
    %30 = arith.maximumf %28, %29 : vector<128x8xf32>
    %31 = tpu.iota {dimensions = array<i32: 0>} : vector<128x1xi32>
    %c16_i32 = arith.constant 16 : i32
    %c0_i32 = arith.constant 0 : i32
    %32 = arith.cmpi eq, %c16_i32, %c0_i32 : i32
    %c1_i32 = arith.constant 1 : i32
    %33 = arith.select %32, %c1_i32, %c16_i32 : i32
    %34 = vector.broadcast %33 : i32 to vector<128x1xi32>
    %35 = arith.remsi %31, %34 : vector<128x1xi32>
    %c0_i32_14 = arith.constant 0 : i32
    %36 = vector.broadcast %c0_i32_14 : i32 to vector<128x1xi32>
    %37 = arith.cmpi ne, %35, %36 : vector<128x1xi32>
    %c0_i32_15 = arith.constant 0 : i32
    %38 = vector.broadcast %c0_i32_15 : i32 to vector<128x1xi32>
    %39 = arith.cmpi slt, %35, %38 : vector<128x1xi32>
    %c0_i32_16 = arith.constant 0 : i32
    %40 = arith.cmpi slt, %33, %c0_i32_16 : i32
    %41 = vector.broadcast %40 : i1 to vector<128x1xi1>
    %42 = vector.broadcast %41 : vector<128x1xi1> to vector<128x1xi1>
    %43 = arith.xori %39, %42 : vector<128x1xi1>
    %44 = arith.andi %43, %37 : vector<128x1xi1>
    %45 = vector.broadcast %33 : i32 to vector<128x1xi32>
    %46 = arith.addi %35, %45 : vector<128x1xi32>
    %47 = arith.select %44, %46, %35 : vector<128x1xi1>, vector<128x1xi32>
    %c8_i32 = arith.constant 8 : i32
    %48 = vector.broadcast %c8_i32 : i32 to vector<128x1xi32>
    %49 = arith.cmpi slt, %47, %48 : vector<128x1xi32>
    %cst_17 = arith.constant 0.000000e+00 : f32
    %50 = vector.shape_cast %49 : vector<128x1xi1> to vector<128x1xi1>
    %51 = vector.broadcast %50 : vector<128x1xi1> to vector<128x8xi1>
    %52 = vector.broadcast %cst_17 : f32 to vector<128x8xf32>
    %53 = arith.select %51, %30, %52 : vector<128x8xi1>, vector<128x8xf32>
    %cst_18 = arith.constant 0.000000e+00 : f32
    %54 = vector.broadcast %cst_18 : f32 to vector<17x8xf32>
    %cst_19 = arith.constant 0.000000e+00 : f32
    %55 = vector.broadcast %cst_19 : f32 to vector<31x8xf32>
    %56 = tpu.concatenate %54, %53, %55 in 0 : vector<17x8xf32>, vector<128x8xf32>, vector<31x8xf32> -> vector<176x8xf32>
    %57 = vector.extract_strided_slice %56 {offsets = [0, 0], sizes = [128, 8], strides = [1, 1]} : vector<176x8xf32> to vector<128x8xf32>
    %58 = vector.extract_strided_slice %56 {offsets = [1, 0], sizes = [128, 8], strides = [1, 1]} : vector<176x8xf32> to vector<128x8xf32>
    %59 = vector.extract_strided_slice %56 {offsets = [2, 0], sizes = [128, 8], strides = [1, 1]} : vector<176x8xf32> to vector<128x8xf32>
    %60 = vector.extract_strided_slice %56 {offsets = [16, 0], sizes = [128, 8], strides = [1, 1]} : vector<176x8xf32> to vector<128x8xf32>
    %61 = vector.extract_strided_slice %56 {offsets = [17, 0], sizes = [128, 8], strides = [1, 1]} : vector<176x8xf32> to vector<128x8xf32>
    %62 = vector.extract_strided_slice %56 {offsets = [18, 0], sizes = [128, 8], strides = [1, 1]} : vector<176x8xf32> to vector<128x8xf32>
    %63 = vector.extract_strided_slice %56 {offsets = [32, 0], sizes = [128, 8], strides = [1, 1]} : vector<176x8xf32> to vector<128x8xf32>
    %64 = vector.extract_strided_slice %56 {offsets = [33, 0], sizes = [128, 8], strides = [1, 1]} : vector<176x8xf32> to vector<128x8xf32>
    %65 = vector.extract_strided_slice %56 {offsets = [34, 0], sizes = [128, 8], strides = [1, 1]} : vector<176x8xf32> to vector<128x8xf32>
    %66 = tpu.concatenate %57, %58, %59, %60, %61, %62, %63, %64, %65 in 1 : vector<128x8xf32>, vector<128x8xf32>, vector<128x8xf32>, vector<128x8xf32>, vector<128x8xf32>, vector<128x8xf32>, vector<128x8xf32>, vector<128x8xf32>, vector<128x8xf32> -> vector<128x72xf32>
    %67 = arith.truncf %66 : vector<128x72xf32> to vector<128x72xbf16>
    %c0_20 = arith.constant 0 : index
    %c0_21 = arith.constant 0 : index
    %68 = vector.load %arg4[%c0_20, %c0_21] : memref<72x8xbf16, #tpu.memory_space<vmem>>, vector<72x8xbf16>
    %cst_22 = arith.constant dense<0.000000e+00> : vector<128x8xf32>
    %69 = tpu.matmul %67, %68, %cst_22 {dimension_numbers = #tpu.dot_dimension_numbers<[1], [0], [0], [1], [0, 0, 1, 1], [], []>} : vector<128x72xbf16>, vector<72x8xbf16>, vector<128x8xf32> -> vector<128x8xf32>
    %c0_23 = arith.constant 0 : index
    %c0_24 = arith.constant 0 : index
    %70 = vector.load %arg5[%c0_23, %c0_24] : memref<1x8xf32, #tpu.memory_space<vmem>>, vector<1x8xf32>
    %71 = vector.broadcast %70 : vector<1x8xf32> to vector<128x8xf32>
    %72 = arith.addf %69, %71 : vector<128x8xf32>
    %cst_25 = arith.constant 0.000000e+00 : f32
    %73 = vector.broadcast %cst_25 : f32 to vector<128x8xf32>
    %74 = arith.maximumf %72, %73 : vector<128x8xf32>
    %c0_26 = arith.constant 0 : index
    %c0_27 = arith.constant 0 : index
    %c0_28 = arith.constant 0 : index
    %75 = vector.load %arg10[%c0_26, %c0_27, %c0_28] : memref<1x128x8xf32, #tpu.memory_space<vmem>>, vector<1x128x8xf32>
    %76 = vector.shape_cast %75 : vector<1x128x8xf32> to vector<128x8xf32>
    %77 = vector.shape_cast %74 : vector<128x8xf32> to vector<1x128x8xf32>
    tpu.vector_store %arg10[%c0_26, %c0_27, %c0_28], %77 {strides = array<i32>} : memref<1x128x8xf32, #tpu.memory_space<vmem>>, vector<1x128x8xf32>,
    %78 = vector.shape_cast %74 : vector<128x8xf32> to vector<8x16x8xf32>
    %79 = vector.extract_strided_slice %78 {offsets = [0, 0, 0], sizes = [8, 8, 8], strides = [1, 1, 1]} : vector<8x16x8xf32> to vector<8x8x8xf32>
    %80 = vector.shape_cast %79 : vector<8x8x8xf32> to vector<4x2x8x8xf32>
    %cst_29 = arith.constant dense<0xFF800000> : vector<4x8x8xf32>
    %81 = vector.multi_reduction <maximumf>, %80, %cst_29 [1] : vector<4x2x8x8xf32> to vector<4x8x8xf32>
    %82 = vector.shape_cast %81 : vector<4x8x8xf32> to vector<4x4x2x8xf32>
    %cst_30 = arith.constant dense<0xFF800000> : vector<4x4x8xf32>
    %83 = vector.multi_reduction <maximumf>, %82, %cst_30 [2] : vector<4x4x2x8xf32> to vector<4x4x8xf32>
    %cst_31 = arith.constant 0.000000e+00 : f32
    %84 = vector.broadcast %cst_31 : f32 to vector<4x1x8xf32>
    %cst_32 = arith.constant 0.000000e+00 : f32
    %85 = vector.broadcast %cst_32 : f32 to vector<4x3x8xf32>
    %86 = tpu.concatenate %84, %83, %85 in 1 : vector<4x1x8xf32>, vector<4x4x8xf32>, vector<4x3x8xf32> -> vector<4x8x8xf32>
    %cst_33 = arith.constant 0.000000e+00 : f32
    %87 = vector.broadcast %cst_33 : f32 to vector<1x8x8xf32>
    %cst_34 = arith.constant 0.000000e+00 : f32
    %88 = vector.broadcast %cst_34 : f32 to vector<2x8x8xf32>
    %89 = tpu.concatenate %87, %86, %88 in 0 : vector<1x8x8xf32>, vector<4x8x8xf32>, vector<2x8x8xf32> -> vector<7x8x8xf32>
    %90 = vector.shape_cast %89 : vector<7x8x8xf32> to vector<56x8xf32>
    %91 = vector.extract_strided_slice %90 {offsets = [0, 0], sizes = [32, 8], strides = [1, 1]} : vector<56x8xf32> to vector<32x8xf32>
    %92 = vector.extract_strided_slice %90 {offsets = [1, 0], sizes = [32, 8], strides = [1, 1]} : vector<56x8xf32> to vector<32x8xf32>
    %93 = vector.extract_strided_slice %90 {offsets = [2, 0], sizes = [32, 8], strides = [1, 1]} : vector<56x8xf32> to vector<32x8xf32>
    %94 = vector.extract_strided_slice %90 {offsets = [8, 0], sizes = [32, 8], strides = [1, 1]} : vector<56x8xf32> to vector<32x8xf32>
    %95 = vector.extract_strided_slice %90 {offsets = [9, 0], sizes = [32, 8], strides = [1, 1]} : vector<56x8xf32> to vector<32x8xf32>
    %96 = vector.extract_strided_slice %90 {offsets = [10, 0], sizes = [32, 8], strides = [1, 1]} : vector<56x8xf32> to vector<32x8xf32>
    %97 = vector.extract_strided_slice %90 {offsets = [16, 0], sizes = [32, 8], strides = [1, 1]} : vector<56x8xf32> to vector<32x8xf32>
    %98 = vector.extract_strided_slice %90 {offsets = [17, 0], sizes = [32, 8], strides = [1, 1]} : vector<56x8xf32> to vector<32x8xf32>
    %99 = vector.extract_strided_slice %90 {offsets = [18, 0], sizes = [32, 8], strides = [1, 1]} : vector<56x8xf32> to vector<32x8xf32>
    %100 = tpu.concatenate %91, %92, %93, %94, %95, %96, %97, %98, %99 in 1 : vector<32x8xf32>, vector<32x8xf32>, vector<32x8xf32>, vector<32x8xf32>, vector<32x8xf32>, vector<32x8xf32>, vector<32x8xf32>, vector<32x8xf32>, vector<32x8xf32> -> vector<32x72xf32>
    %101 = arith.truncf %100 : vector<32x72xf32> to vector<32x72xbf16>
    %c0_35 = arith.constant 0 : index
    %c0_36 = arith.constant 0 : index
    %102 = vector.load %arg6[%c0_35, %c0_36] : memref<72x16xbf16, #tpu.memory_space<vmem>>, vector<72x16xbf16>
    %cst_37 = arith.constant dense<0.000000e+00> : vector<32x16xf32>
    %103 = tpu.matmul %101, %102, %cst_37 {dimension_numbers = #tpu.dot_dimension_numbers<[1], [0], [0], [1], [0, 0, 1, 1], [], []>} : vector<32x72xbf16>, vector<72x16xbf16>, vector<32x16xf32> -> vector<32x16xf32>
    %c0_38 = arith.constant 0 : index
    %c0_39 = arith.constant 0 : index
    %104 = vector.load %arg7[%c0_38, %c0_39] : memref<1x16xf32, #tpu.memory_space<vmem>>, vector<1x16xf32>
    %105 = vector.broadcast %104 : vector<1x16xf32> to vector<32x16xf32>
    %106 = arith.addf %103, %105 : vector<32x16xf32>
    %cst_40 = arith.constant 0.000000e+00 : f32
    %107 = vector.broadcast %cst_40 : f32 to vector<32x16xf32>
    %108 = arith.maximumf %106, %107 : vector<32x16xf32>
    %109 = tpu.iota {dimensions = array<i32: 0>} : vector<32x1xi32>
    %c8_i32_41 = arith.constant 8 : i32
    %c0_i32_42 = arith.constant 0 : i32
    %110 = arith.cmpi eq, %c8_i32_41, %c0_i32_42 : i32
    %c1_i32_43 = arith.constant 1 : i32
    %111 = arith.select %110, %c1_i32_43, %c8_i32_41 : i32
    %112 = vector.broadcast %111 : i32 to vector<32x1xi32>
    %113 = arith.remsi %109, %112 : vector<32x1xi32>
    %c0_i32_44 = arith.constant 0 : i32
    %114 = vector.broadcast %c0_i32_44 : i32 to vector<32x1xi32>
    %115 = arith.cmpi ne, %113, %114 : vector<32x1xi32>
    %c0_i32_45 = arith.constant 0 : i32
    %116 = vector.broadcast %c0_i32_45 : i32 to vector<32x1xi32>
    %117 = arith.cmpi slt, %113, %116 : vector<32x1xi32>
    %c0_i32_46 = arith.constant 0 : i32
    %118 = arith.cmpi slt, %111, %c0_i32_46 : i32
    %119 = vector.broadcast %118 : i1 to vector<32x1xi1>
    %120 = vector.broadcast %119 : vector<32x1xi1> to vector<32x1xi1>
    %121 = arith.xori %117, %120 : vector<32x1xi1>
    %122 = arith.andi %121, %115 : vector<32x1xi1>
    %123 = vector.broadcast %111 : i32 to vector<32x1xi32>
    %124 = arith.addi %113, %123 : vector<32x1xi32>
    %125 = arith.select %122, %124, %113 : vector<32x1xi1>, vector<32x1xi32>
    %c4_i32 = arith.constant 4 : i32
    %126 = vector.broadcast %c4_i32 : i32 to vector<32x1xi32>
    %127 = arith.cmpi slt, %125, %126 : vector<32x1xi32>
    %cst_47 = arith.constant 0.000000e+00 : f32
    %128 = vector.shape_cast %127 : vector<32x1xi1> to vector<32x1xi1>
    %129 = vector.broadcast %128 : vector<32x1xi1> to vector<32x16xi1>
    %130 = vector.broadcast %cst_47 : f32 to vector<32x16xf32>
    %131 = arith.select %129, %108, %130 : vector<32x16xi1>, vector<32x16xf32>
    %cst_48 = arith.constant 0.000000e+00 : f32
    %132 = vector.broadcast %cst_48 : f32 to vector<9x16xf32>
    %cst_49 = arith.constant 0.000000e+00 : f32
    %133 = vector.broadcast %cst_49 : f32 to vector<15x16xf32>
    %134 = tpu.concatenate %132, %131, %133 in 0 : vector<9x16xf32>, vector<32x16xf32>, vector<15x16xf32> -> vector<56x16xf32>
    %135 = vector.extract_strided_slice %134 {offsets = [0, 0], sizes = [32, 16], strides = [1, 1]} : vector<56x16xf32> to vector<32x16xf32>
    %136 = vector.extract_strided_slice %134 {offsets = [1, 0], sizes = [32, 16], strides = [1, 1]} : vector<56x16xf32> to vector<32x16xf32>
    %137 = vector.extract_strided_slice %134 {offsets = [2, 0], sizes = [32, 16], strides = [1, 1]} : vector<56x16xf32> to vector<32x16xf32>
    %138 = vector.extract_strided_slice %134 {offsets = [8, 0], sizes = [32, 16], strides = [1, 1]} : vector<56x16xf32> to vector<32x16xf32>
    %139 = vector.extract_strided_slice %134 {offsets = [9, 0], sizes = [32, 16], strides = [1, 1]} : vector<56x16xf32> to vector<32x16xf32>
    %140 = vector.extract_strided_slice %134 {offsets = [10, 0], sizes = [32, 16], strides = [1, 1]} : vector<56x16xf32> to vector<32x16xf32>
    %141 = vector.extract_strided_slice %134 {offsets = [16, 0], sizes = [32, 16], strides = [1, 1]} : vector<56x16xf32> to vector<32x16xf32>
    %142 = vector.extract_strided_slice %134 {offsets = [17, 0], sizes = [32, 16], strides = [1, 1]} : vector<56x16xf32> to vector<32x16xf32>
    %143 = vector.extract_strided_slice %134 {offsets = [18, 0], sizes = [32, 16], strides = [1, 1]} : vector<56x16xf32> to vector<32x16xf32>
    %144 = tpu.concatenate %135, %136, %137, %138, %139, %140, %141, %142, %143 in 1 : vector<32x16xf32>, vector<32x16xf32>, vector<32x16xf32>, vector<32x16xf32>, vector<32x16xf32>, vector<32x16xf32>, vector<32x16xf32>, vector<32x16xf32>, vector<32x16xf32> -> vector<32x144xf32>
    %145 = arith.truncf %144 : vector<32x144xf32> to vector<32x144xbf16>
    %c0_50 = arith.constant 0 : index
    %c0_51 = arith.constant 0 : index
    %146 = vector.load %arg8[%c0_50, %c0_51] : memref<144x16xbf16, #tpu.memory_space<vmem>>, vector<144x16xbf16>
    %cst_52 = arith.constant dense<0.000000e+00> : vector<32x16xf32>
    %147 = tpu.matmul %145, %146, %cst_52 {dimension_numbers = #tpu.dot_dimension_numbers<[1], [0], [0], [1], [0, 0, 1, 1], [], []>} : vector<32x144xbf16>, vector<144x16xbf16>, vector<32x16xf32> -> vector<32x16xf32>
    %c0_53 = arith.constant 0 : index
    %c0_54 = arith.constant 0 : index
    %148 = vector.load %arg9[%c0_53, %c0_54] : memref<1x16xf32, #tpu.memory_space<vmem>>, vector<1x16xf32>
    %149 = vector.broadcast %148 : vector<1x16xf32> to vector<32x16xf32>
    %150 = arith.addf %147, %149 : vector<32x16xf32>
    %cst_55 = arith.constant 0.000000e+00 : f32
    %151 = vector.broadcast %cst_55 : f32 to vector<32x16xf32>
    %152 = arith.maximumf %150, %151 : vector<32x16xf32>
    %c0_56 = arith.constant 0 : index
    %c0_57 = arith.constant 0 : index
    %c0_58 = arith.constant 0 : index
    %153 = vector.load %arg11[%c0_56, %c0_57, %c0_58] : memref<1x32x16xf32, #tpu.memory_space<vmem>>, vector<1x32x16xf32>
    %154 = vector.shape_cast %153 : vector<1x32x16xf32> to vector<32x16xf32>
    %155 = vector.shape_cast %152 : vector<32x16xf32> to vector<1x32x16xf32>
    tpu.vector_store %arg11[%c0_56, %c0_57, %c0_58], %155 {strides = array<i32>} : memref<1x32x16xf32, #tpu.memory_space<vmem>>, vector<1x32x16xf32>,
    return
  }
  func.func @transform_0(%arg0: i32) -> (i32, i32, i32, i32) {
    %c0_i32 = arith.constant 0 : i32
    %c0_i32_0 = arith.constant 0 : i32
    %c0_i32_1 = arith.constant 0 : i32
    %c0_i32_2 = arith.constant 0 : i32
    return %arg0, %c0_i32, %c0_i32_0, %c0_i32_1 : i32, i32, i32, i32
  }
  func.func @transform_1(%arg0: i32) -> (i32, i32) {
    %c0_i32 = arith.constant 0 : i32
    %c0_i32_0 = arith.constant 0 : i32
    %c0_i32_1 = arith.constant 0 : i32
    return %c0_i32, %c0_i32_0 : i32, i32
  }
  func.func @transform_2(%arg0: i32) -> (i32, i32) {
    %c0_i32 = arith.constant 0 : i32
    %c0_i32_0 = arith.constant 0 : i32
    %c0_i32_1 = arith.constant 0 : i32
    return %c0_i32, %c0_i32_0 : i32, i32
  }
  func.func @transform_3(%arg0: i32) -> (i32, i32) {
    %c0_i32 = arith.constant 0 : i32
    %c0_i32_0 = arith.constant 0 : i32
    %c0_i32_1 = arith.constant 0 : i32
    return %c0_i32, %c0_i32_0 : i32, i32
  }
  func.func @transform_4(%arg0: i32) -> (i32, i32) {
    %c0_i32 = arith.constant 0 : i32
    %c0_i32_0 = arith.constant 0 : i32
    %c0_i32_1 = arith.constant 0 : i32
    return %c0_i32, %c0_i32_0 : i32, i32
  }
  func.func @transform_5(%arg0: i32) -> (i32, i32) {
    %c0_i32 = arith.constant 0 : i32
    %c0_i32_0 = arith.constant 0 : i32
    %c0_i32_1 = arith.constant 0 : i32
    return %c0_i32, %c0_i32_0 : i32, i32
  }
  func.func @transform_6(%arg0: i32) -> (i32, i32) {
    %c0_i32 = arith.constant 0 : i32
    %c0_i32_0 = arith.constant 0 : i32
    %c0_i32_1 = arith.constant 0 : i32
    return %c0_i32, %c0_i32_0 : i32, i32
  }
  func.func @transform_7(%arg0: i32) -> (i32, i32) {
    %c0_i32 = arith.constant 0 : i32
    %c0_i32_0 = arith.constant 0 : i32
    %c0_i32_1 = arith.constant 0 : i32
    return %c0_i32, %c0_i32_0 : i32, i32
  }
  func.func @transform_8(%arg0: i32) -> (i32, i32) {
    %c0_i32 = arith.constant 0 : i32
    %c0_i32_0 = arith.constant 0 : i32
    %c0_i32_1 = arith.constant 0 : i32
    return %c0_i32, %c0_i32_0 : i32, i32
  }
  func.func @transform_9(%arg0: i32) -> (i32, i32, i32) {
    %c0_i32 = arith.constant 0 : i32
    %c0_i32_0 = arith.constant 0 : i32
    %c0_i32_1 = arith.constant 0 : i32
    return %arg0, %c0_i32, %c0_i32_0 : i32, i32, i32
  }
  func.func @transform_10(%arg0: i32) -> (i32, i32, i32) {
    %c0_i32 = arith.constant 0 : i32
    %c0_i32_0 = arith.constant 0 : i32
    %c0_i32_1 = arith.constant 0 : i32
    return %arg0, %c0_i32, %c0_i32_0 : i32, i32, i32
  }
}

</mosaic_0001>

<llo_original>
// kernel: tpu_custom_call.1
$region0: #{tpu_custom_call.1}
  #allocation0 [shape = 'u32[]', space=smem, size = 0x4, offset = 0x4, fixed_abs, tag = 'smem constant byte address 0x4 - core index']
  #allocation1 [shape = 'u32[72,128]{1,0:T(1,128)}', space=vmem, size = 0x9000, scoped, tag = 'internal scratch']
  %s0 = inlined_call_operand.vmem [shape: f32[2,16,16,4], index: 0, kind: input, shape index: {}]
  %s1 = inlined_call_operand.vmem [shape: bf16[36,8], index: 1, kind: input, shape index: {}]
  %s2 = inlined_call_operand.vmem [shape: f32[1,8], index: 2, kind: input, shape index: {}]
  %s3 = inlined_call_operand.vmem [shape: bf16[72,8], index: 3, kind: input, shape index: {}]
  %s4 = inlined_call_operand.vmem [shape: f32[1,8], index: 4, kind: input, shape index: {}]
  %s5 = inlined_call_operand.vmem [shape: bf16[72,16], index: 5, kind: input, shape index: {}]
  %s6 = inlined_call_operand.vmem [shape: f32[1,16], index: 6, kind: input, shape index: {}]
  %s7 = inlined_call_operand.vmem [shape: bf16[144,16], index: 7, kind: input, shape index: {}]
  %s8 = inlined_call_operand.vmem [shape: f32[1,16], index: 8, kind: input, shape index: {}]
  %s9 = inlined_call_operand.vmem [shape: f32[2,128,8], index: 9, kind: output, shape index: {0}]
  %s10 = inlined_call_operand.vmem [shape: f32[2,32,16], index: 10, kind: output, shape index: {1}]
  %11 = xla_tuple %s9, %s10
  %s12 = sld [smem:[#allocation0]]
  $region77: #{tpu_custom_call.1} parent=0
    _
  %s14 = ssub.s32 1, %s12
  %s15 = scalar_select 0, %s14, %s12
  loop: start=0, step=1, limit=4
  $region2: #{tpu_custom_call.1} parent=0 // loop_pre_header
    _
  $region3: #{tpu_custom_call.1} parent=0 // loop_header
    %s17 = sphi 0, %s21
    %p18 = scmp.ge.s32.totalorder %s17, 4
    %s27 = sphi 0, %s29
    %s30 = sphi 0, %s27
    %s31 = sphi 0, %s30
    %s47 = sphi 0, %s31
    %s51 = sphi 0, %s51
    %s53 = sphi 0, %s51
    %s54 = sphi 0, %s53
    %s68 = sphi 0, %s54
    %s72 = sphi 0, %s72
    %s74 = sphi 0, %s72
    %s75 = sphi 0, %s74
    %s89 = sphi 0, %s75
    %s93 = sphi 0, %s93
    %s95 = sphi 0, %s93
    %s96 = sphi 0, %s95
    %s110 = sphi 0, %s96
    %s114 = sphi 0, %s114
    %s116 = sphi 0, %s114
    %s117 = sphi 0, %s116
    %s131 = sphi 0, %s117
    %s135 = sphi 0, %s135
    %s137 = sphi 0, %s135
    %s138 = sphi 0, %s137
    %s152 = sphi 0, %s138
    %s156 = sphi 0, %s156
    %s158 = sphi 0, %s156
    %s159 = sphi 0, %s158
    %s173 = sphi 0, %s159
    %s177 = sphi 0, %s177
    %s179 = sphi 0, %s177
    %s180 = sphi 0, %s179
    %s194 = sphi 0, %s180
    %s198 = sphi 0, %s198
    %s200 = sphi 0, %s198
    %s201 = sphi 0, %s200
    %s215 = sphi 0, %s201
    %s221 = sphi 0, %s223
    %s224 = sphi 0, %s221
    %s225 = sphi 0, %s224
    %s241 = sphi 0, %s225
    %s247 = sphi 0, %s249
    %s250 = sphi 0, %s247
    %s251 = sphi 0, %s250
    %s267 = sphi 0, %s251
  $region4: #{tpu_custom_call.1} parent=0 // loop_header_branch
    %20 = sbr.rel (%p18) target = $region8
  $region5: #{tpu_custom_call.1} parent=0 // loop_body
    %s22 = ssub.s32 %s17, 1
    %s23 = ssub.s32 %s17, 2
    %s24 = sadd.s32 %s17, 1
    %s25 = ssub.s32 %s17, %s24
    %p26 = scmp.eq.s32.totalorder %s25, 0
    %s28 = sadd.s32 %s27, 1
    %s29 = scalar_select %p26, %s27, %s28
    %p32 = pneg %p26
    %p33 = scmp.eq.s32.totalorder %s17, 1
    %p34 = por %p32, %p33
    %p35 = scmp.ne.s32.totalorder %s27, %s30
    %p36 = scmp.eq.s32.totalorder %s17, 0
    %p37 = por %p35, %p36
    %p38 = scmp.ne.s32.totalorder %s27, %s30
    %p39 = scmp.eq.s32.totalorder %s22, 1
    %p40 = por %p38, %p39
    %p41 = scmp.ne.s32.totalorder %s30, %s31
    %p42 = scmp.eq.s32.totalorder %s22, 0
    %p43 = por %p41, %p42
    %p44 = scmp.ne.s32.totalorder %s30, %s31
    %p45 = scmp.eq.s32.totalorder %s23, 1
    %p46 = por %p44, %p45
    %p48 = scmp.ne.s32.totalorder %s31, %s47
    %p49 = scmp.eq.s32.totalorder %s23, 0
    %p50 = por %p48, %p49
    %s52 = sadd.s32 %s51, 1
    %p55 = scmp.eq.s32.totalorder %s17, 1
    %p56 = scmp.ne.s32.totalorder %s51, %s53
    %p57 = scmp.eq.s32.totalorder %s17, 0
    %p58 = por %p56, %p57
    %p59 = scmp.ne.s32.totalorder %s51, %s53
    %p60 = scmp.eq.s32.totalorder %s22, 1
    %p61 = por %p59, %p60
    %p62 = scmp.ne.s32.totalorder %s53, %s54
    %p63 = scmp.eq.s32.totalorder %s22, 0
    %p64 = por %p62, %p63
    %p65 = scmp.ne.s32.totalorder %s53, %s54
    %p66 = scmp.eq.s32.totalorder %s23, 1
    %p67 = por %p65, %p66
    %p69 = scmp.ne.s32.totalorder %s54, %s68
    %p70 = scmp.eq.s32.totalorder %s23, 0
    %p71 = por %p69, %p70
    %s73 = sadd.s32 %s72, 1
    %p76 = scmp.eq.s32.totalorder %s17, 1
    %p77 = scmp.ne.s32.totalorder %s72, %s74
    %p78 = scmp.eq.s32.totalorder %s17, 0
    %p79 = por %p77, %p78
    %p80 = scmp.ne.s32.totalorder %s72, %s74
    %p81 = scmp.eq.s32.totalorder %s22, 1
    %p82 = por %p80, %p81
    %p83 = scmp.ne.s32.totalorder %s74, %s75
    %p84 = scmp.eq.s32.totalorder %s22, 0
    %p85 = por %p83, %p84
    %p86 = scmp.ne.s32.totalorder %s74, %s75
    %p87 = scmp.eq.s32.totalorder %s23, 1
    %p88 = por %p86, %p87
    %p90 = scmp.ne.s32.totalorder %s75, %s89
    %p91 = scmp.eq.s32.totalorder %s23, 0
    %p92 = por %p90, %p91
    %s94 = sadd.s32 %s93, 1
    %p97 = scmp.eq.s32.totalorder %s17, 1
    %p98 = scmp.ne.s32.totalorder %s93, %s95
    %p99 = scmp.eq.s32.totalorder %s17, 0
    %p100 = por %p98, %p99
    %p101 = scmp.ne.s32.totalorder %s93, %s95
    %p102 = scmp.eq.s32.totalorder %s22, 1
    %p103 = por %p101, %p102
    %p104 = scmp.ne.s32.totalorder %s95, %s96
    %p105 = scmp.eq.s32.totalorder %s22, 0
    %p106 = por %p104, %p105
    %p107 = scmp.ne.s32.totalorder %s95, %s96
    %p108 = scmp.eq.s32.totalorder %s23, 1
    %p109 = por %p107, %p108
    %p111 = scmp.ne.s32.totalorder %s96, %s110
    %p112 = scmp.eq.s32.totalorder %s23, 0
    %p113 = por %p111, %p112
    %s115 = sadd.s32 %s114, 1
    %p118 = scmp.eq.s32.totalorder %s17, 1
    %p119 = scmp.ne.s32.totalorder %s114, %s116
    %p120 = scmp.eq.s32.totalorder %s17, 0
    %p121 = por %p119, %p120
    %p122 = scmp.ne.s32.totalorder %s114, %s116
    %p123 = scmp.eq.s32.totalorder %s22, 1
    %p124 = por %p122, %p123
    %p125 = scmp.ne.s32.totalorder %s116, %s117
    %p126 = scmp.eq.s32.totalorder %s22, 0
    %p127 = por %p125, %p126
    %p128 = scmp.ne.s32.totalorder %s116, %s117
    %p129 = scmp.eq.s32.totalorder %s23, 1
    %p130 = por %p128, %p129
    %p132 = scmp.ne.s32.totalorder %s117, %s131
    %p133 = scmp.eq.s32.totalorder %s23, 0
    %p134 = por %p132, %p133
    %s136 = sadd.s32 %s135, 1
    %p139 = scmp.eq.s32.totalorder %s17, 1
    %p140 = scmp.ne.s32.totalorder %s135, %s137
    %p141 = scmp.eq.s32.totalorder %s17, 0
    %p142 = por %p140, %p141
    %p143 = scmp.ne.s32.totalorder %s135, %s137
    %p144 = scmp.eq.s32.totalorder %s22, 1
    %p145 = por %p143, %p144
    %p146 = scmp.ne.s32.totalorder %s137, %s138
    %p147 = scmp.eq.s32.totalorder %s22, 0
    %p148 = por %p146, %p147
    %p149 = scmp.ne.s32.totalorder %s137, %s138
    %p150 = scmp.eq.s32.totalorder %s23, 1
    %p151 = por %p149, %p150
    %p153 = scmp.ne.s32.totalorder %s138, %s152
    %p154 = scmp.eq.s32.totalorder %s23, 0
    %p155 = por %p153, %p154
    %s157 = sadd.s32 %s156, 1
    %p160 = scmp.eq.s32.totalorder %s17, 1
    %p161 = scmp.ne.s32.totalorder %s156, %s158
    %p162 = scmp.eq.s32.totalorder %s17, 0
    %p163 = por %p161, %p162
    %p164 = scmp.ne.s32.totalorder %s156, %s158
    %p165 = scmp.eq.s32.totalorder %s22, 1
    %p166 = por %p164, %p165
    %p167 = scmp.ne.s32.totalorder %s158, %s159
    %p168 = scmp.eq.s32.totalorder %s22, 0
    %p169 = por %p167, %p168
    %p170 = scmp.ne.s32.totalorder %s158, %s159
    %p171 = scmp.eq.s32.totalorder %s23, 1
    %p172 = por %p170, %p171
    %p174 = scmp.ne.s32.totalorder %s159, %s173
    %p175 = scmp.eq.s32.totalorder %s23, 0
    %p176 = por %p174, %p175
    %s178 = sadd.s32 %s177, 1
    %p181 = scmp.eq.s32.totalorder %s17, 1
    %p182 = scmp.ne.s32.totalorder %s177, %s179
    %p183 = scmp.eq.s32.totalorder %s17, 0
    %p184 = por %p182, %p183
    %p185 = scmp.ne.s32.totalorder %s177, %s179
    %p186 = scmp.eq.s32.totalorder %s22, 1
    %p187 = por %p185, %p186
    %p188 = scmp.ne.s32.totalorder %s179, %s180
    %p189 = scmp.eq.s32.totalorder %s22, 0
    %p190 = por %p188, %p189
    %p191 = scmp.ne.s32.totalorder %s179, %s180
    %p192 = scmp.eq.s32.totalorder %s23, 1
    %p193 = por %p191, %p192
    %p195 = scmp.ne.s32.totalorder %s180, %s194
    %p196 = scmp.eq.s32.totalorder %s23, 0
    %p197 = por %p195, %p196
    %s199 = sadd.s32 %s198, 1
    %p202 = scmp.eq.s32.totalorder %s17, 1
    %p203 = scmp.ne.s32.totalorder %s198, %s200
    %p204 = scmp.eq.s32.totalorder %s17, 0
    %p205 = por %p203, %p204
    %p206 = scmp.ne.s32.totalorder %s198, %s200
    %p207 = scmp.eq.s32.totalorder %s22, 1
    %p208 = por %p206, %p207
    %p209 = scmp.ne.s32.totalorder %s200, %s201
    %p210 = scmp.eq.s32.totalorder %s22, 0
    %p211 = por %p209, %p210
    %p212 = scmp.ne.s32.totalorder %s200, %s201
    %p213 = scmp.eq.s32.totalorder %s23, 1
    %p214 = por %p212, %p213
    %p216 = scmp.ne.s32.totalorder %s201, %s215
    %p217 = scmp.eq.s32.totalorder %s23, 0
    %p218 = por %p216, %p217
    %s219 = ssub.s32 %s17, %s24
    %p220 = scmp.eq.s32.totalorder %s219, 0
    %s222 = sadd.s32 %s221, 1
    %s223 = scalar_select %p220, %s221, %s222
    %p226 = pneg %p220
    %p227 = scmp.eq.s32.totalorder %s17, 1
    %p228 = por %p226, %p227
    %p229 = scmp.ne.s32.totalorder %s221, %s224
    %p230 = scmp.eq.s32.totalorder %s17, 0
    %p231 = por %p229, %p230
    %p232 = scmp.ne.s32.totalorder %s221, %s224
    %p233 = scmp.eq.s32.totalorder %s22, 1
    %p234 = por %p232, %p233
    %p235 = scmp.ne.s32.totalorder %s224, %s225
    %p236 = scmp.eq.s32.totalorder %s22, 0
    %p237 = por %p235, %p236
    %p238 = scmp.ne.s32.totalorder %s224, %s225
    %p239 = scmp.eq.s32.totalorder %s23, 1
    %p240 = por %p238, %p239
    %p242 = scmp.ne.s32.totalorder %s225, %s241
    %p243 = scmp.eq.s32.totalorder %s23, 0
    %p244 = por %p242, %p243
    %s245 = ssub.s32 %s17, %s24
    %p246 = scmp.eq.s32.totalorder %s245, 0
    %s248 = sadd.s32 %s247, 1
    %s249 = scalar_select %p246, %s247, %s248
    %p252 = pneg %p246
    %p253 = scmp.eq.s32.totalorder %s17, 1
    %p254 = por %p252, %p253
    %p255 = scmp.ne.s32.totalorder %s247, %s250
    %p256 = scmp.eq.s32.totalorder %s17, 0
    %p257 = por %p255, %p256
    %p258 = scmp.ne.s32.totalorder %s247, %s250
    %p259 = scmp.eq.s32.totalorder %s22, 1
    %p260 = por %p258, %p259
    %p261 = scmp.ne.s32.totalorder %s250, %s251
    %p262 = scmp.eq.s32.totalorder %s22, 0
    %p263 = por %p261, %p262
    %p264 = scmp.ne.s32.totalorder %s250, %s251
    %p265 = scmp.eq.s32.totalorder %s23, 1
    %p266 = por %p264, %p265
    %p268 = scmp.ne.s32.totalorder %s251, %s267
    %p269 = scmp.eq.s32.totalorder %s23, 0
    %p270 = por %p268, %p269
    %p271 = scmp.le.s32.totalorder 1, %s17
    %p272 = scmp.lt.s32.totalorder %s17, 3
    %p273 = pnand %p271, %p272
    %p274 = pneg %p273
    // Predicated region
    $region9: #{tpu_custom_call.1} parent=5 // pred_check
      _
    $region10: #{tpu_custom_call.1} parent=5 // pred_check_branch
      %276 = sbr.rel (%p273) target = $region12
    $region11: #{tpu_custom_call.1} parent=5 // pred_region
      %s277 = ssub.s32 %s17, 1
      // Predicated region
      $region13: #{tpu_custom_call.1} parent=11 // pred_check
        %p278 = pneg %p64
      $region14: #{tpu_custom_call.1} parent=11 // pred_check_branch
        %280 = sbr.rel (%p278) target = $region16
      $region15: #{tpu_custom_call.1} parent=11 // pred_region
        _
      $region16: #{tpu_custom_call.1} parent=11 // pred_fallthru
        _
      // Predicated region
      $region17: #{tpu_custom_call.1} parent=11 // pred_check
        %p281 = pneg %p85
      $region18: #{tpu_custom_call.1} parent=11 // pred_check_branch
        %283 = sbr.rel (%p281) target = $region20
      $region19: #{tpu_custom_call.1} parent=11 // pred_region
        _
      $region20: #{tpu_custom_call.1} parent=11 // pred_fallthru
        _
      // Predicated region
      $region21: #{tpu_custom_call.1} parent=11 // pred_check
        %p284 = pneg %p106
      $region22: #{tpu_custom_call.1} parent=11 // pred_check_branch
        %286 = sbr.rel (%p284) target = $region24
      $region23: #{tpu_custom_call.1} parent=11 // pred_region
        _
      $region24: #{tpu_custom_call.1} parent=11 // pred_fallthru
        _
      // Predicated region
      $region25: #{tpu_custom_call.1} parent=11 // pred_check
        %p287 = pneg %p127
      $region26: #{tpu_custom_call.1} parent=11 // pred_check_branch
        %289 = sbr.rel (%p287) target = $region28
      $region27: #{tpu_custom_call.1} parent=11 // pred_region
        _
      $region28: #{tpu_custom_call.1} parent=11 // pred_fallthru
        _
      // Predicated region
      $region29: #{tpu_custom_call.1} parent=11 // pred_check
        %p290 = pneg %p148
      $region30: #{tpu_custom_call.1} parent=11 // pred_check_branch
        %292 = sbr.rel (%p290) target = $region32
      $region31: #{tpu_custom_call.1} parent=11 // pred_region
        _
      $region32: #{tpu_custom_call.1} parent=11 // pred_fallthru
        _
      // Predicated region
      $region33: #{tpu_custom_call.1} parent=11 // pred_check
        %p293 = pneg %p169
      $region34: #{tpu_custom_call.1} parent=11 // pred_check_branch
        %295 = sbr.rel (%p293) target = $region36
      $region35: #{tpu_custom_call.1} parent=11 // pred_region
        _
      $region36: #{tpu_custom_call.1} parent=11 // pred_fallthru
        _
      // Predicated region
      $region37: #{tpu_custom_call.1} parent=11 // pred_check
        %p296 = pneg %p190
      $region38: #{tpu_custom_call.1} parent=11 // pred_check_branch
        %298 = sbr.rel (%p296) target = $region40
      $region39: #{tpu_custom_call.1} parent=11 // pred_region
        _
      $region40: #{tpu_custom_call.1} parent=11 // pred_fallthru
        _
      // Predicated region
      $region41: #{tpu_custom_call.1} parent=11 // pred_check
        %p299 = pneg %p211
      $region42: #{tpu_custom_call.1} parent=11 // pred_check_branch
        %301 = sbr.rel (%p299) target = $region44
      $region43: #{tpu_custom_call.1} parent=11 // pred_region
        _
      $region44: #{tpu_custom_call.1} parent=11 // pred_fallthru
        _
    $region12: #{tpu_custom_call.1} parent=5 // pred_fallthru
      _
    %p302 = scmp.lt.s32.totalorder %s17, 2
    // Predicated region
    $region45: #{tpu_custom_call.1} parent=5 // pred_check
      %p303 = pneg %p302
    $region46: #{tpu_custom_call.1} parent=5 // pred_check_branch
      %305 = sbr.rel (%p303) target = $region48
    $region47: #{tpu_custom_call.1} parent=5 // pred_region
      // Predicated region
      $region49: #{tpu_custom_call.1} parent=47 // pred_check
        %p306 = pneg %p37
      $region50: #{tpu_custom_call.1} parent=47 // pred_check_branch
        %308 = sbr.rel (%p306) target = $region52
      $region51: #{tpu_custom_call.1} parent=47 // pred_region
        %p309 = scmp.lt.s32.totalorder %s17, 1
        %s310 = scalar_select %p309, %s17, 1
        %s311 = smul.addr %s310, 32
        %s312 = smul.addr %s311, 8
        %s313 = scalar_lea.vmem %s0, %s312
      $region52: #{tpu_custom_call.1} parent=47 // pred_fallthru
        _
    $region48: #{tpu_custom_call.1} parent=5 // pred_fallthru
      _
    %p314 = scmp.le.s32.totalorder 1, %s17
    %p315 = scmp.lt.s32.totalorder %s17, 3
    %p316 = pnand %p314, %p315
    %p317 = pneg %p316
    // Predicated region
    $region53: #{tpu_custom_call.1} parent=5 // pred_check
      _
    $region54: #{tpu_custom_call.1} parent=5 // pred_check_branch
      %319 = sbr.rel (%p316) target = $region56
    $region55: #{tpu_custom_call.1} parent=5 // pred_region
      %s320 = ssub.s32 %s17, 1
      %p321 = scmp.lt.s32.totalorder %s22, 1
      %s322 = scalar_select %p321, %s22, 1
      %s323 = smul.addr %s322, 32
      %s324 = smul.addr %s323, 8
      %s325 = scalar_lea.vmem %s0, %s324
      %p326 = pneg %p43
      %p327 = pneg %p40
      %p328 = pneg %p64
      %p329 = pneg %p61
      %p330 = pneg %p85
      %p331 = pneg %p82
      %p332 = pneg %p106
      %p333 = pneg %p103
      %p334 = pneg %p127
      %p335 = pneg %p124
      %p336 = pneg %p148
      %p337 = pneg %p145
      %p338 = pneg %p169
      %p339 = pneg %p166
      %p340 = pneg %p190
      %p341 = pneg %p187
      %p342 = pneg %p211
      %p343 = pneg %p208
      %p344 = pneg %p237
      %p345 = pneg %p234
      %p346 = scmp.lt.s32.totalorder %s22, 1
      %s347 = scalar_select %p346, %s22, 1
      %s348 = smul.addr %s347, 16
      %s349 = smul.addr %s348, 8
      %s350 = scalar_lea.vmem %s9, %s349
      %p351 = pneg %p263
      %p352 = pneg %p260
      %p353 = scmp.lt.s32.totalorder %s22, 1
      %s354 = scalar_select %p353, %s22, 1
      %s355 = smul.addr %s354, 4
      %s356 = smul.addr %s355, 8
      %s357 = scalar_lea.vmem %s10, %s356
      %p358 = scmp.lt.s32.totalorder %s22, 1
      %s359 = scalar_select %p358, %s22, 1
      %s360 = smul.addr %s359, 32
      %s361 = smul.addr %s360, 8
      %s362 = scalar_lea.vmem %s0, %s361
      %p363 = scmp.lt.s32.totalorder %s22, 1
      %s364 = scalar_select %p363, %s22, 1
      %s365 = smul.addr %s364, 16
      %s366 = smul.addr %s365, 8
      %s367 = scalar_lea.vmem %s9, %s366
      %p368 = scmp.lt.s32.totalorder %s22, 1
      %s369 = scalar_select %p368, %s22, 1
      %s370 = smul.addr %s369, 4
      %s371 = smul.addr %s370, 8
      %s372 = scalar_lea.vmem %s10, %s371
      %v374 = vld [vmem:[%s362] sm:$0xff]
      %v375 = vld [vmem:[%s362 + $0x8] sm:$0xff]
      %v376 = vld [vmem:[%s362 + $0x10] sm:$0xff]
      %v377 = vld [vmem:[%s362 + $0x18] sm:$0xff]
      %v378 = vld [vmem:[%s362 + $0x20] sm:$0xff]
      %v379 = vld [vmem:[%s362 + $0x28] sm:$0xff]
      %v380 = vld [vmem:[%s362 + $0x30] sm:$0xff]
      %v381 = vld [vmem:[%s362 + $0x38] sm:$0xff]
      %v382 = vld [vmem:[%s362 + $0x40] sm:$0xff]
      %v383 = vld [vmem:[%s362 + $0x48] sm:$0xff]
      %v384 = vld [vmem:[%s362 + $0x50] sm:$0xff]
      %v385 = vld [vmem:[%s362 + $0x58] sm:$0xff]
      %v386 = vld [vmem:[%s362 + $0x60] sm:$0xff]
      %v387 = vld [vmem:[%s362 + $0x68] sm:$0xff]
      %v388 = vld [vmem:[%s362 + $0x70] sm:$0xff]
      %v389 = vld [vmem:[%s362 + $0x78] sm:$0xff]
      %v390 = vld [vmem:[%s362 + $0x80] sm:$0xff]
      %v391 = vld [vmem:[%s362 + $0x88] sm:$0xff]
      %v392 = vld [vmem:[%s362 + $0x90] sm:$0xff]
      %v393 = vld [vmem:[%s362 + $0x98] sm:$0xff]
      %v394 = vld [vmem:[%s362 + $0xa0] sm:$0xff]
      %v395 = vld [vmem:[%s362 + $0xa8] sm:$0xff]
      %v396 = vld [vmem:[%s362 + $0xb0] sm:$0xff]
      %v397 = vld [vmem:[%s362 + $0xb8] sm:$0xff]
      %v398 = vld [vmem:[%s362 + $0xc0] sm:$0xff]
      %v399 = vld [vmem:[%s362 + $0xc8] sm:$0xff]
      %v400 = vld [vmem:[%s362 + $0xd0] sm:$0xff]
      %v401 = vld [vmem:[%s362 + $0xd8] sm:$0xff]
      %v402 = vld [vmem:[%s362 + $0xe0] sm:$0xff]
      %v403 = vld [vmem:[%s362 + $0xe8] sm:$0xff]
      %v404 = vld [vmem:[%s362 + $0xf0] sm:$0xff]
      %v405 = vld [vmem:[%s362 + $0xf8] sm:$0xff]
      %vm406 = vcmask 31744
      %v407 = vsel %vm406, %v374, -inf
      %v408 = vsel %vm406, %v376, -inf
      %v409 = vmax.f32 %v407, %v408
      %v410 = vsel %vm406, %v375, -inf
      %v411 = vsel %vm406, %v377, -inf
      %v412 = vmax.f32 %v410, %v411
      %v413 = vsel %vm406, %v378, -inf
      %v414 = vsel %vm406, %v380, -inf
      %v415 = vmax.f32 %v413, %v414
      %v416 = vsel %vm406, %v379, -inf
      %v417 = vsel %vm406, %v381, -inf
      %v418 = vmax.f32 %v416, %v417
      %v419 = vsel %vm406, %v382, -inf
      %v420 = vsel %vm406, %v384, -inf
      %v421 = vmax.f32 %v419, %v420
      %v422 = vsel %vm406, %v383, -inf
      %v423 = vsel %vm406, %v385, -inf
      %v424 = vmax.f32 %v422, %v423
      %v425 = vsel %vm406, %v386, -inf
      %v426 = vsel %vm406, %v388, -inf
      %v427 = vmax.f32 %v425, %v426
      %v428 = vsel %vm406, %v387, -inf
      %v429 = vsel %vm406, %v389, -inf
      %v430 = vmax.f32 %v428, %v429
      %v431 = vsel %vm406, %v390, -inf
      %v432 = vsel %vm406, %v392, -inf
      %v433 = vmax.f32 %v431, %v432
      %v434 = vsel %vm406, %v391, -inf
      %v435 = vsel %vm406, %v393, -inf
      %v436 = vmax.f32 %v434, %v435
      %v437 = vsel %vm406, %v394, -inf
      %v438 = vsel %vm406, %v396, -inf
      %v439 = vmax.f32 %v437, %v438
      %v440 = vsel %vm406, %v395, -inf
      %v441 = vsel %vm406, %v397, -inf
      %v442 = vmax.f32 %v440, %v441
      %v443 = vsel %vm406, %v398, -inf
      %v444 = vsel %vm406, %v400, -inf
      %v445 = vmax.f32 %v443, %v444
      %v446 = vsel %vm406, %v399, -inf
      %v447 = vsel %vm406, %v401, -inf
      %v448 = vmax.f32 %v446, %v447
      %v449 = vsel %vm406, %v402, -inf
      %v450 = vsel %vm406, %v404, -inf
      %v451 = vmax.f32 %v449, %v450
      %v452 = vsel %vm406, %v403, -inf
      %v453 = vsel %vm406, %v405, -inf
      %v454 = vmax.f32 %v452, %v453
      %v471 = vrot.slane %v409, 2
      %v472 = vrot.slane %v409, 4
      %v473 = vrot.slane %v409, 6
      %v474 = vrot.slane %v412, 2
      %v475 = vrot.slane %v412, 4
      %v476 = vrot.slane %v412, 6
      %v477 = vrot.slane %v415, 2
      %v478 = vrot.slane %v415, 4
      %v479 = vrot.slane %v415, 6
      %v480 = vrot.slane %v418, 2
      %v481 = vrot.slane %v418, 4
      %v482 = vrot.slane %v418, 6
      %v483 = vrot.slane %v421, 2
      %v484 = vrot.slane %v421, 4
      %v485 = vrot.slane %v421, 6
      %v486 = vrot.slane %v424, 2
      %v487 = vrot.slane %v424, 4
      %v488 = vrot.slane %v424, 6
      %v489 = vrot.slane %v427, 2
      %v490 = vrot.slane %v427, 4
      %v491 = vrot.slane %v427, 6
      %v492 = vrot.slane %v430, 2
      %v493 = vrot.slane %v430, 4
      %v494 = vrot.slane %v430, 6
      %v495 = vrot.slane %v433, 2
      %v496 = vrot.slane %v433, 4
      %v497 = vrot.slane %v433, 6
      %v498 = vrot.slane %v436, 2
      %v499 = vrot.slane %v436, 4
      %v500 = vrot.slane %v436, 6
      %v501 = vrot.slane %v439, 2
      %v502 = vrot.slane %v439, 4
      %v503 = vrot.slane %v439, 6
      %v504 = vrot.slane %v442, 2
      %v505 = vrot.slane %v442, 4
      %v506 = vrot.slane %v442, 6
      %v507 = vrot.slane %v445, 2
      %v508 = vrot.slane %v445, 4
      %v509 = vrot.slane %v445, 6
      %v510 = vrot.slane %v448, 2
      %v511 = vrot.slane %v448, 4
      %v512 = vrot.slane %v448, 6
      %v513 = vrot.slane %v451, 2
      %v514 = vrot.slane %v451, 4
      %v515 = vrot.slane %v451, 6
      %v516 = vrot.slane %v454, 2
      %v517 = vrot.slane %v454, 4
      %v518 = vrot.slane %v454, 6
      %vm567 = vcmask 25600
      %v568 = vsel %vm567, %v409, -inf
      %v569 = vrot.slane %v568, 4
      %v570 = vmax.f32 %v568, %v569
      %v571 = vrot.slane %v570, 2
      %v572 = vmax.f32 %v570, %v571
      %v573 = vrot.slane %v572, 1
      %v574 = vmax.f32 %v572, %v573
      %v575 = vsel %vm567, %v471, -inf
      %v576 = vrot.slane %v575, 4
      %v577 = vmax.f32 %v575, %v576
      %v578 = vrot.slane %v577, 2
      %v579 = vmax.f32 %v577, %v578
      %v580 = vrot.slane %v579, 1
      %v581 = vmax.f32 %v579, %v580
      %v582 = vsel %vm567, %v472, -inf
      %v583 = vrot.slane %v582, 4
      %v584 = vmax.f32 %v582, %v583
      %v585 = vrot.slane %v584, 2
      %v586 = vmax.f32 %v584, %v585
      %v587 = vrot.slane %v586, 1
      %v588 = vmax.f32 %v586, %v587
      %v589 = vsel %vm567, %v473, -inf
      %v590 = vrot.slane %v589, 4
      %v591 = vmax.f32 %v589, %v590
      %v592 = vrot.slane %v591, 2
      %v593 = vmax.f32 %v591, %v592
      %v594 = vrot.slane %v593, 1
      %v595 = vmax.f32 %v593, %v594
      %v596 = vsel %vm567, %v412, -inf
      %v597 = vrot.slane %v596, 4
      %v598 = vmax.f32 %v596, %v597
      %v599 = vrot.slane %v598, 2
      %v600 = vmax.f32 %v598, %v599
      %v601 = vrot.slane %v600, 1
      %v602 = vmax.f32 %v600, %v601
      %v603 = vsel %vm567, %v474, -inf
      %v604 = vrot.slane %v603, 4
      %v605 = vmax.f32 %v603, %v604
      %v606 = vrot.slane %v605, 2
      %v607 = vmax.f32 %v605, %v606
      %v608 = vrot.slane %v607, 1
      %v609 = vmax.f32 %v607, %v608
      %v610 = vsel %vm567, %v475, -inf
      %v611 = vrot.slane %v610, 4
      %v612 = vmax.f32 %v610, %v611
      %v613 = vrot.slane %v612, 2
      %v614 = vmax.f32 %v612, %v613
      %v615 = vrot.slane %v614, 1
      %v616 = vmax.f32 %v614, %v615
      %v617 = vsel %vm567, %v476, -inf
      %v618 = vrot.slane %v617, 4
      %v619 = vmax.f32 %v617, %v618
      %v620 = vrot.slane %v619, 2
      %v621 = vmax.f32 %v619, %v620
      %v622 = vrot.slane %v621, 1
      %v623 = vmax.f32 %v621, %v622
      %v624 = vsel %vm567, %v415, -inf
      %v625 = vrot.slane %v624, 4
      %v626 = vmax.f32 %v624, %v625
      %v627 = vrot.slane %v626, 2
      %v628 = vmax.f32 %v626, %v627
      %v629 = vrot.slane %v628, 1
      %v630 = vmax.f32 %v628, %v629
      %v631 = vsel %vm567, %v477, -inf
      %v632 = vrot.slane %v631, 4
      %v633 = vmax.f32 %v631, %v632
      %v634 = vrot.slane %v633, 2
      %v635 = vmax.f32 %v633, %v634
      %v636 = vrot.slane %v635, 1
      %v637 = vmax.f32 %v635, %v636
      %v638 = vsel %vm567, %v478, -inf
      %v639 = vrot.slane %v638, 4
      %v640 = vmax.f32 %v638, %v639
      %v641 = vrot.slane %v640, 2
      %v642 = vmax.f32 %v640, %v641
      %v643 = vrot.slane %v642, 1
      %v644 = vmax.f32 %v642, %v643
      %v645 = vsel %vm567, %v479, -inf
      %v646 = vrot.slane %v645, 4
      %v647 = vmax.f32 %v645, %v646
      %v648 = vrot.slane %v647, 2
      %v649 = vmax.f32 %v647, %v648
      %v650 = vrot.slane %v649, 1
      %v651 = vmax.f32 %v649, %v650
      %v652 = vsel %vm567, %v418, -inf
      %v653 = vrot.slane %v652, 4
      %v654 = vmax.f32 %v652, %v653
      %v655 = vrot.slane %v654, 2
      %v656 = vmax.f32 %v654, %v655
      %v657 = vrot.slane %v656, 1
      %v658 = vmax.f32 %v656, %v657
      %v659 = vsel %vm567, %v480, -inf
      %v660 = vrot.slane %v659, 4
      %v661 = vmax.f32 %v659, %v660
      %v662 = vrot.slane %v661, 2
      %v663 = vmax.f32 %v661, %v662
      %v664 = vrot.slane %v663, 1
      %v665 = vmax.f32 %v663, %v664
      %v666 = vsel %vm567, %v481, -inf
      %v667 = vrot.slane %v666, 4
      %v668 = vmax.f32 %v666, %v667
      %v669 = vrot.slane %v668, 2
      %v670 = vmax.f32 %v668, %v669
      %v671 = vrot.slane %v670, 1
      %v672 = vmax.f32 %v670, %v671
      %v673 = vsel %vm567, %v482, -inf
      %v674 = vrot.slane %v673, 4
      %v675 = vmax.f32 %v673, %v674
      %v676 = vrot.slane %v675, 2
      %v677 = vmax.f32 %v675, %v676
      %v678 = vrot.slane %v677, 1
      %v679 = vmax.f32 %v677, %v678
      %v680 = vsel %vm567, %v421, -inf
      %v681 = vrot.slane %v680, 4
      %v682 = vmax.f32 %v680, %v681
      %v683 = vrot.slane %v682, 2
      %v684 = vmax.f32 %v682, %v683
      %v685 = vrot.slane %v684, 1
      %v686 = vmax.f32 %v684, %v685
      %v687 = vsel %vm567, %v483, -inf
      %v688 = vrot.slane %v687, 4
      %v689 = vmax.f32 %v687, %v688
      %v690 = vrot.slane %v689, 2
      %v691 = vmax.f32 %v689, %v690
      %v692 = vrot.slane %v691, 1
      %v693 = vmax.f32 %v691, %v692
      %v694 = vsel %vm567, %v484, -inf
      %v695 = vrot.slane %v694, 4
      %v696 = vmax.f32 %v694, %v695
      %v697 = vrot.slane %v696, 2
      %v698 = vmax.f32 %v696, %v697
      %v699 = vrot.slane %v698, 1
      %v700 = vmax.f32 %v698, %v699
      %v701 = vsel %vm567, %v485, -inf
      %v702 = vrot.slane %v701, 4
      %v703 = vmax.f32 %v701, %v702
      %v704 = vrot.slane %v703, 2
      %v705 = vmax.f32 %v703, %v704
      %v706 = vrot.slane %v705, 1
      %v707 = vmax.f32 %v705, %v706
      %v708 = vsel %vm567, %v424, -inf
      %v709 = vrot.slane %v708, 4
      %v710 = vmax.f32 %v708, %v709
      %v711 = vrot.slane %v710, 2
      %v712 = vmax.f32 %v710, %v711
      %v713 = vrot.slane %v712, 1
      %v714 = vmax.f32 %v712, %v713
      %v715 = vsel %vm567, %v486, -inf
      %v716 = vrot.slane %v715, 4
      %v717 = vmax.f32 %v715, %v716
      %v718 = vrot.slane %v717, 2
      %v719 = vmax.f32 %v717, %v718
      %v720 = vrot.slane %v719, 1
      %v721 = vmax.f32 %v719, %v720
      %v722 = vsel %vm567, %v487, -inf
      %v723 = vrot.slane %v722, 4
      %v724 = vmax.f32 %v722, %v723
      %v725 = vrot.slane %v724, 2
      %v726 = vmax.f32 %v724, %v725
      %v727 = vrot.slane %v726, 1
      %v728 = vmax.f32 %v726, %v727
      %v729 = vsel %vm567, %v488, -inf
      %v730 = vrot.slane %v729, 4
      %v731 = vmax.f32 %v729, %v730
      %v732 = vrot.slane %v731, 2
      %v733 = vmax.f32 %v731, %v732
      %v734 = vrot.slane %v733, 1
      %v735 = vmax.f32 %v733, %v734
      %v736 = vsel %vm567, %v427, -inf
      %v737 = vrot.slane %v736, 4
      %v738 = vmax.f32 %v736, %v737
      %v739 = vrot.slane %v738, 2
      %v740 = vmax.f32 %v738, %v739
      %v741 = vrot.slane %v740, 1
      %v742 = vmax.f32 %v740, %v741
      %v743 = vsel %vm567, %v489, -inf
      %v744 = vrot.slane %v743, 4
      %v745 = vmax.f32 %v743, %v744
      %v746 = vrot.slane %v745, 2
      %v747 = vmax.f32 %v745, %v746
      %v748 = vrot.slane %v747, 1
      %v749 = vmax.f32 %v747, %v748
      %v750 = vsel %vm567, %v490, -inf
      %v751 = vrot.slane %v750, 4
      %v752 = vmax.f32 %v750, %v751
      %v753 = vrot.slane %v752, 2
      %v754 = vmax.f32 %v752, %v753
      %v755 = vrot.slane %v754, 1
      %v756 = vmax.f32 %v754, %v755
      %v757 = vsel %vm567, %v491, -inf
      %v758 = vrot.slane %v757, 4
      %v759 = vmax.f32 %v757, %v758
      %v760 = vrot.slane %v759, 2
      %v761 = vmax.f32 %v759, %v760
      %v762 = vrot.slane %v761, 1
      %v763 = vmax.f32 %v761, %v762
      %v764 = vsel %vm567, %v430, -inf
      %v765 = vrot.slane %v764, 4
      %v766 = vmax.f32 %v764, %v765
      %v767 = vrot.slane %v766, 2
      %v768 = vmax.f32 %v766, %v767
      %v769 = vrot.slane %v768, 1
      %v770 = vmax.f32 %v768, %v769
      %v771 = vsel %vm567, %v492, -inf
      %v772 = vrot.slane %v771, 4
      %v773 = vmax.f32 %v771, %v772
      %v774 = vrot.slane %v773, 2
      %v775 = vmax.f32 %v773, %v774
      %v776 = vrot.slane %v775, 1
      %v777 = vmax.f32 %v775, %v776
      %v778 = vsel %vm567, %v493, -inf
      %v779 = vrot.slane %v778, 4
      %v780 = vmax.f32 %v778, %v779
      %v781 = vrot.slane %v780, 2
      %v782 = vmax.f32 %v780, %v781
      %v783 = vrot.slane %v782, 1
      %v784 = vmax.f32 %v782, %v783
      %v785 = vsel %vm567, %v494, -inf
      %v786 = vrot.slane %v785, 4
      %v787 = vmax.f32 %v785, %v786
      %v788 = vrot.slane %v787, 2
      %v789 = vmax.f32 %v787, %v788
      %v790 = vrot.slane %v789, 1
      %v791 = vmax.f32 %v789, %v790
      %v792 = vsel %vm567, %v433, -inf
      %v793 = vrot.slane %v792, 4
      %v794 = vmax.f32 %v792, %v793
      %v795 = vrot.slane %v794, 2
      %v796 = vmax.f32 %v794, %v795
      %v797 = vrot.slane %v796, 1
      %v798 = vmax.f32 %v796, %v797
      %v799 = vsel %vm567, %v495, -inf
      %v800 = vrot.slane %v799, 4
      %v801 = vmax.f32 %v799, %v800
      %v802 = vrot.slane %v801, 2
      %v803 = vmax.f32 %v801, %v802
      %v804 = vrot.slane %v803, 1
      %v805 = vmax.f32 %v803, %v804
      %v806 = vsel %vm567, %v496, -inf
      %v807 = vrot.slane %v806, 4
      %v808 = vmax.f32 %v806, %v807
      %v809 = vrot.slane %v808, 2
      %v810 = vmax.f32 %v808, %v809
      %v811 = vrot.slane %v810, 1
      %v812 = vmax.f32 %v810, %v811
      %v813 = vsel %vm567, %v497, -inf
      %v814 = vrot.slane %v813, 4
      %v815 = vmax.f32 %v813, %v814
      %v816 = vrot.slane %v815, 2
      %v817 = vmax.f32 %v815, %v816
      %v818 = vrot.slane %v817, 1
      %v819 = vmax.f32 %v817, %v818
      %v820 = vsel %vm567, %v436, -inf
      %v821 = vrot.slane %v820, 4
      %v822 = vmax.f32 %v820, %v821
      %v823 = vrot.slane %v822, 2
      %v824 = vmax.f32 %v822, %v823
      %v825 = vrot.slane %v824, 1
      %v826 = vmax.f32 %v824, %v825
      %v827 = vsel %vm567, %v498, -inf
      %v828 = vrot.slane %v827, 4
      %v829 = vmax.f32 %v827, %v828
      %v830 = vrot.slane %v829, 2
      %v831 = vmax.f32 %v829, %v830
      %v832 = vrot.slane %v831, 1
      %v833 = vmax.f32 %v831, %v832
      %v834 = vsel %vm567, %v499, -inf
      %v835 = vrot.slane %v834, 4
      %v836 = vmax.f32 %v834, %v835
      %v837 = vrot.slane %v836, 2
      %v838 = vmax.f32 %v836, %v837
      %v839 = vrot.slane %v838, 1
      %v840 = vmax.f32 %v838, %v839
      %v841 = vsel %vm567, %v500, -inf
      %v842 = vrot.slane %v841, 4
      %v843 = vmax.f32 %v841, %v842
      %v844 = vrot.slane %v843, 2
      %v845 = vmax.f32 %v843, %v844
      %v846 = vrot.slane %v845, 1
      %v847 = vmax.f32 %v845, %v846
      %v848 = vsel %vm567, %v439, -inf
      %v849 = vrot.slane %v848, 4
      %v850 = vmax.f32 %v848, %v849
      %v851 = vrot.slane %v850, 2
      %v852 = vmax.f32 %v850, %v851
      %v853 = vrot.slane %v852, 1
      %v854 = vmax.f32 %v852, %v853
      %v855 = vsel %vm567, %v501, -inf
      %v856 = vrot.slane %v855, 4
      %v857 = vmax.f32 %v855, %v856
      %v858 = vrot.slane %v857, 2
      %v859 = vmax.f32 %v857, %v858
      %v860 = vrot.slane %v859, 1
      %v861 = vmax.f32 %v859, %v860
      %v862 = vsel %vm567, %v502, -inf
      %v863 = vrot.slane %v862, 4
      %v864 = vmax.f32 %v862, %v863
      %v865 = vrot.slane %v864, 2
      %v866 = vmax.f32 %v864, %v865
      %v867 = vrot.slane %v866, 1
      %v868 = vmax.f32 %v866, %v867
      %v869 = vsel %vm567, %v503, -inf
      %v870 = vrot.slane %v869, 4
      %v871 = vmax.f32 %v869, %v870
      %v872 = vrot.slane %v871, 2
      %v873 = vmax.f32 %v871, %v872
      %v874 = vrot.slane %v873, 1
      %v875 = vmax.f32 %v873, %v874
      %v876 = vsel %vm567, %v442, -inf
      %v877 = vrot.slane %v876, 4
      %v878 = vmax.f32 %v876, %v877
      %v879 = vrot.slane %v878, 2
      %v880 = vmax.f32 %v878, %v879
      %v881 = vrot.slane %v880, 1
      %v882 = vmax.f32 %v880, %v881
      %v883 = vsel %vm567, %v504, -inf
      %v884 = vrot.slane %v883, 4
      %v885 = vmax.f32 %v883, %v884
      %v886 = vrot.slane %v885, 2
      %v887 = vmax.f32 %v885, %v886
      %v888 = vrot.slane %v887, 1
      %v889 = vmax.f32 %v887, %v888
      %v890 = vsel %vm567, %v505, -inf
      %v891 = vrot.slane %v890, 4
      %v892 = vmax.f32 %v890, %v891
      %v893 = vrot.slane %v892, 2
      %v894 = vmax.f32 %v892, %v893
      %v895 = vrot.slane %v894, 1
      %v896 = vmax.f32 %v894, %v895
      %v897 = vsel %vm567, %v506, -inf
      %v898 = vrot.slane %v897, 4
      %v899 = vmax.f32 %v897, %v898
      %v900 = vrot.slane %v899, 2
      %v901 = vmax.f32 %v899, %v900
      %v902 = vrot.slane %v901, 1
      %v903 = vmax.f32 %v901, %v902
      %v904 = vsel %vm567, %v445, -inf
      %v905 = vrot.slane %v904, 4
      %v906 = vmax.f32 %v904, %v905
      %v907 = vrot.slane %v906, 2
      %v908 = vmax.f32 %v906, %v907
      %v909 = vrot.slane %v908, 1
      %v910 = vmax.f32 %v908, %v909
      %v911 = vsel %vm567, %v507, -inf
      %v912 = vrot.slane %v911, 4
      %v913 = vmax.f32 %v911, %v912
      %v914 = vrot.slane %v913, 2
      %v915 = vmax.f32 %v913, %v914
      %v916 = vrot.slane %v915, 1
      %v917 = vmax.f32 %v915, %v916
      %v918 = vsel %vm567, %v508, -inf
      %v919 = vrot.slane %v918, 4
      %v920 = vmax.f32 %v918, %v919
      %v921 = vrot.slane %v920, 2
      %v922 = vmax.f32 %v920, %v921
      %v923 = vrot.slane %v922, 1
      %v924 = vmax.f32 %v922, %v923
      %v925 = vsel %vm567, %v509, -inf
      %v926 = vrot.slane %v925, 4
      %v927 = vmax.f32 %v925, %v926
      %v928 = vrot.slane %v927, 2
      %v929 = vmax.f32 %v927, %v928
      %v930 = vrot.slane %v929, 1
      %v931 = vmax.f32 %v929, %v930
      %v932 = vsel %vm567, %v448, -inf
      %v933 = vrot.slane %v932, 4
      %v934 = vmax.f32 %v932, %v933
      %v935 = vrot.slane %v934, 2
      %v936 = vmax.f32 %v934, %v935
      %v937 = vrot.slane %v936, 1
      %v938 = vmax.f32 %v936, %v937
      %v939 = vsel %vm567, %v510, -inf
      %v940 = vrot.slane %v939, 4
      %v941 = vmax.f32 %v939, %v940
      %v942 = vrot.slane %v941, 2
      %v943 = vmax.f32 %v941, %v942
      %v944 = vrot.slane %v943, 1
      %v945 = vmax.f32 %v943, %v944
      %v946 = vsel %vm567, %v511, -inf
      %v947 = vrot.slane %v946, 4
      %v948 = vmax.f32 %v946, %v947
      %v949 = vrot.slane %v948, 2
      %v950 = vmax.f32 %v948, %v949
      %v951 = vrot.slane %v950, 1
      %v952 = vmax.f32 %v950, %v951
      %v953 = vsel %vm567, %v512, -inf
      %v954 = vrot.slane %v953, 4
      %v955 = vmax.f32 %v953, %v954
      %v956 = vrot.slane %v955, 2
      %v957 = vmax.f32 %v955, %v956
      %v958 = vrot.slane %v957, 1
      %v959 = vmax.f32 %v957, %v958
      %v960 = vsel %vm567, %v451, -inf
      %v961 = vrot.slane %v960, 4
      %v962 = vmax.f32 %v960, %v961
      %v963 = vrot.slane %v962, 2
      %v964 = vmax.f32 %v962, %v963
      %v965 = vrot.slane %v964, 1
      %v966 = vmax.f32 %v964, %v965
      %v967 = vsel %vm567, %v513, -inf
      %v968 = vrot.slane %v967, 4
      %v969 = vmax.f32 %v967, %v968
      %v970 = vrot.slane %v969, 2
      %v971 = vmax.f32 %v969, %v970
      %v972 = vrot.slane %v971, 1
      %v973 = vmax.f32 %v971, %v972
      %v974 = vsel %vm567, %v514, -inf
      %v975 = vrot.slane %v974, 4
      %v976 = vmax.f32 %v974, %v975
      %v977 = vrot.slane %v976, 2
      %v978 = vmax.f32 %v976, %v977
      %v979 = vrot.slane %v978, 1
      %v980 = vmax.f32 %v978, %v979
      %v981 = vsel %vm567, %v515, -inf
      %v982 = vrot.slane %v981, 4
      %v983 = vmax.f32 %v981, %v982
      %v984 = vrot.slane %v983, 2
      %v985 = vmax.f32 %v983, %v984
      %v986 = vrot.slane %v985, 1
      %v987 = vmax.f32 %v985, %v986
      %v988 = vsel %vm567, %v454, -inf
      %v989 = vrot.slane %v988, 4
      %v990 = vmax.f32 %v988, %v989
      %v991 = vrot.slane %v990, 2
      %v992 = vmax.f32 %v990, %v991
      %v993 = vrot.slane %v992, 1
      %v994 = vmax.f32 %v992, %v993
      %v995 = vsel %vm567, %v516, -inf
      %v996 = vrot.slane %v995, 4
      %v997 = vmax.f32 %v995, %v996
      %v998 = vrot.slane %v997, 2
      %v999 = vmax.f32 %v997, %v998
      %v1000 = vrot.slane %v999, 1
      %v1001 = vmax.f32 %v999, %v1000
      %v1002 = vsel %vm567, %v517, -inf
      %v1003 = vrot.slane %v1002, 4
      %v1004 = vmax.f32 %v1002, %v1003
      %v1005 = vrot.slane %v1004, 2
      %v1006 = vmax.f32 %v1004, %v1005
      %v1007 = vrot.slane %v1006, 1
      %v1008 = vmax.f32 %v1006, %v1007
      %v1009 = vsel %vm567, %v518, -inf
      %v1010 = vrot.slane %v1009, 4
      %v1011 = vmax.f32 %v1009, %v1010
      %v1012 = vrot.slane %v1011, 2
      %v1013 = vmax.f32 %v1011, %v1012
      %v1014 = vrot.slane %v1013, 1
      %v1015 = vmax.f32 %v1013, %v1014
      %vm1080 = vcmask 1042434
      %v1081 = vsel %vm1080, %v581, %v574
      %vm1082 = vcmask 1043459
      %v1083 = vsel %vm1082, %v588, %v1081
      %vm1084 = vcmask 1044484
      %v1085 = vsel %vm1084, %v595, %v1083
      %vm1086 = vcmask 1045509
      %v1087 = vsel %vm1086, %v602, %v1085
      %vm1088 = vcmask 1046534
      %v1089 = vsel %vm1088, %v609, %v1087
      %vm1090 = vcmask 1047559
      %v1091 = vsel %vm1090, %v616, %v1089
      %v1092 = vsel %vm1080, %v637, %v630
      %v1093 = vsel %vm1082, %v644, %v1092
      %v1094 = vsel %vm1084, %v651, %v1093
      %v1095 = vsel %vm1086, %v658, %v1094
      %v1096 = vsel %vm1088, %v665, %v1095
      %v1097 = vsel %vm1090, %v672, %v1096
      %v1098 = vsel %vm1080, %v693, %v686
      %v1099 = vsel %vm1082, %v700, %v1098
      %v1100 = vsel %vm1084, %v707, %v1099
      %v1101 = vsel %vm1086, %v714, %v1100
      %v1102 = vsel %vm1088, %v721, %v1101
      %v1103 = vsel %vm1090, %v728, %v1102
      %v1104 = vsel %vm1080, %v749, %v742
      %v1105 = vsel %vm1082, %v756, %v1104
      %v1106 = vsel %vm1084, %v763, %v1105
      %v1107 = vsel %vm1086, %v770, %v1106
      %v1108 = vsel %vm1088, %v777, %v1107
      %v1109 = vsel %vm1090, %v784, %v1108
      %v1110 = vsel %vm1080, %v805, %v798
      %v1111 = vsel %vm1082, %v812, %v1110
      %v1112 = vsel %vm1084, %v819, %v1111
      %v1113 = vsel %vm1086, %v826, %v1112
      %v1114 = vsel %vm1088, %v833, %v1113
      %v1115 = vsel %vm1090, %v840, %v1114
      %v1116 = vsel %vm1080, %v861, %v854
      %v1117 = vsel %vm1082, %v868, %v1116
      %v1118 = vsel %vm1084, %v875, %v1117
      %v1119 = vsel %vm1086, %v882, %v1118
      %v1120 = vsel %vm1088, %v889, %v1119
      %v1121 = vsel %vm1090, %v896, %v1120
      %v1122 = vsel %vm1080, %v917, %v910
      %v1123 = vsel %vm1082, %v924, %v1122
      %v1124 = vsel %vm1084, %v931, %v1123
      %v1125 = vsel %vm1086, %v938, %v1124
      %v1126 = vsel %vm1088, %v945, %v1125
      %v1127 = vsel %vm1090, %v952, %v1126
      %v1128 = vsel %vm1080, %v973, %v966
      %v1129 = vsel %vm1082, %v980, %v1128
      %v1130 = vsel %vm1084, %v987, %v1129
      %v1131 = vsel %vm1086, %v994, %v1130
      %v1132 = vsel %vm1088, %v1001, %v1131
      %v1133 = vsel %vm1090, %v1008, %v1132
      %vm1150 = vcmask 1040384
      %v1151 = vsel %vm1150, 0.0, %v1091
      %v1152 = vsel %vm1150, 0.0, %v1097
      %v1153 = vsel %vm1150, 0.0, %v1103
      %v1154 = vsel %vm1150, 0.0, %v1109
      %v1155 = vsel %vm1150, 0.0, %v1115
      %v1156 = vsel %vm1150, 0.0, %v1121
      %v1157 = vsel %vm1150, 0.0, %v1127
      %v1158 = vsel %vm1150, 0.0, %v1133
      %v1159 = vsel %vm1150, %v623, 0.0
      %v1160 = vsel %vm1150, %v679, 0.0
      %v1161 = vsel %vm1150, %v735, 0.0
      %v1162 = vsel %vm1150, %v791, 0.0
      %v1163 = vsel %vm1150, %v847, 0.0
      %v1164 = vsel %vm1150, %v903, 0.0
      %v1165 = vsel %vm1150, %v959, 0.0
      %v1166 = vsel %vm1150, %v1015, 0.0
      %vm1183 = vcmask 1046528
      %v1184 = vrot.slane 0.0, 1
      %v1185 = vsel %vm1183, %v1184, %v1184
      %v1186 = vrot.slane %v1151, 1
      %v1187 = vsel %vm1183, %v1184, %v1186
      %v1188 = vrot.slane %v1159, 1
      %v1189 = vsel %vm1183, %v1186, %v1188
      %v1190 = vrot.slane %v1152, 1
      %v1191 = vsel %vm1183, %v1188, %v1190
      %v1192 = vrot.slane %v1160, 1
      %v1193 = vsel %vm1183, %v1190, %v1192
      %v1194 = vrot.slane %v1153, 1
      %v1195 = vsel %vm1183, %v1192, %v1194
      %v1196 = vrot.slane %v1161, 1
      %v1197 = vsel %vm1183, %v1194, %v1196
      %v1198 = vrot.slane %v1154, 1
      %v1199 = vsel %vm1183, %v1196, %v1198
      %v1200 = vrot.slane %v1162, 1
      %v1201 = vsel %vm1183, %v1198, %v1200
      %v1202 = vrot.slane %v1155, 1
      %v1203 = vsel %vm1183, %v1200, %v1202
      %v1204 = vrot.slane %v1163, 1
      %v1205 = vsel %vm1183, %v1202, %v1204
      %v1206 = vrot.slane %v1156, 1
      %v1207 = vsel %vm1183, %v1204, %v1206
      %v1208 = vrot.slane %v1164, 1
      %v1209 = vsel %vm1183, %v1206, %v1208
      %v1210 = vrot.slane %v1157, 1
      %v1211 = vsel %vm1183, %v1208, %v1210
      %v1212 = vrot.slane %v1165, 1
      %v1213 = vsel %vm1183, %v1210, %v1212
      %v1214 = vrot.slane %v1158, 1
      %v1215 = vsel %vm1183, %v1212, %v1214
      %1216 = vrot.lane.b32.xlu0 %v1185, 4
      %v1217 = vpop.permute.xlu0 %1216
      %1218 = vrot.lane.b32.xlu0 %v1187, 4
      %v1219 = vpop.permute.xlu0 %1218
      %1220 = vrot.lane.b32.xlu0 %v1189, 4
      %v1221 = vpop.permute.xlu0 %1220
      %1222 = vrot.lane.b32.xlu0 %v1191, 4
      %v1223 = vpop.permute.xlu0 %1222
      %1224 = vrot.lane.b32.xlu0 %v1193, 4
      %v1225 = vpop.permute.xlu0 %1224
      %1226 = vrot.lane.b32.xlu0 %v1195, 4
      %v1227 = vpop.permute.xlu0 %1226
      %1228 = vrot.lane.b32.xlu0 %v1197, 4
      %v1229 = vpop.permute.xlu0 %1228
      %1230 = vrot.lane.b32.xlu0 %v1199, 4
      %v1231 = vpop.permute.xlu0 %1230
      %1232 = vrot.lane.b32.xlu0 %v1201, 4
      %v1233 = vpop.permute.xlu0 %1232
      %1234 = vrot.lane.b32.xlu0 %v1203, 4
      %v1235 = vpop.permute.xlu0 %1234
      %1236 = vrot.lane.b32.xlu0 %v1205, 4
      %v1237 = vpop.permute.xlu0 %1236
      %1238 = vrot.lane.b32.xlu0 %v1207, 4
      %v1239 = vpop.permute.xlu0 %1238
      %1240 = vrot.lane.b32.xlu0 %v1209, 4
      %v1241 = vpop.permute.xlu0 %1240
      %1242 = vrot.lane.b32.xlu0 %v1211, 4
      %v1243 = vpop.permute.xlu0 %1242
      %1244 = vrot.lane.b32.xlu0 %v1213, 4
      %v1245 = vpop.permute.xlu0 %1244
      %1246 = vrot.lane.b32.xlu0 %v1215, 4
      %v1247 = vpop.permute.xlu0 %1246
      %vm1264 = vcmask 1045504
      %v1265 = vrot.slane 0.0, 2
      %v1266 = vsel %vm1264, %v1265, %v1265
      %v1267 = vrot.slane %v1151, 2
      %v1268 = vsel %vm1264, %v1265, %v1267
      %v1269 = vrot.slane %v1159, 2
      %v1270 = vsel %vm1264, %v1267, %v1269
      %v1271 = vrot.slane %v1152, 2
      %v1272 = vsel %vm1264, %v1269, %v1271
      %v1273 = vrot.slane %v1160, 2
      %v1274 = vsel %vm1264, %v1271, %v1273
      %v1275 = vrot.slane %v1153, 2
      %v1276 = vsel %vm1264, %v1273, %v1275
      %v1277 = vrot.slane %v1161, 2
      %v1278 = vsel %vm1264, %v1275, %v1277
      %v1279 = vrot.slane %v1154, 2
      %v1280 = vsel %vm1264, %v1277, %v1279
      %v1281 = vrot.slane %v1162, 2
      %v1282 = vsel %vm1264, %v1279, %v1281
      %v1283 = vrot.slane %v1155, 2
      %v1284 = vsel %vm1264, %v1281, %v1283
      %v1285 = vrot.slane %v1163, 2
      %v1286 = vsel %vm1264, %v1283, %v1285
      %v1287 = vrot.slane %v1156, 2
      %v1288 = vsel %vm1264, %v1285, %v1287
      %v1289 = vrot.slane %v1164, 2
      %v1290 = vsel %vm1264, %v1287, %v1289
      %v1291 = vrot.slane %v1157, 2
      %v1292 = vsel %vm1264, %v1289, %v1291
      %v1293 = vrot.slane %v1165, 2
      %v1294 = vsel %vm1264, %v1291, %v1293
      %v1295 = vrot.slane %v1158, 2
      %v1296 = vsel %vm1264, %v1293, %v1295
      %1297 = vrot.lane.b32.xlu0 %v1266, 8
      %v1298 = vpop.permute.xlu0 %1297
      %1299 = vrot.lane.b32.xlu0 %v1268, 8
      %v1300 = vpop.permute.xlu0 %1299
      %1301 = vrot.lane.b32.xlu0 %v1270, 8
      %v1302 = vpop.permute.xlu0 %1301
      %1303 = vrot.lane.b32.xlu0 %v1272, 8
      %v1304 = vpop.permute.xlu0 %1303
      %1305 = vrot.lane.b32.xlu0 %v1274, 8
      %v1306 = vpop.permute.xlu0 %1305
      %1307 = vrot.lane.b32.xlu0 %v1276, 8
      %v1308 = vpop.permute.xlu0 %1307
      %1309 = vrot.lane.b32.xlu0 %v1278, 8
      %v1310 = vpop.permute.xlu0 %1309
      %1311 = vrot.lane.b32.xlu0 %v1280, 8
      %v1312 = vpop.permute.xlu0 %1311
      %1313 = vrot.lane.b32.xlu0 %v1282, 8
      %v1314 = vpop.permute.xlu0 %1313
      %1315 = vrot.lane.b32.xlu0 %v1284, 8
      %v1316 = vpop.permute.xlu0 %1315
      %1317 = vrot.lane.b32.xlu0 %v1286, 8
      %v1318 = vpop.permute.xlu0 %1317
      %1319 = vrot.lane.b32.xlu0 %v1288, 8
      %v1320 = vpop.permute.xlu0 %1319
      %1321 = vrot.lane.b32.xlu0 %v1290, 8
      %v1322 = vpop.permute.xlu0 %1321
      %1323 = vrot.lane.b32.xlu0 %v1292, 8
      %v1324 = vpop.permute.xlu0 %1323
      %1325 = vrot.lane.b32.xlu0 %v1294, 8
      %v1326 = vpop.permute.xlu0 %1325
      %1327 = vrot.lane.b32.xlu0 %v1296, 8
      %v1328 = vpop.permute.xlu0 %1327
      %1346 = vrot.lane.b32.xlu0 %v1151, 12
      %v1347 = vpop.permute.xlu0 %1346
      %1348 = vrot.lane.b32.xlu0 %v1159, 12
      %v1349 = vpop.permute.xlu0 %1348
      %1350 = vrot.lane.b32.xlu0 %v1152, 12
      %v1351 = vpop.permute.xlu0 %1350
      %1352 = vrot.lane.b32.xlu0 %v1160, 12
      %v1353 = vpop.permute.xlu0 %1352
      %1354 = vrot.lane.b32.xlu0 %v1153, 12
      %v1355 = vpop.permute.xlu0 %1354
      %1356 = vrot.lane.b32.xlu0 %v1161, 12
      %v1357 = vpop.permute.xlu0 %1356
      %1358 = vrot.lane.b32.xlu0 %v1154, 12
      %v1359 = vpop.permute.xlu0 %1358
      %1360 = vrot.lane.b32.xlu0 %v1162, 12
      %v1361 = vpop.permute.xlu0 %1360
      %1362 = vrot.lane.b32.xlu0 %v1155, 12
      %v1363 = vpop.permute.xlu0 %1362
      %1364 = vrot.lane.b32.xlu0 %v1163, 12
      %v1365 = vpop.permute.xlu0 %1364
      %1366 = vrot.lane.b32.xlu0 %v1156, 12
      %v1367 = vpop.permute.xlu0 %1366
      %1368 = vrot.lane.b32.xlu0 %v1164, 12
      %v1369 = vpop.permute.xlu0 %1368
      %1370 = vrot.lane.b32.xlu0 %v1157, 12
      %v1371 = vpop.permute.xlu0 %1370
      %1372 = vrot.lane.b32.xlu0 %v1165, 12
      %v1373 = vpop.permute.xlu0 %1372
      %1374 = vrot.lane.b32.xlu0 %v1158, 12
      %v1375 = vpop.permute.xlu0 %1374
      %1376 = vrot.lane.b32.xlu0 %v1166, 12
      %v1377 = vpop.permute.xlu0 %1376
      %v1394 = vrot.slane %v1166, 1
      %v1395 = vsel %vm1183, %v1214, %v1394
      %v1396 = vsel %vm1183, %v1394, %v1184
      %1397 = vrot.lane.b32.xlu0 %v1189, 16
      %v1398 = vpop.permute.xlu0 %1397
      %1399 = vrot.lane.b32.xlu0 %v1191, 16
      %v1400 = vpop.permute.xlu0 %1399
      %1401 = vrot.lane.b32.xlu0 %v1193, 16
      %v1402 = vpop.permute.xlu0 %1401
      %1403 = vrot.lane.b32.xlu0 %v1195, 16
      %v1404 = vpop.permute.xlu0 %1403
      %1405 = vrot.lane.b32.xlu0 %v1197, 16
      %v1406 = vpop.permute.xlu0 %1405
      %1407 = vrot.lane.b32.xlu0 %v1199, 16
      %v1408 = vpop.permute.xlu0 %1407
      %1409 = vrot.lane.b32.xlu0 %v1201, 16
      %v1410 = vpop.permute.xlu0 %1409
      %1411 = vrot.lane.b32.xlu0 %v1203, 16
      %v1412 = vpop.permute.xlu0 %1411
      %1413 = vrot.lane.b32.xlu0 %v1205, 16
      %v1414 = vpop.permute.xlu0 %1413
      %1415 = vrot.lane.b32.xlu0 %v1207, 16
      %v1416 = vpop.permute.xlu0 %1415
      %1417 = vrot.lane.b32.xlu0 %v1209, 16
      %v1418 = vpop.permute.xlu0 %1417
      %1419 = vrot.lane.b32.xlu0 %v1211, 16
      %v1420 = vpop.permute.xlu0 %1419
      %1421 = vrot.lane.b32.xlu0 %v1213, 16
      %v1422 = vpop.permute.xlu0 %1421
      %1423 = vrot.lane.b32.xlu0 %v1215, 16
      %v1424 = vpop.permute.xlu0 %1423
      %1425 = vrot.lane.b32.xlu0 %v1395, 16
      %v1426 = vpop.permute.xlu0 %1425
      %1427 = vrot.lane.b32.xlu0 %v1396, 16
      %v1428 = vpop.permute.xlu0 %1427
      %v1445 = vrot.slane %v1166, 2
      %v1446 = vsel %vm1264, %v1295, %v1445
      %v1447 = vsel %vm1264, %v1445, %v1265
      %1448 = vrot.lane.b32.xlu0 %v1270, 20
      %v1449 = vpop.permute.xlu0 %1448
      %1450 = vrot.lane.b32.xlu0 %v1272, 20
      %v1451 = vpop.permute.xlu0 %1450
      %1452 = vrot.lane.b32.xlu0 %v1274, 20
      %v1453 = vpop.permute.xlu0 %1452
      %1454 = vrot.lane.b32.xlu0 %v1276, 20
      %v1455 = vpop.permute.xlu0 %1454
      %1456 = vrot.lane.b32.xlu0 %v1278, 20
      %v1457 = vpop.permute.xlu0 %1456
      %1458 = vrot.lane.b32.xlu0 %v1280, 20
      %v1459 = vpop.permute.xlu0 %1458
      %1460 = vrot.lane.b32.xlu0 %v1282, 20
      %v1461 = vpop.permute.xlu0 %1460
      %1462 = vrot.lane.b32.xlu0 %v1284, 20
      %v1463 = vpop.permute.xlu0 %1462
      %1464 = vrot.lane.b32.xlu0 %v1286, 20
      %v1465 = vpop.permute.xlu0 %1464
      %1466 = vrot.lane.b32.xlu0 %v1288, 20
      %v1467 = vpop.permute.xlu0 %1466
      %1468 = vrot.lane.b32.xlu0 %v1290, 20
      %v1469 = vpop.permute.xlu0 %1468
      %1470 = vrot.lane.b32.xlu0 %v1292, 20
      %v1471 = vpop.permute.xlu0 %1470
      %1472 = vrot.lane.b32.xlu0 %v1294, 20
      %v1473 = vpop.permute.xlu0 %1472
      %1474 = vrot.lane.b32.xlu0 %v1296, 20
      %v1475 = vpop.permute.xlu0 %1474
      %1476 = vrot.lane.b32.xlu0 %v1446, 20
      %v1477 = vpop.permute.xlu0 %1476
      %1478 = vrot.lane.b32.xlu0 %v1447, 20
      %v1479 = vpop.permute.xlu0 %1478
      %1496 = vrot.lane.b32.xlu0 %v1152, 24
      %v1497 = vpop.permute.xlu0 %1496
      %1498 = vrot.lane.b32.xlu0 %v1160, 24
      %v1499 = vpop.permute.xlu0 %1498
      %1500 = vrot.lane.b32.xlu0 %v1153, 24
      %v1501 = vpop.permute.xlu0 %1500
      %1502 = vrot.lane.b32.xlu0 %v1161, 24
      %v1503 = vpop.permute.xlu0 %1502
      %1504 = vrot.lane.b32.xlu0 %v1154, 24
      %v1505 = vpop.permute.xlu0 %1504
      %1506 = vrot.lane.b32.xlu0 %v1162, 24
      %v1507 = vpop.permute.xlu0 %1506
      %1508 = vrot.lane.b32.xlu0 %v1155, 24
      %v1509 = vpop.permute.xlu0 %1508
      %1510 = vrot.lane.b32.xlu0 %v1163, 24
      %v1511 = vpop.permute.xlu0 %1510
      %1512 = vrot.lane.b32.xlu0 %v1156, 24
      %v1513 = vpop.permute.xlu0 %1512
      %1514 = vrot.lane.b32.xlu0 %v1164, 24
      %v1515 = vpop.permute.xlu0 %1514
      %1516 = vrot.lane.b32.xlu0 %v1157, 24
      %v1517 = vpop.permute.xlu0 %1516
      %1518 = vrot.lane.b32.xlu0 %v1165, 24
      %v1519 = vpop.permute.xlu0 %1518
      %1520 = vrot.lane.b32.xlu0 %v1158, 24
      %v1521 = vpop.permute.xlu0 %1520
      %1522 = vrot.lane.b32.xlu0 %v1166, 24
      %v1523 = vpop.permute.xlu0 %1522
      %1524 = vrot.lane.b32.xlu0 0.0, 24
      %v1525 = vpop.permute.xlu0 %1524
      %1541 = vrot.lane.b32.xlu0 %v1193, 28
      %v1542 = vpop.permute.xlu0 %1541
      %1543 = vrot.lane.b32.xlu0 %v1195, 28
      %v1544 = vpop.permute.xlu0 %1543
      %1545 = vrot.lane.b32.xlu0 %v1197, 28
      %v1546 = vpop.permute.xlu0 %1545
      %1547 = vrot.lane.b32.xlu0 %v1199, 28
      %v1548 = vpop.permute.xlu0 %1547
      %1549 = vrot.lane.b32.xlu0 %v1201, 28
      %v1550 = vpop.permute.xlu0 %1549
      %1551 = vrot.lane.b32.xlu0 %v1203, 28
      %v1552 = vpop.permute.xlu0 %1551
      %1553 = vrot.lane.b32.xlu0 %v1205, 28
      %v1554 = vpop.permute.xlu0 %1553
      %1555 = vrot.lane.b32.xlu0 %v1207, 28
      %v1556 = vpop.permute.xlu0 %1555
      %1557 = vrot.lane.b32.xlu0 %v1209, 28
      %v1558 = vpop.permute.xlu0 %1557
      %1559 = vrot.lane.b32.xlu0 %v1211, 28
      %v1560 = vpop.permute.xlu0 %1559
      %1561 = vrot.lane.b32.xlu0 %v1213, 28
      %v1562 = vpop.permute.xlu0 %1561
      %1563 = vrot.lane.b32.xlu0 %v1215, 28
      %v1564 = vpop.permute.xlu0 %1563
      %1565 = vrot.lane.b32.xlu0 %v1395, 28
      %v1566 = vpop.permute.xlu0 %1565
      %1567 = vrot.lane.b32.xlu0 %v1396, 28
      %v1568 = vpop.permute.xlu0 %1567
      %1569 = vrot.lane.b32.xlu0 %v1185, 28
      %v1570 = vpop.permute.xlu0 %1569
      %1586 = vrot.lane.b32.xlu0 %v1274, 32
      %v1587 = vpop.permute.xlu0 %1586
      %1588 = vrot.lane.b32.xlu0 %v1276, 32
      %v1589 = vpop.permute.xlu0 %1588
      %1590 = vrot.lane.b32.xlu0 %v1278, 32
      %v1591 = vpop.permute.xlu0 %1590
      %1592 = vrot.lane.b32.xlu0 %v1280, 32
      %v1593 = vpop.permute.xlu0 %1592
      %1594 = vrot.lane.b32.xlu0 %v1282, 32
      %v1595 = vpop.permute.xlu0 %1594
      %1596 = vrot.lane.b32.xlu0 %v1284, 32
      %v1597 = vpop.permute.xlu0 %1596
      %1598 = vrot.lane.b32.xlu0 %v1286, 32
      %v1599 = vpop.permute.xlu0 %1598
      %1600 = vrot.lane.b32.xlu0 %v1288, 32
      %v1601 = vpop.permute.xlu0 %1600
      %1602 = vrot.lane.b32.xlu0 %v1290, 32
      %v1603 = vpop.permute.xlu0 %1602
      %1604 = vrot.lane.b32.xlu0 %v1292, 32
      %v1605 = vpop.permute.xlu0 %1604
      %1606 = vrot.lane.b32.xlu0 %v1294, 32
      %v1607 = vpop.permute.xlu0 %1606
      %1608 = vrot.lane.b32.xlu0 %v1296, 32
      %v1609 = vpop.permute.xlu0 %1608
      %1610 = vrot.lane.b32.xlu0 %v1446, 32
      %v1611 = vpop.permute.xlu0 %1610
      %1612 = vrot.lane.b32.xlu0 %v1447, 32
      %v1613 = vpop.permute.xlu0 %1612
      %1614 = vrot.lane.b32.xlu0 %v1266, 32
      %v1615 = vpop.permute.xlu0 %1614
      %v1631 = vsel %vm406, 0.0, %v1217
      %v1632 = vsel %vm406, 0.0, %v1219
      %v1633 = vsel %vm406, %v1151, %v1221
      %v1634 = vsel %vm406, %v1159, %v1223
      %v1635 = vsel %vm406, %v1152, %v1225
      %v1636 = vsel %vm406, %v1160, %v1227
      %v1637 = vsel %vm406, %v1153, %v1229
      %v1638 = vsel %vm406, %v1161, %v1231
      %v1639 = vsel %vm406, %v1154, %v1233
      %v1640 = vsel %vm406, %v1162, %v1235
      %v1641 = vsel %vm406, %v1155, %v1237
      %v1642 = vsel %vm406, %v1163, %v1239
      %v1643 = vsel %vm406, %v1156, %v1241
      %v1644 = vsel %vm406, %v1164, %v1243
      %v1645 = vsel %vm406, %v1157, %v1245
      %v1646 = vsel %vm406, %v1165, %v1247
      %vm1647 = vcmask 64512
      %v1648 = vsel %vm1647, %v1631, %v1298
      %v1649 = vsel %vm1647, %v1632, %v1300
      %v1650 = vsel %vm1647, %v1633, %v1302
      %v1651 = vsel %vm1647, %v1634, %v1304
      %v1652 = vsel %vm1647, %v1635, %v1306
      %v1653 = vsel %vm1647, %v1636, %v1308
      %v1654 = vsel %vm1647, %v1637, %v1310
      %v1655 = vsel %vm1647, %v1638, %v1312
      %v1656 = vsel %vm1647, %v1639, %v1314
      %v1657 = vsel %vm1647, %v1640, %v1316
      %v1658 = vsel %vm1647, %v1641, %v1318
      %v1659 = vsel %vm1647, %v1642, %v1320
      %v1660 = vsel %vm1647, %v1643, %v1322
      %v1661 = vsel %vm1647, %v1644, %v1324
      %v1662 = vsel %vm1647, %v1645, %v1326
      %v1663 = vsel %vm1647, %v1646, %v1328
      %vm1664 = vcmask 97280
      %v1665 = vsel %vm1664, %v1648, %v1347
      %v1666 = vsel %vm1664, %v1649, %v1349
      %v1667 = vsel %vm1664, %v1650, %v1351
      %v1668 = vsel %vm1664, %v1651, %v1353
      %v1669 = vsel %vm1664, %v1652, %v1355
      %v1670 = vsel %vm1664, %v1653, %v1357
      %v1671 = vsel %vm1664, %v1654, %v1359
      %v1672 = vsel %vm1664, %v1655, %v1361
      %v1673 = vsel %vm1664, %v1656, %v1363
      %v1674 = vsel %vm1664, %v1657, %v1365
      %v1675 = vsel %vm1664, %v1658, %v1367
      %v1676 = vsel %vm1664, %v1659, %v1369
      %v1677 = vsel %vm1664, %v1660, %v1371
      %v1678 = vsel %vm1664, %v1661, %v1373
      %v1679 = vsel %vm1664, %v1662, %v1375
      %v1680 = vsel %vm1664, %v1663, %v1377
      %vm1681 = vcmask 130048
      %v1682 = vsel %vm1681, %v1665, %v1398
      %v1683 = vsel %vm1681, %v1666, %v1400
      %v1684 = vsel %vm1681, %v1667, %v1402
      %v1685 = vsel %vm1681, %v1668, %v1404
      %v1686 = vsel %vm1681, %v1669, %v1406
      %v1687 = vsel %vm1681, %v1670, %v1408
      %v1688 = vsel %vm1681, %v1671, %v1410
      %v1689 = vsel %vm1681, %v1672, %v1412
      %v1690 = vsel %vm1681, %v1673, %v1414
      %v1691 = vsel %vm1681, %v1674, %v1416
      %v1692 = vsel %vm1681, %v1675, %v1418
      %v1693 = vsel %vm1681, %v1676, %v1420
      %v1694 = vsel %vm1681, %v1677, %v1422
      %v1695 = vsel %vm1681, %v1678, %v1424
      %v1696 = vsel %vm1681, %v1679, %v1426
      %v1697 = vsel %vm1681, %v1680, %v1428
      %vm1698 = vcmask 162816
      %v1699 = vsel %vm1698, %v1682, %v1449
      %v1700 = vsel %vm1698, %v1683, %v1451
      %v1701 = vsel %vm1698, %v1684, %v1453
      %v1702 = vsel %vm1698, %v1685, %v1455
      %v1703 = vsel %vm1698, %v1686, %v1457
      %v1704 = vsel %vm1698, %v1687, %v1459
      %v1705 = vsel %vm1698, %v1688, %v1461
      %v1706 = vsel %vm1698, %v1689, %v1463
      %v1707 = vsel %vm1698, %v1690, %v1465
      %v1708 = vsel %vm1698, %v1691, %v1467
      %v1709 = vsel %vm1698, %v1692, %v1469
      %v1710 = vsel %vm1698, %v1693, %v1471
      %v1711 = vsel %vm1698, %v1694, %v1473
      %v1712 = vsel %vm1698, %v1695, %v1475
      %v1713 = vsel %vm1698, %v1696, %v1477
      %v1714 = vsel %vm1698, %v1697, %v1479
      %vm1715 = vcmask 195584
      %v1716 = vsel %vm1715, %v1699, %v1497
      %v1717 = vsel %vm1715, %v1700, %v1499
      %v1718 = vsel %vm1715, %v1701, %v1501
      %v1719 = vsel %vm1715, %v1702, %v1503
      %v1720 = vsel %vm1715, %v1703, %v1505
      %v1721 = vsel %vm1715, %v1704, %v1507
      %v1722 = vsel %vm1715, %v1705, %v1509
      %v1723 = vsel %vm1715, %v1706, %v1511
      %v1724 = vsel %vm1715, %v1707, %v1513
      %v1725 = vsel %vm1715, %v1708, %v1515
      %v1726 = vsel %vm1715, %v1709, %v1517
      %v1727 = vsel %vm1715, %v1710, %v1519
      %v1728 = vsel %vm1715, %v1711, %v1521
      %v1729 = vsel %vm1715, %v1712, %v1523
      %v1730 = vsel %vm1715, %v1713, %v1525
      %v1731 = vsel %vm1715, %v1714, %v1525
      %vm1732 = vcmask 228352
      %v1733 = vsel %vm1732, %v1716, %v1542
      %v1734 = vsel %vm1732, %v1717, %v1544
      %v1735 = vsel %vm1732, %v1718, %v1546
      %v1736 = vsel %vm1732, %v1719, %v1548
      %v1737 = vsel %vm1732, %v1720, %v1550
      %v1738 = vsel %vm1732, %v1721, %v1552
      %v1739 = vsel %vm1732, %v1722, %v1554
      %v1740 = vsel %vm1732, %v1723, %v1556
      %v1741 = vsel %vm1732, %v1724, %v1558
      %v1742 = vsel %vm1732, %v1725, %v1560
      %v1743 = vsel %vm1732, %v1726, %v1562
      %v1744 = vsel %vm1732, %v1727, %v1564
      %v1745 = vsel %vm1732, %v1728, %v1566
      %v1746 = vsel %vm1732, %v1729, %v1568
      %v1747 = vsel %vm1732, %v1730, %v1570
      %v1748 = vsel %vm1732, %v1731, %v1570
      %vm1749 = vcmask 261120
      %v1750 = vsel %vm1749, %v1733, %v1587
      %v1751 = vsel %vm1749, %v1734, %v1589
      %v1752 = vsel %vm1749, %v1735, %v1591
      %v1753 = vsel %vm1749, %v1736, %v1593
      %v1754 = vsel %vm1749, %v1737, %v1595
      %v1755 = vsel %vm1749, %v1738, %v1597
      %v1756 = vsel %vm1749, %v1739, %v1599
      %v1757 = vsel %vm1749, %v1740, %v1601
      %v1758 = vsel %vm1749, %v1741, %v1603
      %v1759 = vsel %vm1749, %v1742, %v1605
      %v1760 = vsel %vm1749, %v1743, %v1607
      %v1761 = vsel %vm1749, %v1744, %v1609
      %v1762 = vsel %vm1749, %v1745, %v1611
      %v1763 = vsel %vm1749, %v1746, %v1613
      %v1764 = vsel %vm1749, %v1747, %v1615
      %v1765 = vsel %vm1749, %v1748, %v1615
      %v1766 = vpack.c.bf16 %v1751, %v1750
      %v1767 = vpack.c.bf16 %v1753, %v1752
      %v1768 = vpack.c.bf16 %v1755, %v1754
      %v1769 = vpack.c.bf16 %v1757, %v1756
      %v1770 = vpack.c.bf16 %v1759, %v1758
      %v1771 = vpack.c.bf16 %v1761, %v1760
      %v1772 = vpack.c.bf16 %v1763, %v1762
      %v1773 = vpack.c.bf16 %v1765, %v1764
      %v1774 = vld [vmem:[%s1] sm:$0xf]
      %v1775 = vld [vmem:[%s1 + $0x4] sm:$0xf]
      %v1776 = vld [vmem:[%s1 + $0x8] sm:$0xf]
      %v1777 = vld [vmem:[%s1 + $0xc] sm:$0xf]
      %v1778 = vld [vmem:[%s1 + $0x10] sm:$0x3]
      %v1779 = vld [vmem:[%s2] sm:$0x1]
      %v1781 = vperm.slane %v1779, 0
      %v1788 = vunpack.c.l.b16 %v1774
      %v1789 = vunpack.c.l.b16 %v1775
      %v1790 = vunpack.c.l.b16 %v1776
      %v1791 = vunpack.c.l.b16 %v1777
      %v1792 = vunpack.c.l.b16 %v1778
      %v1793 = vpack.c.b16 %v1789, %v1788
      %v1794 = vpack.c.b16 %v1791, %v1790
      %v1795 = vpack.c.b16 %v1792, %v1792
      %vm1798 = vcmask 293888
      %v1800 = vsel %vm1798, %v1766, 0
      %v1803 = vsel %vm1798, %v1767, 0
      %v1806 = vsel %vm1798, %v1768, 0
      %v1809 = vsel %vm1798, %v1769, 0
      %v1812 = vsel %vm1798, %v1770, 0
      %v1815 = vsel %vm1798, %v1771, 0
      %v1818 = vsel %vm1798, %v1772, 0
      %v1821 = vsel %vm1798, %v1773, 0
      %vm1823 = vcmask 1041408
      %v1825 = vsel %vm1823, %v1795, 0
      %1827 = vmatpush.bf16.msra.mxu0 0
      %1828 = vmatpush.bf16.msra.mxu0 0
      %1829 = vmatpush.bf16.msra.mxu0 0
      %1830 = vmatpush.bf16.msra.mxu0 0
      %1831 = vmatpush.bf16.msra.mxu0 0
      %1832 = vmatpush.bf16.msra.mxu0 %v1825
      %1833 = vmatpush.bf16.msra.mxu0 %v1794
      %1834 = vmatpush.bf16.msra.mxu0 %v1793
      %1835 = vmatmul.bf16.gmra.mxu0 %v1800
      %v1836 = vpop.f32.mrf.mxu0
      %v1837 = vadd.f32 %v1781, %v1836
      %v1838 = vpop.f32.mrf.mxu0
      %v1839 = vadd.f32 %v1781, %v1838
      %1840 = vmatmul.bf16.gmra.mxu0 %v1803
      %v1841 = vpop.f32.mrf.mxu0
      %v1842 = vadd.f32 %v1781, %v1841
      %v1843 = vpop.f32.mrf.mxu0
      %v1844 = vadd.f32 %v1781, %v1843
      %1845 = vmatmul.bf16.gmra.mxu0 %v1806
      %v1846 = vpop.f32.mrf.mxu0
      %v1847 = vadd.f32 %v1781, %v1846
      %v1848 = vpop.f32.mrf.mxu0
      %v1849 = vadd.f32 %v1781, %v1848
      %1850 = vmatmul.bf16.gmra.mxu0 %v1809
      %v1851 = vpop.f32.mrf.mxu0
      %v1852 = vadd.f32 %v1781, %v1851
      %v1853 = vpop.f32.mrf.mxu0
      %v1854 = vadd.f32 %v1781, %v1853
      %1855 = vmatmul.bf16.gmra.mxu0 %v1812
      %v1856 = vpop.f32.mrf.mxu0
      %v1857 = vadd.f32 %v1781, %v1856
      %v1858 = vpop.f32.mrf.mxu0
      %v1859 = vadd.f32 %v1781, %v1858
      %1860 = vmatmul.bf16.gmra.mxu0 %v1815
      %v1861 = vpop.f32.mrf.mxu0
      %v1862 = vadd.f32 %v1781, %v1861
      %v1863 = vpop.f32.mrf.mxu0
      %v1864 = vadd.f32 %v1781, %v1863
      %1865 = vmatmul.bf16.gmra.mxu0 %v1818
      %v1866 = vpop.f32.mrf.mxu0
      %v1867 = vadd.f32 %v1781, %v1866
      %v1868 = vpop.f32.mrf.mxu0
      %v1869 = vadd.f32 %v1781, %v1868
      %1870 = vmatmul.bf16.gmra.mxu0 %v1821
      %v1871 = vpop.f32.mrf.mxu0
      %v1872 = vadd.f32 %v1781, %v1871
      %v1873 = vpop.f32.mrf.mxu0
      %v1874 = vadd.f32 %v1781, %v1873
      %1875 = vdwg.mxu0
      %v1876 = vmax.f32 %v1837, 0.0
      %v1877 = vmax.f32 %v1839, 0.0
      %v1878 = vmax.f32 %v1842, 0.0
      %v1879 = vmax.f32 %v1844, 0.0
      %v1880 = vmax.f32 %v1847, 0.0
      %v1881 = vmax.f32 %v1849, 0.0
      %v1882 = vmax.f32 %v1852, 0.0
      %v1883 = vmax.f32 %v1854, 0.0
      %v1884 = vmax.f32 %v1857, 0.0
      %v1885 = vmax.f32 %v1859, 0.0
      %v1886 = vmax.f32 %v1862, 0.0
      %v1887 = vmax.f32 %v1864, 0.0
      %v1888 = vmax.f32 %v1867, 0.0
      %v1889 = vmax.f32 %v1869, 0.0
      %v1890 = vmax.f32 %v1872, 0.0
      %v1891 = vmax.f32 %v1874, 0.0
      %v1892 = vlaneseq
      %v1893 = vshrl.u32 %v1892, 7
      %v1894 = vadd.s32 %v1893, 8
      %v1895 = vadd.s32 %v1893, 16
      %v1896 = vadd.s32 %v1893, 24
      %v1897 = vadd.s32 %v1893, 32
      %v1898 = vadd.s32 %v1893, 40
      %v1899 = vadd.s32 %v1893, 48
      %v1900 = vadd.s32 %v1893, 56
      %v1901 = vadd.s32 %v1893, 64
      %v1902 = vadd.s32 %v1893, 72
      %v1903 = vadd.s32 %v1893, 80
      %v1904 = vadd.s32 %v1893, 88
      %v1905 = vadd.s32 %v1893, 96
      %v1906 = vadd.s32 %v1893, 104
      %v1907 = vadd.s32 %v1893, 112
      %v1908 = vadd.s32 %v1893, 120
      %vm1909 = vcmp.lt.s32.totalorder %v1893, 0
      %v1910 = vsub.s32 0, %v1893
      %v1911 = vsel %vm1909, %v1910, %v1893
      %v1912 = vshrl.u32 %v1911, 4
      %v1913 = vand.u32 %v1911, 15
      %v1914 = vsub.s32 0, %v1913
      %v1915 = vsel %vm1909, %v1914, %v1913
      %vm1916 = vcmp.lt.s32.totalorder %v1894, 0
      %v1917 = vsub.s32 0, %v1894
      %v1918 = vsel %vm1916, %v1917, %v1894
      %v1919 = vshrl.u32 %v1918, 4
      %v1920 = vand.u32 %v1918, 15
      %v1921 = vsub.s32 0, %v1920
      %v1922 = vsel %vm1916, %v1921, %v1920
      %vm1923 = vcmp.lt.s32.totalorder %v1895, 0
      %v1924 = vsub.s32 0, %v1895
      %v1925 = vsel %vm1923, %v1924, %v1895
      %v1926 = vshrl.u32 %v1925, 4
      %v1927 = vand.u32 %v1925, 15
      %v1928 = vsub.s32 0, %v1927
      %v1929 = vsel %vm1923, %v1928, %v1927
      %vm1930 = vcmp.lt.s32.totalorder %v1896, 0
      %v1931 = vsub.s32 0, %v1896
      %v1932 = vsel %vm1930, %v1931, %v1896
      %v1933 = vshrl.u32 %v1932, 4
      %v1934 = vand.u32 %v1932, 15
      %v1935 = vsub.s32 0, %v1934
      %v1936 = vsel %vm1930, %v1935, %v1934
      %vm1937 = vcmp.lt.s32.totalorder %v1897, 0
      %v1938 = vsub.s32 0, %v1897
      %v1939 = vsel %vm1937, %v1938, %v1897
      %v1940 = vshrl.u32 %v1939, 4
      %v1941 = vand.u32 %v1939, 15
      %v1942 = vsub.s32 0, %v1941
      %v1943 = vsel %vm1937, %v1942, %v1941
      %vm1944 = vcmp.lt.s32.totalorder %v1898, 0
      %v1945 = vsub.s32 0, %v1898
      %v1946 = vsel %vm1944, %v1945, %v1898
      %v1947 = vshrl.u32 %v1946, 4
      %v1948 = vand.u32 %v1946, 15
      %v1949 = vsub.s32 0, %v1948
      %v1950 = vsel %vm1944, %v1949, %v1948
      %vm1951 = vcmp.lt.s32.totalorder %v1899, 0
      %v1952 = vsub.s32 0, %v1899
      %v1953 = vsel %vm1951, %v1952, %v1899
      %v1954 = vshrl.u32 %v1953, 4
      %v1955 = vand.u32 %v1953, 15
      %v1956 = vsub.s32 0, %v1955
      %v1957 = vsel %vm1951, %v1956, %v1955
      %vm1958 = vcmp.lt.s32.totalorder %v1900, 0
      %v1959 = vsub.s32 0, %v1900
      %v1960 = vsel %vm1958, %v1959, %v1900
      %v1961 = vshrl.u32 %v1960, 4
      %v1962 = vand.u32 %v1960, 15
      %v1963 = vsub.s32 0, %v1962
      %v1964 = vsel %vm1958, %v1963, %v1962
      %vm1965 = vcmp.lt.s32.totalorder %v1901, 0
      %v1966 = vsub.s32 0, %v1901
      %v1967 = vsel %vm1965, %v1966, %v1901
      %v1968 = vshrl.u32 %v1967, 4
      %v1969 = vand.u32 %v1967, 15
      %v1970 = vsub.s32 0, %v1969
      %v1971 = vsel %vm1965, %v1970, %v1969
      %vm1972 = vcmp.lt.s32.totalorder %v1902, 0
      %v1973 = vsub.s32 0, %v1902
      %v1974 = vsel %vm1972, %v1973, %v1902
      %v1975 = vshrl.u32 %v1974, 4
      %v1976 = vand.u32 %v1974, 15
      %v1977 = vsub.s32 0, %v1976
      %v1978 = vsel %vm1972, %v1977, %v1976
      %vm1979 = vcmp.lt.s32.totalorder %v1903, 0
      %v1980 = vsub.s32 0, %v1903
      %v1981 = vsel %vm1979, %v1980, %v1903
      %v1982 = vshrl.u32 %v1981, 4
      %v1983 = vand.u32 %v1981, 15
      %v1984 = vsub.s32 0, %v1983
      %v1985 = vsel %vm1979, %v1984, %v1983
      %vm1986 = vcmp.lt.s32.totalorder %v1904, 0
      %v1987 = vsub.s32 0, %v1904
      %v1988 = vsel %vm1986, %v1987, %v1904
      %v1989 = vshrl.u32 %v1988, 4
      %v1990 = vand.u32 %v1988, 15
      %v1991 = vsub.s32 0, %v1990
      %v1992 = vsel %vm1986, %v1991, %v1990
      %vm1993 = vcmp.lt.s32.totalorder %v1905, 0
      %v1994 = vsub.s32 0, %v1905
      %v1995 = vsel %vm1993, %v1994, %v1905
      %v1996 = vshrl.u32 %v1995, 4
      %v1997 = vand.u32 %v1995, 15
      %v1998 = vsub.s32 0, %v1997
      %v1999 = vsel %vm1993, %v1998, %v1997
      %vm2000 = vcmp.lt.s32.totalorder %v1906, 0
      %v2001 = vsub.s32 0, %v1906
      %v2002 = vsel %vm2000, %v2001, %v1906
      %v2003 = vshrl.u32 %v2002, 4
      %v2004 = vand.u32 %v2002, 15
      %v2005 = vsub.s32 0, %v2004
      %v2006 = vsel %vm2000, %v2005, %v2004
      %vm2007 = vcmp.lt.s32.totalorder %v1907, 0
      %v2008 = vsub.s32 0, %v1907
      %v2009 = vsel %vm2007, %v2008, %v1907
      %v2010 = vshrl.u32 %v2009, 4
      %v2011 = vand.u32 %v2009, 15
      %v2012 = vsub.s32 0, %v2011
      %v2013 = vsel %vm2007, %v2012, %v2011
      %vm2014 = vcmp.lt.s32.totalorder %v1908, 0
      %v2015 = vsub.s32 0, %v1908
      %v2016 = vsel %vm2014, %v2015, %v1908
      %v2017 = vshrl.u32 %v2016, 4
      %v2018 = vand.u32 %v2016, 15
      %v2019 = vsub.s32 0, %v2018
      %v2020 = vsel %vm2014, %v2019, %v2018
      %vm2021 = vcmp.ne.s32.totalorder %v1915, 0
      %vm2022 = vcmp.ne.s32.totalorder %v1922, 0
      %vm2023 = vcmp.ne.s32.totalorder %v1929, 0
      %vm2024 = vcmp.ne.s32.totalorder %v1936, 0
      %vm2025 = vcmp.ne.s32.totalorder %v1943, 0
      %vm2026 = vcmp.ne.s32.totalorder %v1950, 0
      %vm2027 = vcmp.ne.s32.totalorder %v1957, 0
      %vm2028 = vcmp.ne.s32.totalorder %v1964, 0
      %vm2029 = vcmp.ne.s32.totalorder %v1971, 0
      %vm2030 = vcmp.ne.s32.totalorder %v1978, 0
      %vm2031 = vcmp.ne.s32.totalorder %v1985, 0
      %vm2032 = vcmp.ne.s32.totalorder %v1992, 0
      %vm2033 = vcmp.ne.s32.totalorder %v1999, 0
      %vm2034 = vcmp.ne.s32.totalorder %v2006, 0
      %vm2035 = vcmp.ne.s32.totalorder %v2013, 0
      %vm2036 = vcmp.ne.s32.totalorder %v2020, 0
      %vm2037 = vcmp.lt.s32.totalorder %v1915, 0
      %vm2038 = vcmp.lt.s32.totalorder %v1922, 0
      %vm2039 = vcmp.lt.s32.totalorder %v1929, 0
      %vm2040 = vcmp.lt.s32.totalorder %v1936, 0
      %vm2041 = vcmp.lt.s32.totalorder %v1943, 0
      %vm2042 = vcmp.lt.s32.totalorder %v1950, 0
      %vm2043 = vcmp.lt.s32.totalorder %v1957, 0
      %vm2044 = vcmp.lt.s32.totalorder %v1964, 0
      %vm2045 = vcmp.lt.s32.totalorder %v1971, 0
      %vm2046 = vcmp.lt.s32.totalorder %v1978, 0
      %vm2047 = vcmp.lt.s32.totalorder %v1985, 0
      %vm2048 = vcmp.lt.s32.totalorder %v1992, 0
      %vm2049 = vcmp.lt.s32.totalorder %v1999, 0
      %vm2050 = vcmp.lt.s32.totalorder %v2006, 0
      %vm2051 = vcmp.lt.s32.totalorder %v2013, 0
      %vm2052 = vcmp.lt.s32.totalorder %v2020, 0
      %vm2053 = vmand %vm2037, %vm2021
      %vm2054 = vmand %vm2038, %vm2022
      %vm2055 = vmand %vm2039, %vm2023
      %vm2056 = vmand %vm2040, %vm2024
      %vm2057 = vmand %vm2041, %vm2025
      %vm2058 = vmand %vm2042, %vm2026
      %vm2059 = vmand %vm2043, %vm2027
      %vm2060 = vmand %vm2044, %vm2028
      %vm2061 = vmand %vm2045, %vm2029
      %vm2062 = vmand %vm2046, %vm2030
      %vm2063 = vmand %vm2047, %vm2031
      %vm2064 = vmand %vm2048, %vm2032
      %vm2065 = vmand %vm2049, %vm2033
      %vm2066 = vmand %vm2050, %vm2034
      %vm2067 = vmand %vm2051, %vm2035
      %vm2068 = vmand %vm2052, %vm2036
      %v2069 = vadd.s32 %v1915, 16
      %v2070 = vadd.s32 %v1922, 16
      %v2071 = vadd.s32 %v1929, 16
      %v2072 = vadd.s32 %v1936, 16
      %v2073 = vadd.s32 %v1943, 16
      %v2074 = vadd.s32 %v1950, 16
      %v2075 = vadd.s32 %v1957, 16
      %v2076 = vadd.s32 %v1964, 16
      %v2077 = vadd.s32 %v1971, 16
      %v2078 = vadd.s32 %v1978, 16
      %v2079 = vadd.s32 %v1985, 16
      %v2080 = vadd.s32 %v1992, 16
      %v2081 = vadd.s32 %v1999, 16
      %v2082 = vadd.s32 %v2006, 16
      %v2083 = vadd.s32 %v2013, 16
      %v2084 = vadd.s32 %v2020, 16
      %v2085 = vsel %vm2053, %v2069, %v1915
      %v2086 = vsel %vm2054, %v2070, %v1922
      %v2087 = vsel %vm2055, %v2071, %v1929
      %v2088 = vsel %vm2056, %v2072, %v1936
      %v2089 = vsel %vm2057, %v2073, %v1943
      %v2090 = vsel %vm2058, %v2074, %v1950
      %v2091 = vsel %vm2059, %v2075, %v1957
      %v2092 = vsel %vm2060, %v2076, %v1964
      %v2093 = vsel %vm2061, %v2077, %v1971
      %v2094 = vsel %vm2062, %v2078, %v1978
      %v2095 = vsel %vm2063, %v2079, %v1985
      %v2096 = vsel %vm2064, %v2080, %v1992
      %v2097 = vsel %vm2065, %v2081, %v1999
      %v2098 = vsel %vm2066, %v2082, %v2006
      %v2099 = vsel %vm2067, %v2083, %v2013
      %v2100 = vsel %vm2068, %v2084, %v2020
      %vm2101 = vcmp.lt.s32.totalorder %v2085, 8
      %vm2102 = vcmp.lt.s32.totalorder %v2086, 8
      %vm2103 = vcmp.lt.s32.totalorder %v2087, 8
      %vm2104 = vcmp.lt.s32.totalorder %v2088, 8
      %vm2105 = vcmp.lt.s32.totalorder %v2089, 8
      %vm2106 = vcmp.lt.s32.totalorder %v2090, 8
      %vm2107 = vcmp.lt.s32.totalorder %v2091, 8
      %vm2108 = vcmp.lt.s32.totalorder %v2092, 8
      %vm2109 = vcmp.lt.s32.totalorder %v2093, 8
      %vm2110 = vcmp.lt.s32.totalorder %v2094, 8
      %vm2111 = vcmp.lt.s32.totalorder %v2095, 8
      %vm2112 = vcmp.lt.s32.totalorder %v2096, 8
      %vm2113 = vcmp.lt.s32.totalorder %v2097, 8
      %vm2114 = vcmp.lt.s32.totalorder %v2098, 8
      %vm2115 = vcmp.lt.s32.totalorder %v2099, 8
      %vm2116 = vcmp.lt.s32.totalorder %v2100, 8
      %v2117 = vsel %vm2101, 1, 0
      %v2118 = vsel %vm2102, 1, 0
      %v2119 = vsel %vm2103, 1, 0
      %v2120 = vsel %vm2104, 1, 0
      %v2121 = vsel %vm2105, 1, 0
      %v2122 = vsel %vm2106, 1, 0
      %v2123 = vsel %vm2107, 1, 0
      %v2124 = vsel %vm2108, 1, 0
      %v2125 = vsel %vm2109, 1, 0
      %v2126 = vsel %vm2110, 1, 0
      %v2127 = vsel %vm2111, 1, 0
      %v2128 = vsel %vm2112, 1, 0
      %v2129 = vsel %vm2113, 1, 0
      %v2130 = vsel %vm2114, 1, 0
      %v2131 = vsel %vm2115, 1, 0
      %v2132 = vsel %vm2116, 1, 0
      %vm2133 = vcmp.eq.s32.totalorder %v2117, 1
      %vm2134 = vcmp.eq.s32.totalorder %v2118, 1
      %vm2135 = vcmp.eq.s32.totalorder %v2119, 1
      %vm2136 = vcmp.eq.s32.totalorder %v2120, 1
      %vm2137 = vcmp.eq.s32.totalorder %v2121, 1
      %vm2138 = vcmp.eq.s32.totalorder %v2122, 1
      %vm2139 = vcmp.eq.s32.totalorder %v2123, 1
      %vm2140 = vcmp.eq.s32.totalorder %v2124, 1
      %vm2141 = vcmp.eq.s32.totalorder %v2125, 1
      %vm2142 = vcmp.eq.s32.totalorder %v2126, 1
      %vm2143 = vcmp.eq.s32.totalorder %v2127, 1
      %vm2144 = vcmp.eq.s32.totalorder %v2128, 1
      %vm2145 = vcmp.eq.s32.totalorder %v2129, 1
      %vm2146 = vcmp.eq.s32.totalorder %v2130, 1
      %vm2147 = vcmp.eq.s32.totalorder %v2131, 1
      %vm2148 = vcmp.eq.s32.totalorder %v2132, 1
      %v2149 = vsel %vm2133, %v1876, 0.0
      %v2150 = vsel %vm2134, %v1877, 0.0
      %v2151 = vsel %vm2135, %v1878, 0.0
      %v2152 = vsel %vm2136, %v1879, 0.0
      %v2153 = vsel %vm2137, %v1880, 0.0
      %v2154 = vsel %vm2138, %v1881, 0.0
      %v2155 = vsel %vm2139, %v1882, 0.0
      %v2156 = vsel %vm2140, %v1883, 0.0
      %v2157 = vsel %vm2141, %v1884, 0.0
      %v2158 = vsel %vm2142, %v1885, 0.0
      %v2159 = vsel %vm2143, %v1886, 0.0
      %v2160 = vsel %vm2144, %v1887, 0.0
      %v2161 = vsel %vm2145, %v1888, 0.0
      %v2162 = vsel %vm2146, %v1889, 0.0
      %v2163 = vsel %vm2147, %v1890, 0.0
      %v2164 = vsel %vm2148, %v1891, 0.0
      %v2181 = vrot.slane %v2149, 7
      %v2182 = vrot.slane %v2150, 7
      %v2183 = vsel %vm1150, %v2181, %v2182
      %v2184 = vrot.slane %v2151, 7
      %v2185 = vsel %vm1150, %v2182, %v2184
      %v2186 = vrot.slane %v2152, 7
      %v2187 = vsel %vm1150, %v2184, %v2186
      %v2188 = vrot.slane %v2153, 7
      %v2189 = vsel %vm1150, %v2186, %v2188
      %v2190 = vrot.slane %v2154, 7
      %v2191 = vsel %vm1150, %v2188, %v2190
      %v2192 = vrot.slane %v2155, 7
      %v2193 = vsel %vm1150, %v2190, %v2192
      %v2194 = vrot.slane %v2156, 7
      %v2195 = vsel %vm1150, %v2192, %v2194
      %v2196 = vrot.slane %v2157, 7
      %v2197 = vsel %vm1150, %v2194, %v2196
      %v2198 = vrot.slane %v2158, 7
      %v2199 = vsel %vm1150, %v2196, %v2198
      %v2200 = vrot.slane %v2159, 7
      %v2201 = vsel %vm1150, %v2198, %v2200
      %v2202 = vrot.slane %v2160, 7
      %v2203 = vsel %vm1150, %v2200, %v2202
      %v2204 = vrot.slane %v2161, 7
      %v2205 = vsel %vm1150, %v2202, %v2204
      %v2206 = vrot.slane %v2162, 7
      %v2207 = vsel %vm1150, %v2204, %v2206
      %v2208 = vrot.slane %v2163, 7
      %v2209 = vsel %vm1150, %v2206, %v2208
      %v2210 = vrot.slane %v2164, 7
      %v2211 = vsel %vm1150, %v2208, %v2210
      %v2227 = vsel %vm1150, 0.0, %v2181
      %v2228 = vsel %vm1150, %v2210, 0.0
      %v2230 = vrot.slane %v2227, 1
      %v2231 = vsel %vm1183, %v1184, %v2230
      %v2232 = vrot.slane %v2183, 1
      %v2233 = vsel %vm1183, %v2230, %v2232
      %v2234 = vrot.slane %v2185, 1
      %v2235 = vsel %vm1183, %v2232, %v2234
      %v2236 = vrot.slane %v2187, 1
      %v2237 = vsel %vm1183, %v2234, %v2236
      %v2238 = vrot.slane %v2189, 1
      %v2239 = vsel %vm1183, %v2236, %v2238
      %v2240 = vrot.slane %v2191, 1
      %v2241 = vsel %vm1183, %v2238, %v2240
      %v2242 = vrot.slane %v2193, 1
      %v2243 = vsel %vm1183, %v2240, %v2242
      %v2244 = vrot.slane %v2195, 1
      %v2245 = vsel %vm1183, %v2242, %v2244
      %v2246 = vrot.slane %v2197, 1
      %v2247 = vsel %vm1183, %v2244, %v2246
      %v2248 = vrot.slane %v2199, 1
      %v2249 = vsel %vm1183, %v2246, %v2248
      %v2250 = vrot.slane %v2201, 1
      %v2251 = vsel %vm1183, %v2248, %v2250
      %v2252 = vrot.slane %v2203, 1
      %v2253 = vsel %vm1183, %v2250, %v2252
      %v2254 = vrot.slane %v2205, 1
      %v2255 = vsel %vm1183, %v2252, %v2254
      %v2256 = vrot.slane %v2207, 1
      %v2257 = vsel %vm1183, %v2254, %v2256
      %v2258 = vrot.slane %v2209, 1
      %v2259 = vsel %vm1183, %v2256, %v2258
      %2260 = vrot.lane.b32.xlu0 %v1185, 8
      %v2261 = vpop.permute.xlu0 %2260
      %2262 = vrot.lane.b32.xlu0 %v2231, 8
      %v2263 = vpop.permute.xlu0 %2262
      %2264 = vrot.lane.b32.xlu0 %v2233, 8
      %v2265 = vpop.permute.xlu0 %2264
      %2266 = vrot.lane.b32.xlu0 %v2235, 8
      %v2267 = vpop.permute.xlu0 %2266
      %2268 = vrot.lane.b32.xlu0 %v2237, 8
      %v2269 = vpop.permute.xlu0 %2268
      %2270 = vrot.lane.b32.xlu0 %v2239, 8
      %v2271 = vpop.permute.xlu0 %2270
      %2272 = vrot.lane.b32.xlu0 %v2241, 8
      %v2273 = vpop.permute.xlu0 %2272
      %2274 = vrot.lane.b32.xlu0 %v2243, 8
      %v2275 = vpop.permute.xlu0 %2274
      %2276 = vrot.lane.b32.xlu0 %v2245, 8
      %v2277 = vpop.permute.xlu0 %2276
      %2278 = vrot.lane.b32.xlu0 %v2247, 8
      %v2279 = vpop.permute.xlu0 %2278
      %2280 = vrot.lane.b32.xlu0 %v2249, 8
      %v2281 = vpop.permute.xlu0 %2280
      %2282 = vrot.lane.b32.xlu0 %v2251, 8
      %v2283 = vpop.permute.xlu0 %2282
      %2284 = vrot.lane.b32.xlu0 %v2253, 8
      %v2285 = vpop.permute.xlu0 %2284
      %2286 = vrot.lane.b32.xlu0 %v2255, 8
      %v2287 = vpop.permute.xlu0 %2286
      %2288 = vrot.lane.b32.xlu0 %v2257, 8
      %v2289 = vpop.permute.xlu0 %2288
      %2290 = vrot.lane.b32.xlu0 %v2259, 8
      %v2291 = vpop.permute.xlu0 %2290
      %v2308 = vrot.slane %v2227, 2
      %v2309 = vsel %vm1264, %v1265, %v2308
      %v2310 = vrot.slane %v2183, 2
      %v2311 = vsel %vm1264, %v2308, %v2310
      %v2312 = vrot.slane %v2185, 2
      %v2313 = vsel %vm1264, %v2310, %v2312
      %v2314 = vrot.slane %v2187, 2
      %v2315 = vsel %vm1264, %v2312, %v2314
      %v2316 = vrot.slane %v2189, 2
      %v2317 = vsel %vm1264, %v2314, %v2316
      %v2318 = vrot.slane %v2191, 2
      %v2319 = vsel %vm1264, %v2316, %v2318
      %v2320 = vrot.slane %v2193, 2
      %v2321 = vsel %vm1264, %v2318, %v2320
      %v2322 = vrot.slane %v2195, 2
      %v2323 = vsel %vm1264, %v2320, %v2322
      %v2324 = vrot.slane %v2197, 2
      %v2325 = vsel %vm1264, %v2322, %v2324
      %v2326 = vrot.slane %v2199, 2
      %v2327 = vsel %vm1264, %v2324, %v2326
      %v2328 = vrot.slane %v2201, 2
      %v2329 = vsel %vm1264, %v2326, %v2328
      %v2330 = vrot.slane %v2203, 2
      %v2331 = vsel %vm1264, %v2328, %v2330
      %v2332 = vrot.slane %v2205, 2
      %v2333 = vsel %vm1264, %v2330, %v2332
      %v2334 = vrot.slane %v2207, 2
      %v2335 = vsel %vm1264, %v2332, %v2334
      %v2336 = vrot.slane %v2209, 2
      %v2337 = vsel %vm1264, %v2334, %v2336
      %2338 = vrot.lane.b32.xlu0 %v1266, 16
      %v2339 = vpop.permute.xlu0 %2338
      %2340 = vrot.lane.b32.xlu0 %v2309, 16
      %v2341 = vpop.permute.xlu0 %2340
      %2342 = vrot.lane.b32.xlu0 %v2311, 16
      %v2343 = vpop.permute.xlu0 %2342
      %2344 = vrot.lane.b32.xlu0 %v2313, 16
      %v2345 = vpop.permute.xlu0 %2344
      %2346 = vrot.lane.b32.xlu0 %v2315, 16
      %v2347 = vpop.permute.xlu0 %2346
      %2348 = vrot.lane.b32.xlu0 %v2317, 16
      %v2349 = vpop.permute.xlu0 %2348
      %2350 = vrot.lane.b32.xlu0 %v2319, 16
      %v2351 = vpop.permute.xlu0 %2350
      %2352 = vrot.lane.b32.xlu0 %v2321, 16
      %v2353 = vpop.permute.xlu0 %2352
      %2354 = vrot.lane.b32.xlu0 %v2323, 16
      %v2355 = vpop.permute.xlu0 %2354
      %2356 = vrot.lane.b32.xlu0 %v2325, 16
      %v2357 = vpop.permute.xlu0 %2356
      %2358 = vrot.lane.b32.xlu0 %v2327, 16
      %v2359 = vpop.permute.xlu0 %2358
      %2360 = vrot.lane.b32.xlu0 %v2329, 16
      %v2361 = vpop.permute.xlu0 %2360
      %2362 = vrot.lane.b32.xlu0 %v2331, 16
      %v2363 = vpop.permute.xlu0 %2362
      %2364 = vrot.lane.b32.xlu0 %v2333, 16
      %v2365 = vpop.permute.xlu0 %2364
      %2366 = vrot.lane.b32.xlu0 %v2335, 16
      %v2367 = vpop.permute.xlu0 %2366
      %2368 = vrot.lane.b32.xlu0 %v2337, 16
      %v2369 = vpop.permute.xlu0 %2368
      %2386 = vrot.lane.b32.xlu0 %v2227, 24
      %v2387 = vpop.permute.xlu0 %2386
      %2388 = vrot.lane.b32.xlu0 %v2183, 24
      %v2389 = vpop.permute.xlu0 %2388
      %2390 = vrot.lane.b32.xlu0 %v2185, 24
      %v2391 = vpop.permute.xlu0 %2390
      %2392 = vrot.lane.b32.xlu0 %v2187, 24
      %v2393 = vpop.permute.xlu0 %2392
      %2394 = vrot.lane.b32.xlu0 %v2189, 24
      %v2395 = vpop.permute.xlu0 %2394
      %2396 = vrot.lane.b32.xlu0 %v2191, 24
      %v2397 = vpop.permute.xlu0 %2396
      %2398 = vrot.lane.b32.xlu0 %v2193, 24
      %v2399 = vpop.permute.xlu0 %2398
      %2400 = vrot.lane.b32.xlu0 %v2195, 24
      %v2401 = vpop.permute.xlu0 %2400
      %2402 = vrot.lane.b32.xlu0 %v2197, 24
      %v2403 = vpop.permute.xlu0 %2402
      %2404 = vrot.lane.b32.xlu0 %v2199, 24
      %v2405 = vpop.permute.xlu0 %2404
      %2406 = vrot.lane.b32.xlu0 %v2201, 24
      %v2407 = vpop.permute.xlu0 %2406
      %2408 = vrot.lane.b32.xlu0 %v2203, 24
      %v2409 = vpop.permute.xlu0 %2408
      %2410 = vrot.lane.b32.xlu0 %v2205, 24
      %v2411 = vpop.permute.xlu0 %2410
      %2412 = vrot.lane.b32.xlu0 %v2207, 24
      %v2413 = vpop.permute.xlu0 %2412
      %2414 = vrot.lane.b32.xlu0 %v2209, 24
      %v2415 = vpop.permute.xlu0 %2414
      %2416 = vrot.lane.b32.xlu0 %v2211, 24
      %v2417 = vpop.permute.xlu0 %2416
      %v2435 = vrot.slane %v2211, 1
      %v2436 = vsel %vm1183, %v2258, %v2435
      %v2437 = vrot.slane %v2228, 1
      %v2438 = vsel %vm1183, %v2435, %v2437
      %2439 = vrot.lane.b32.xlu0 %v2233, 32
      %v2440 = vpop.permute.xlu0 %2439
      %2441 = vrot.lane.b32.xlu0 %v2235, 32
      %v2442 = vpop.permute.xlu0 %2441
      %2443 = vrot.lane.b32.xlu0 %v2237, 32
      %v2444 = vpop.permute.xlu0 %2443
      %2445 = vrot.lane.b32.xlu0 %v2239, 32
      %v2446 = vpop.permute.xlu0 %2445
      %2447 = vrot.lane.b32.xlu0 %v2241, 32
      %v2448 = vpop.permute.xlu0 %2447
      %2449 = vrot.lane.b32.xlu0 %v2243, 32
      %v2450 = vpop.permute.xlu0 %2449
      %2451 = vrot.lane.b32.xlu0 %v2245, 32
      %v2452 = vpop.permute.xlu0 %2451
      %2453 = vrot.lane.b32.xlu0 %v2247, 32
      %v2454 = vpop.permute.xlu0 %2453
      %2455 = vrot.lane.b32.xlu0 %v2249, 32
      %v2456 = vpop.permute.xlu0 %2455
      %2457 = vrot.lane.b32.xlu0 %v2251, 32
      %v2458 = vpop.permute.xlu0 %2457
      %2459 = vrot.lane.b32.xlu0 %v2253, 32
      %v2460 = vpop.permute.xlu0 %2459
      %2461 = vrot.lane.b32.xlu0 %v2255, 32
      %v2462 = vpop.permute.xlu0 %2461
      %2463 = vrot.lane.b32.xlu0 %v2257, 32
      %v2464 = vpop.permute.xlu0 %2463
      %2465 = vrot.lane.b32.xlu0 %v2259, 32
      %v2466 = vpop.permute.xlu0 %2465
      %2467 = vrot.lane.b32.xlu0 %v2436, 32
      %v2468 = vpop.permute.xlu0 %2467
      %2469 = vrot.lane.b32.xlu0 %v2438, 32
      %v2470 = vpop.permute.xlu0 %2469
      %v2487 = vrot.slane %v2211, 2
      %v2488 = vsel %vm1264, %v2336, %v2487
      %v2489 = vrot.slane %v2228, 2
      %v2490 = vsel %vm1264, %v2487, %v2489
      %2491 = vrot.lane.b32.xlu0 %v2311, 40
      %v2492 = vpop.permute.xlu0 %2491
      %2493 = vrot.lane.b32.xlu0 %v2313, 40
      %v2494 = vpop.permute.xlu0 %2493
      %2495 = vrot.lane.b32.xlu0 %v2315, 40
      %v2496 = vpop.permute.xlu0 %2495
      %2497 = vrot.lane.b32.xlu0 %v2317, 40
      %v2498 = vpop.permute.xlu0 %2497
      %2499 = vrot.lane.b32.xlu0 %v2319, 40
      %v2500 = vpop.permute.xlu0 %2499
      %2501 = vrot.lane.b32.xlu0 %v2321, 40
      %v2502 = vpop.permute.xlu0 %2501
      %2503 = vrot.lane.b32.xlu0 %v2323, 40
      %v2504 = vpop.permute.xlu0 %2503
      %2505 = vrot.lane.b32.xlu0 %v2325, 40
      %v2506 = vpop.permute.xlu0 %2505
      %2507 = vrot.lane.b32.xlu0 %v2327, 40
      %v2508 = vpop.permute.xlu0 %2507
      %2509 = vrot.lane.b32.xlu0 %v2329, 40
      %v2510 = vpop.permute.xlu0 %2509
      %2511 = vrot.lane.b32.xlu0 %v2331, 40
      %v2512 = vpop.permute.xlu0 %2511
      %2513 = vrot.lane.b32.xlu0 %v2333, 40
      %v2514 = vpop.permute.xlu0 %2513
      %2515 = vrot.lane.b32.xlu0 %v2335, 40
      %v2516 = vpop.permute.xlu0 %2515
      %2517 = vrot.lane.b32.xlu0 %v2337, 40
      %v2518 = vpop.permute.xlu0 %2517
      %2519 = vrot.lane.b32.xlu0 %v2488, 40
      %v2520 = vpop.permute.xlu0 %2519
      %2521 = vrot.lane.b32.xlu0 %v2490, 40
      %v2522 = vpop.permute.xlu0 %2521
      %2539 = vrot.lane.b32.xlu0 %v2185, 48
      %v2540 = vpop.permute.xlu0 %2539
      %2541 = vrot.lane.b32.xlu0 %v2187, 48
      %v2542 = vpop.permute.xlu0 %2541
      %2543 = vrot.lane.b32.xlu0 %v2189, 48
      %v2544 = vpop.permute.xlu0 %2543
      %2545 = vrot.lane.b32.xlu0 %v2191, 48
      %v2546 = vpop.permute.xlu0 %2545
      %2547 = vrot.lane.b32.xlu0 %v2193, 48
      %v2548 = vpop.permute.xlu0 %2547
      %2549 = vrot.lane.b32.xlu0 %v2195, 48
      %v2550 = vpop.permute.xlu0 %2549
      %2551 = vrot.lane.b32.xlu0 %v2197, 48
      %v2552 = vpop.permute.xlu0 %2551
      %2553 = vrot.lane.b32.xlu0 %v2199, 48
      %v2554 = vpop.permute.xlu0 %2553
      %2555 = vrot.lane.b32.xlu0 %v2201, 48
      %v2556 = vpop.permute.xlu0 %2555
      %2557 = vrot.lane.b32.xlu0 %v2203, 48
      %v2558 = vpop.permute.xlu0 %2557
      %2559 = vrot.lane.b32.xlu0 %v2205, 48
      %v2560 = vpop.permute.xlu0 %2559
      %2561 = vrot.lane.b32.xlu0 %v2207, 48
      %v2562 = vpop.permute.xlu0 %2561
      %2563 = vrot.lane.b32.xlu0 %v2209, 48
      %v2564 = vpop.permute.xlu0 %2563
      %2565 = vrot.lane.b32.xlu0 %v2211, 48
      %v2566 = vpop.permute.xlu0 %2565
      %2567 = vrot.lane.b32.xlu0 %v2228, 48
      %v2568 = vpop.permute.xlu0 %2567
      %2569 = vrot.lane.b32.xlu0 0.0, 48
      %v2570 = vpop.permute.xlu0 %2569
      %v2587 = vsel %vm1183, %v2437, %v1184
      %2588 = vrot.lane.b32.xlu0 %v2237, 56
      %v2589 = vpop.permute.xlu0 %2588
      %2590 = vrot.lane.b32.xlu0 %v2239, 56
      %v2591 = vpop.permute.xlu0 %2590
      %2592 = vrot.lane.b32.xlu0 %v2241, 56
      %v2593 = vpop.permute.xlu0 %2592
      %2594 = vrot.lane.b32.xlu0 %v2243, 56
      %v2595 = vpop.permute.xlu0 %2594
      %2596 = vrot.lane.b32.xlu0 %v2245, 56
      %v2597 = vpop.permute.xlu0 %2596
      %2598 = vrot.lane.b32.xlu0 %v2247, 56
      %v2599 = vpop.permute.xlu0 %2598
      %2600 = vrot.lane.b32.xlu0 %v2249, 56
      %v2601 = vpop.permute.xlu0 %2600
      %2602 = vrot.lane.b32.xlu0 %v2251, 56
      %v2603 = vpop.permute.xlu0 %2602
      %2604 = vrot.lane.b32.xlu0 %v2253, 56
      %v2605 = vpop.permute.xlu0 %2604
      %2606 = vrot.lane.b32.xlu0 %v2255, 56
      %v2607 = vpop.permute.xlu0 %2606
      %2608 = vrot.lane.b32.xlu0 %v2257, 56
      %v2609 = vpop.permute.xlu0 %2608
      %2610 = vrot.lane.b32.xlu0 %v2259, 56
      %v2611 = vpop.permute.xlu0 %2610
      %2612 = vrot.lane.b32.xlu0 %v2436, 56
      %v2613 = vpop.permute.xlu0 %2612
      %2614 = vrot.lane.b32.xlu0 %v2438, 56
      %v2615 = vpop.permute.xlu0 %2614
      %2616 = vrot.lane.b32.xlu0 %v2587, 56
      %v2617 = vpop.permute.xlu0 %2616
      %2618 = vrot.lane.b32.xlu0 %v1185, 56
      %v2619 = vpop.permute.xlu0 %2618
      %v2636 = vsel %vm1264, %v2489, %v1265
      %2637 = vrot.lane.b32.xlu0 %v2315, 64
      %v2638 = vpop.permute.xlu0 %2637
      %2639 = vrot.lane.b32.xlu0 %v2317, 64
      %v2640 = vpop.permute.xlu0 %2639
      %2641 = vrot.lane.b32.xlu0 %v2319, 64
      %v2642 = vpop.permute.xlu0 %2641
      %2643 = vrot.lane.b32.xlu0 %v2321, 64
      %v2644 = vpop.permute.xlu0 %2643
      %2645 = vrot.lane.b32.xlu0 %v2323, 64
      %v2646 = vpop.permute.xlu0 %2645
      %2647 = vrot.lane.b32.xlu0 %v2325, 64
      %v2648 = vpop.permute.xlu0 %2647
      %2649 = vrot.lane.b32.xlu0 %v2327, 64
      %v2650 = vpop.permute.xlu0 %2649
      %2651 = vrot.lane.b32.xlu0 %v2329, 64
      %v2652 = vpop.permute.xlu0 %2651
      %2653 = vrot.lane.b32.xlu0 %v2331, 64
      %v2654 = vpop.permute.xlu0 %2653
      %2655 = vrot.lane.b32.xlu0 %v2333, 64
      %v2656 = vpop.permute.xlu0 %2655
      %2657 = vrot.lane.b32.xlu0 %v2335, 64
      %v2658 = vpop.permute.xlu0 %2657
      %2659 = vrot.lane.b32.xlu0 %v2337, 64
      %v2660 = vpop.permute.xlu0 %2659
      %2661 = vrot.lane.b32.xlu0 %v2488, 64
      %v2662 = vpop.permute.xlu0 %2661
      %2663 = vrot.lane.b32.xlu0 %v2490, 64
      %v2664 = vpop.permute.xlu0 %2663
      %2665 = vrot.lane.b32.xlu0 %v2636, 64
      %v2666 = vpop.permute.xlu0 %2665
      %2667 = vrot.lane.b32.xlu0 %v1266, 64
      %v2668 = vpop.permute.xlu0 %2667
      %v2685 = vsel %vm1647, 0.0, %v2261
      %v2686 = vsel %vm1647, 0.0, %v2263
      %v2687 = vsel %vm1647, %v2227, %v2265
      %v2688 = vsel %vm1647, %v2183, %v2267
      %v2689 = vsel %vm1647, %v2185, %v2269
      %v2690 = vsel %vm1647, %v2187, %v2271
      %v2691 = vsel %vm1647, %v2189, %v2273
      %v2692 = vsel %vm1647, %v2191, %v2275
      %v2693 = vsel %vm1647, %v2193, %v2277
      %v2694 = vsel %vm1647, %v2195, %v2279
      %v2695 = vsel %vm1647, %v2197, %v2281
      %v2696 = vsel %vm1647, %v2199, %v2283
      %v2697 = vsel %vm1647, %v2201, %v2285
      %v2698 = vsel %vm1647, %v2203, %v2287
      %v2699 = vsel %vm1647, %v2205, %v2289
      %v2700 = vsel %vm1647, %v2207, %v2291
      %v2701 = vsel %vm1681, %v2685, %v2339
      %v2702 = vsel %vm1681, %v2686, %v2341
      %v2703 = vsel %vm1681, %v2687, %v2343
      %v2704 = vsel %vm1681, %v2688, %v2345
      %v2705 = vsel %vm1681, %v2689, %v2347
      %v2706 = vsel %vm1681, %v2690, %v2349
      %v2707 = vsel %vm1681, %v2691, %v2351
      %v2708 = vsel %vm1681, %v2692, %v2353
      %v2709 = vsel %vm1681, %v2693, %v2355
      %v2710 = vsel %vm1681, %v2694, %v2357
      %v2711 = vsel %vm1681, %v2695, %v2359
      %v2712 = vsel %vm1681, %v2696, %v2361
      %v2713 = vsel %vm1681, %v2697, %v2363
      %v2714 = vsel %vm1681, %v2698, %v2365
      %v2715 = vsel %vm1681, %v2699, %v2367
      %v2716 = vsel %vm1681, %v2700, %v2369
      %v2717 = vsel %vm1715, %v2701, %v2387
      %v2718 = vsel %vm1715, %v2702, %v2389
      %v2719 = vsel %vm1715, %v2703, %v2391
      %v2720 = vsel %vm1715, %v2704, %v2393
      %v2721 = vsel %vm1715, %v2705, %v2395
      %v2722 = vsel %vm1715, %v2706, %v2397
      %v2723 = vsel %vm1715, %v2707, %v2399
      %v2724 = vsel %vm1715, %v2708, %v2401
      %v2725 = vsel %vm1715, %v2709, %v2403
      %v2726 = vsel %vm1715, %v2710, %v2405
      %v2727 = vsel %vm1715, %v2711, %v2407
      %v2728 = vsel %vm1715, %v2712, %v2409
      %v2729 = vsel %vm1715, %v2713, %v2411
      %v2730 = vsel %vm1715, %v2714, %v2413
      %v2731 = vsel %vm1715, %v2715, %v2415
      %v2732 = vsel %vm1715, %v2716, %v2417
      %v2733 = vsel %vm1749, %v2717, %v2440
      %v2734 = vsel %vm1749, %v2718, %v2442
      %v2735 = vsel %vm1749, %v2719, %v2444
      %v2736 = vsel %vm1749, %v2720, %v2446
      %v2737 = vsel %vm1749, %v2721, %v2448
      %v2738 = vsel %vm1749, %v2722, %v2450
      %v2739 = vsel %vm1749, %v2723, %v2452
      %v2740 = vsel %vm1749, %v2724, %v2454
      %v2741 = vsel %vm1749, %v2725, %v2456
      %v2742 = vsel %vm1749, %v2726, %v2458
      %v2743 = vsel %vm1749, %v2727, %v2460
      %v2744 = vsel %vm1749, %v2728, %v2462
      %v2745 = vsel %vm1749, %v2729, %v2464
      %v2746 = vsel %vm1749, %v2730, %v2466
      %v2747 = vsel %vm1749, %v2731, %v2468
      %v2748 = vsel %vm1749, %v2732, %v2470
      %vm2749 = vcmask 326656
      %v2750 = vsel %vm2749, %v2733, %v2492
      %v2751 = vsel %vm2749, %v2734, %v2494
      %v2752 = vsel %vm2749, %v2735, %v2496
      %v2753 = vsel %vm2749, %v2736, %v2498
      %v2754 = vsel %vm2749, %v2737, %v2500
      %v2755 = vsel %vm2749, %v2738, %v2502
      %v2756 = vsel %vm2749, %v2739, %v2504
      %v2757 = vsel %vm2749, %v2740, %v2506
      %v2758 = vsel %vm2749, %v2741, %v2508
      %v2759 = vsel %vm2749, %v2742, %v2510
      %v2760 = vsel %vm2749, %v2743, %v2512
      %v2761 = vsel %vm2749, %v2744, %v2514
      %v2762 = vsel %vm2749, %v2745, %v2516
      %v2763 = vsel %vm2749, %v2746, %v2518
      %v2764 = vsel %vm2749, %v2747, %v2520
      %v2765 = vsel %vm2749, %v2748, %v2522
      %vm2766 = vcmask 392192
      %v2767 = vsel %vm2766, %v2750, %v2540
      %v2768 = vsel %vm2766, %v2751, %v2542
      %v2769 = vsel %vm2766, %v2752, %v2544
      %v2770 = vsel %vm2766, %v2753, %v2546
      %v2771 = vsel %vm2766, %v2754, %v2548
      %v2772 = vsel %vm2766, %v2755, %v2550
      %v2773 = vsel %vm2766, %v2756, %v2552
      %v2774 = vsel %vm2766, %v2757, %v2554
      %v2775 = vsel %vm2766, %v2758, %v2556
      %v2776 = vsel %vm2766, %v2759, %v2558
      %v2777 = vsel %vm2766, %v2760, %v2560
      %v2778 = vsel %vm2766, %v2761, %v2562
      %v2779 = vsel %vm2766, %v2762, %v2564
      %v2780 = vsel %vm2766, %v2763, %v2566
      %v2781 = vsel %vm2766, %v2764, %v2568
      %v2782 = vsel %vm2766, %v2765, %v2570
      %vm2783 = vcmask 457728
      %v2784 = vsel %vm2783, %v2767, %v2589
      %v2785 = vsel %vm2783, %v2768, %v2591
      %v2786 = vsel %vm2783, %v2769, %v2593
      %v2787 = vsel %vm2783, %v2770, %v2595
      %v2788 = vsel %vm2783, %v2771, %v2597
      %v2789 = vsel %vm2783, %v2772, %v2599
      %v2790 = vsel %vm2783, %v2773, %v2601
      %v2791 = vsel %vm2783, %v2774, %v2603
      %v2792 = vsel %vm2783, %v2775, %v2605
      %v2793 = vsel %vm2783, %v2776, %v2607
      %v2794 = vsel %vm2783, %v2777, %v2609
      %v2795 = vsel %vm2783, %v2778, %v2611
      %v2796 = vsel %vm2783, %v2779, %v2613
      %v2797 = vsel %vm2783, %v2780, %v2615
      %v2798 = vsel %vm2783, %v2781, %v2617
      %v2799 = vsel %vm2783, %v2782, %v2619
      %vm2800 = vcmask 523264
      %v2801 = vsel %vm2800, %v2784, %v2638
      %v2802 = vsel %vm2800, %v2785, %v2640
      %v2803 = vsel %vm2800, %v2786, %v2642
      %v2804 = vsel %vm2800, %v2787, %v2644
      %v2805 = vsel %vm2800, %v2788, %v2646
      %v2806 = vsel %vm2800, %v2789, %v2648
      %v2807 = vsel %vm2800, %v2790, %v2650
      %v2808 = vsel %vm2800, %v2791, %v2652
      %v2809 = vsel %vm2800, %v2792, %v2654
      %v2810 = vsel %vm2800, %v2793, %v2656
      %v2811 = vsel %vm2800, %v2794, %v2658
      %v2812 = vsel %vm2800, %v2795, %v2660
      %v2813 = vsel %vm2800, %v2796, %v2662
      %v2814 = vsel %vm2800, %v2797, %v2664
      %v2815 = vsel %vm2800, %v2798, %v2666
      %v2816 = vsel %vm2800, %v2799, %v2668
      %v2817 = vpack.c.bf16 %v2802, %v2801
      %v2818 = vpack.c.bf16 %v2804, %v2803
      %v2819 = vpack.c.bf16 %v2806, %v2805
      %v2820 = vpack.c.bf16 %v2808, %v2807
      %v2821 = vpack.c.bf16 %v2810, %v2809
      %v2822 = vpack.c.bf16 %v2812, %v2811
      %v2823 = vpack.c.bf16 %v2814, %v2813
      %v2824 = vpack.c.bf16 %v2816, %v2815
      %v2825 = vld [vmem:[%s3] sm:$0xf]
      %v2826 = vld [vmem:[%s3 + $0x4] sm:$0xf]
      %v2827 = vld [vmem:[%s3 + $0x8] sm:$0xf]
      %v2828 = vld [vmem:[%s3 + $0xc] sm:$0xf]
      %v2829 = vld [vmem:[%s3 + $0x10] sm:$0xf]
      %v2830 = vld [vmem:[%s3 + $0x14] sm:$0xf]
      %v2831 = vld [vmem:[%s3 + $0x18] sm:$0xf]
      %v2832 = vld [vmem:[%s3 + $0x1c] sm:$0xf]
      %v2833 = vld [vmem:[%s3 + $0x20] sm:$0xf]
      %v2834 = vld [vmem:[%s4] sm:$0x1]
      %v2836 = vperm.slane %v2834, 0
      %v2847 = vunpack.c.l.b16 %v2825
      %v2848 = vunpack.c.l.b16 %v2826
      %v2849 = vunpack.c.l.b16 %v2827
      %v2850 = vunpack.c.l.b16 %v2828
      %v2851 = vunpack.c.l.b16 %v2829
      %v2852 = vunpack.c.l.b16 %v2830
      %v2853 = vunpack.c.l.b16 %v2831
      %v2854 = vunpack.c.l.b16 %v2832
      %v2855 = vunpack.c.l.b16 %v2833
      %v2856 = vpack.c.b16 %v2848, %v2847
      %v2857 = vpack.c.b16 %v2850, %v2849
      %v2858 = vpack.c.b16 %v2852, %v2851
      %v2859 = vpack.c.b16 %v2854, %v2853
      %v2860 = vpack.c.b16 %v2855, %v2855
      %vm2865 = vcmask 588800
      %v2867 = vsel %vm2865, %v2817, 0
      %v2870 = vsel %vm2865, %v2818, 0
      %v2873 = vsel %vm2865, %v2819, 0
      %v2876 = vsel %vm2865, %v2820, 0
      %v2879 = vsel %vm2865, %v2821, 0
      %v2882 = vsel %vm2865, %v2822, 0
      %v2885 = vsel %vm2865, %v2823, 0
      %v2888 = vsel %vm2865, %v2824, 0
      %vm2890 = vcmask 1043456
      %v2892 = vsel %vm2890, %v2860, 0
      %2894 = vmatpush.bf16.msra.mxu0 0
      %2895 = vmatpush.bf16.msra.mxu0 0
      %2896 = vmatpush.bf16.msra.mxu0 0
      %2897 = vmatpush.bf16.msra.mxu0 %v2892
      %2898 = vmatpush.bf16.msra.mxu0 %v2859
      %2899 = vmatpush.bf16.msra.mxu0 %v2858
      %2900 = vmatpush.bf16.msra.mxu0 %v2857
      %2901 = vmatpush.bf16.msra.mxu0 %v2856
      %2902 = vmatmul.bf16.gmra.mxu0 %v2867
      %v2903 = vpop.f32.mrf.mxu0
      %v2904 = vadd.f32 %v2836, %v2903
      %v2905 = vpop.f32.mrf.mxu0
      %v2906 = vadd.f32 %v2836, %v2905
      %2907 = vmatmul.bf16.gmra.mxu0 %v2870
      %v2908 = vpop.f32.mrf.mxu0
      %v2909 = vadd.f32 %v2836, %v2908
      %v2910 = vpop.f32.mrf.mxu0
      %v2911 = vadd.f32 %v2836, %v2910
      %2912 = vmatmul.bf16.gmra.mxu0 %v2873
      %v2913 = vpop.f32.mrf.mxu0
      %v2914 = vadd.f32 %v2836, %v2913
      %v2915 = vpop.f32.mrf.mxu0
      %v2916 = vadd.f32 %v2836, %v2915
      %2917 = vmatmul.bf16.gmra.mxu0 %v2876
      %v2918 = vpop.f32.mrf.mxu0
      %v2919 = vadd.f32 %v2836, %v2918
      %v2920 = vpop.f32.mrf.mxu0
      %v2921 = vadd.f32 %v2836, %v2920
      %2922 = vmatmul.bf16.gmra.mxu0 %v2879
      %v2923 = vpop.f32.mrf.mxu0
      %v2924 = vadd.f32 %v2836, %v2923
      %v2925 = vpop.f32.mrf.mxu0
      %v2926 = vadd.f32 %v2836, %v2925
      %2927 = vmatmul.bf16.gmra.mxu0 %v2882
      %v2928 = vpop.f32.mrf.mxu0
      %v2929 = vadd.f32 %v2836, %v2928
      %v2930 = vpop.f32.mrf.mxu0
      %v2931 = vadd.f32 %v2836, %v2930
      %2932 = vmatmul.bf16.gmra.mxu0 %v2885
      %v2933 = vpop.f32.mrf.mxu0
      %v2934 = vadd.f32 %v2836, %v2933
      %v2935 = vpop.f32.mrf.mxu0
      %v2936 = vadd.f32 %v2836, %v2935
      %2937 = vmatmul.bf16.gmra.mxu0 %v2888
      %v2938 = vpop.f32.mrf.mxu0
      %v2939 = vadd.f32 %v2836, %v2938
      %v2940 = vpop.f32.mrf.mxu0
      %v2941 = vadd.f32 %v2836, %v2940
      %2942 = vdwg.mxu0
      %v2943 = vmax.f32 %v2904, 0.0
      %v2944 = vmax.f32 %v2906, 0.0
      %v2945 = vmax.f32 %v2909, 0.0
      %v2946 = vmax.f32 %v2911, 0.0
      %v2947 = vmax.f32 %v2914, 0.0
      %v2948 = vmax.f32 %v2916, 0.0
      %v2949 = vmax.f32 %v2919, 0.0
      %v2950 = vmax.f32 %v2921, 0.0
      %v2951 = vmax.f32 %v2924, 0.0
      %v2952 = vmax.f32 %v2926, 0.0
      %v2953 = vmax.f32 %v2929, 0.0
      %v2954 = vmax.f32 %v2931, 0.0
      %v2955 = vmax.f32 %v2934, 0.0
      %v2956 = vmax.f32 %v2936, 0.0
      %v2957 = vmax.f32 %v2939, 0.0
      %v2958 = vmax.f32 %v2941, 0.0
      %2959 = vst.msk [vmem:[%s367] sm:$0xff] %vm1647, %v2943
      %2960 = vst.msk [vmem:[%s367 + $0x8] sm:$0xff] %vm1647, %v2944
      %2961 = vst.msk [vmem:[%s367 + $0x10] sm:$0xff] %vm1647, %v2945
      %2962 = vst.msk [vmem:[%s367 + $0x18] sm:$0xff] %vm1647, %v2946
      %2963 = vst.msk [vmem:[%s367 + $0x20] sm:$0xff] %vm1647, %v2947
      %2964 = vst.msk [vmem:[%s367 + $0x28] sm:$0xff] %vm1647, %v2948
      %2965 = vst.msk [vmem:[%s367 + $0x30] sm:$0xff] %vm1647, %v2949
      %2966 = vst.msk [vmem:[%s367 + $0x38] sm:$0xff] %vm1647, %v2950
      %2967 = vst.msk [vmem:[%s367 + $0x40] sm:$0xff] %vm1647, %v2951
      %2968 = vst.msk [vmem:[%s367 + $0x48] sm:$0xff] %vm1647, %v2952
      %2969 = vst.msk [vmem:[%s367 + $0x50] sm:$0xff] %vm1647, %v2953
      %2970 = vst.msk [vmem:[%s367 + $0x58] sm:$0xff] %vm1647, %v2954
      %2971 = vst.msk [vmem:[%s367 + $0x60] sm:$0xff] %vm1647, %v2955
      %2972 = vst.msk [vmem:[%s367 + $0x68] sm:$0xff] %vm1647, %v2956
      %2973 = vst.msk [vmem:[%s367 + $0x70] sm:$0xff] %vm1647, %v2957
      %2974 = vst.msk [vmem:[%s367 + $0x78] sm:$0xff] %vm1647, %v2958
      %v2975 = vsel %vm1647, %v2943, -inf
      %v2976 = vsel %vm1647, %v2945, -inf
      %v2977 = vmax.f32 %v2975, %v2976
      %v2978 = vsel %vm1647, %v2947, -inf
      %v2979 = vsel %vm1647, %v2949, -inf
      %v2980 = vmax.f32 %v2978, %v2979
      %v2981 = vsel %vm1647, %v2951, -inf
      %v2982 = vsel %vm1647, %v2953, -inf
      %v2983 = vmax.f32 %v2981, %v2982
      %v2984 = vsel %vm1647, %v2955, -inf
      %v2985 = vsel %vm1647, %v2957, -inf
      %v2986 = vmax.f32 %v2984, %v2985
      %v2991 = vrot.slane %v2977, 2
      %v2992 = vrot.slane %v2977, 4
      %v2993 = vrot.slane %v2977, 6
      %v2994 = vrot.slane %v2980, 2
      %v2995 = vrot.slane %v2980, 4
      %v2996 = vrot.slane %v2980, 6
      %v2997 = vrot.slane %v2983, 2
      %v2998 = vrot.slane %v2983, 4
      %v2999 = vrot.slane %v2983, 6
      %v3000 = vrot.slane %v2986, 2
      %v3001 = vrot.slane %v2986, 4
      %v3002 = vrot.slane %v2986, 6
      %vm3015 = vcmask 58368
      %v3016 = vsel %vm3015, %v2977, -inf
      %v3017 = vrot.slane %v3016, 4
      %v3018 = vmax.f32 %v3016, %v3017
      %v3019 = vrot.slane %v3018, 2
      %v3020 = vmax.f32 %v3018, %v3019
      %v3021 = vrot.slane %v3020, 1
      %v3022 = vmax.f32 %v3020, %v3021
      %v3023 = vsel %vm3015, %v2991, -inf
      %v3024 = vrot.slane %v3023, 4
      %v3025 = vmax.f32 %v3023, %v3024
      %v3026 = vrot.slane %v3025, 2
      %v3027 = vmax.f32 %v3025, %v3026
      %v3028 = vrot.slane %v3027, 1
      %v3029 = vmax.f32 %v3027, %v3028
      %v3030 = vsel %vm3015, %v2992, -inf
      %v3031 = vrot.slane %v3030, 4
      %v3032 = vmax.f32 %v3030, %v3031
      %v3033 = vrot.slane %v3032, 2
      %v3034 = vmax.f32 %v3032, %v3033
      %v3035 = vrot.slane %v3034, 1
      %v3036 = vmax.f32 %v3034, %v3035
      %v3037 = vsel %vm3015, %v2993, -inf
      %v3038 = vrot.slane %v3037, 4
      %v3039 = vmax.f32 %v3037, %v3038
      %v3040 = vrot.slane %v3039, 2
      %v3041 = vmax.f32 %v3039, %v3040
      %v3042 = vrot.slane %v3041, 1
      %v3043 = vmax.f32 %v3041, %v3042
      %v3044 = vsel %vm3015, %v2980, -inf
      %v3045 = vrot.slane %v3044, 4
      %v3046 = vmax.f32 %v3044, %v3045
      %v3047 = vrot.slane %v3046, 2
      %v3048 = vmax.f32 %v3046, %v3047
      %v3049 = vrot.slane %v3048, 1
      %v3050 = vmax.f32 %v3048, %v3049
      %v3051 = vsel %vm3015, %v2994, -inf
      %v3052 = vrot.slane %v3051, 4
      %v3053 = vmax.f32 %v3051, %v3052
      %v3054 = vrot.slane %v3053, 2
      %v3055 = vmax.f32 %v3053, %v3054
      %v3056 = vrot.slane %v3055, 1
      %v3057 = vmax.f32 %v3055, %v3056
      %v3058 = vsel %vm3015, %v2995, -inf
      %v3059 = vrot.slane %v3058, 4
      %v3060 = vmax.f32 %v3058, %v3059
      %v3061 = vrot.slane %v3060, 2
      %v3062 = vmax.f32 %v3060, %v3061
      %v3063 = vrot.slane %v3062, 1
      %v3064 = vmax.f32 %v3062, %v3063
      %v3065 = vsel %vm3015, %v2996, -inf
      %v3066 = vrot.slane %v3065, 4
      %v3067 = vmax.f32 %v3065, %v3066
      %v3068 = vrot.slane %v3067, 2
      %v3069 = vmax.f32 %v3067, %v3068
      %v3070 = vrot.slane %v3069, 1
      %v3071 = vmax.f32 %v3069, %v3070
      %v3072 = vsel %vm3015, %v2983, -inf
      %v3073 = vrot.slane %v3072, 4
      %v3074 = vmax.f32 %v3072, %v3073
      %v3075 = vrot.slane %v3074, 2
      %v3076 = vmax.f32 %v3074, %v3075
      %v3077 = vrot.slane %v3076, 1
      %v3078 = vmax.f32 %v3076, %v3077
      %v3079 = vsel %vm3015, %v2997, -inf
      %v3080 = vrot.slane %v3079, 4
      %v3081 = vmax.f32 %v3079, %v3080
      %v3082 = vrot.slane %v3081, 2
      %v3083 = vmax.f32 %v3081, %v3082
      %v3084 = vrot.slane %v3083, 1
      %v3085 = vmax.f32 %v3083, %v3084
      %v3086 = vsel %vm3015, %v2998, -inf
      %v3087 = vrot.slane %v3086, 4
      %v3088 = vmax.f32 %v3086, %v3087
      %v3089 = vrot.slane %v3088, 2
      %v3090 = vmax.f32 %v3088, %v3089
      %v3091 = vrot.slane %v3090, 1
      %v3092 = vmax.f32 %v3090, %v3091
      %v3093 = vsel %vm3015, %v2999, -inf
      %v3094 = vrot.slane %v3093, 4
      %v3095 = vmax.f32 %v3093, %v3094
      %v3096 = vrot.slane %v3095, 2
      %v3097 = vmax.f32 %v3095, %v3096
      %v3098 = vrot.slane %v3097, 1
      %v3099 = vmax.f32 %v3097, %v3098
      %v3100 = vsel %vm3015, %v2986, -inf
      %v3101 = vrot.slane %v3100, 4
      %v3102 = vmax.f32 %v3100, %v3101
      %v3103 = vrot.slane %v3102, 2
      %v3104 = vmax.f32 %v3102, %v3103
      %v3105 = vrot.slane %v3104, 1
      %v3106 = vmax.f32 %v3104, %v3105
      %v3107 = vsel %vm3015, %v3000, -inf
      %v3108 = vrot.slane %v3107, 4
      %v3109 = vmax.f32 %v3107, %v3108
      %v3110 = vrot.slane %v3109, 2
      %v3111 = vmax.f32 %v3109, %v3110
      %v3112 = vrot.slane %v3111, 1
      %v3113 = vmax.f32 %v3111, %v3112
      %v3114 = vsel %vm3015, %v3001, -inf
      %v3115 = vrot.slane %v3114, 4
      %v3116 = vmax.f32 %v3114, %v3115
      %v3117 = vrot.slane %v3116, 2
      %v3118 = vmax.f32 %v3116, %v3117
      %v3119 = vrot.slane %v3118, 1
      %v3120 = vmax.f32 %v3118, %v3119
      %v3121 = vsel %vm3015, %v3002, -inf
      %v3122 = vrot.slane %v3121, 4
      %v3123 = vmax.f32 %v3121, %v3122
      %v3124 = vrot.slane %v3123, 2
      %v3125 = vmax.f32 %v3123, %v3124
      %v3126 = vrot.slane %v3125, 1
      %v3127 = vmax.f32 %v3125, %v3126
      %v3144 = vsel %vm1080, %v3029, %v3022
      %v3145 = vsel %vm1082, %v3036, %v3144
      %v3146 = vsel %vm1084, %v3043, %v3145
      %v3147 = vsel %vm1080, %v3057, %v3050
      %v3148 = vsel %vm1082, %v3064, %v3147
      %v3149 = vsel %vm1084, %v3071, %v3148
      %v3150 = vsel %vm1080, %v3085, %v3078
      %v3151 = vsel %vm1082, %v3092, %v3150
      %v3152 = vsel %vm1084, %v3099, %v3151
      %v3153 = vsel %vm1080, %v3113, %v3106
      %v3154 = vsel %vm1082, %v3120, %v3153
      %v3155 = vsel %vm1084, %v3127, %v3154
      %v3160 = vsel %vm1150, 0.0, %v3146
      %v3161 = vsel %vm1150, 0.0, %v3149
      %v3162 = vsel %vm1150, 0.0, %v3152
      %v3163 = vsel %vm1150, 0.0, %v3155
      %vm3164 = vcmask 1044480
      %v3165 = vsel %vm3164, %v3160, 0.0
      %v3166 = vsel %vm3164, %v3161, 0.0
      %v3167 = vsel %vm3164, %v3162, 0.0
      %v3168 = vsel %vm3164, %v3163, 0.0
      %v3173 = vrot.slane %v3165, 1
      %v3174 = vsel %vm1183, %v1184, %v3173
      %v3175 = vrot.slane %v3166, 1
      %v3176 = vsel %vm1183, %v3173, %v3175
      %v3177 = vrot.slane %v3167, 1
      %v3178 = vsel %vm1183, %v3175, %v3177
      %v3179 = vrot.slane %v3168, 1
      %v3180 = vsel %vm1183, %v3177, %v3179
      %3181 = vrot.lane.b32.xlu0 %v3174, 8
      %v3182 = vpop.permute.xlu0 %3181
      %3183 = vrot.lane.b32.xlu0 %v3176, 8
      %v3184 = vpop.permute.xlu0 %3183
      %3185 = vrot.lane.b32.xlu0 %v3178, 8
      %v3186 = vpop.permute.xlu0 %3185
      %3187 = vrot.lane.b32.xlu0 %v3180, 8
      %v3188 = vpop.permute.xlu0 %3187
      %v3193 = vrot.slane %v3165, 2
      %v3194 = vsel %vm1264, %v1265, %v3193
      %v3195 = vrot.slane %v3166, 2
      %v3196 = vsel %vm1264, %v3193, %v3195
      %v3197 = vrot.slane %v3167, 2
      %v3198 = vsel %vm1264, %v3195, %v3197
      %v3199 = vrot.slane %v3168, 2
      %v3200 = vsel %vm1264, %v3197, %v3199
      %3201 = vrot.lane.b32.xlu0 %v3194, 16
      %v3202 = vpop.permute.xlu0 %3201
      %3203 = vrot.lane.b32.xlu0 %v3196, 16
      %v3204 = vpop.permute.xlu0 %3203
      %3205 = vrot.lane.b32.xlu0 %v3198, 16
      %v3206 = vpop.permute.xlu0 %3205
      %3207 = vrot.lane.b32.xlu0 %v3200, 16
      %v3208 = vpop.permute.xlu0 %3207
      %3213 = vrot.lane.b32.xlu0 %v3165, 24
      %v3214 = vpop.permute.xlu0 %3213
      %3215 = vrot.lane.b32.xlu0 %v3166, 24
      %v3216 = vpop.permute.xlu0 %3215
      %3217 = vrot.lane.b32.xlu0 %v3167, 24
      %v3218 = vpop.permute.xlu0 %3217
      %3219 = vrot.lane.b32.xlu0 %v3168, 24
      %v3220 = vpop.permute.xlu0 %3219
      %v3225 = vsel %vm1183, %v3179, %v1184
      %3226 = vrot.lane.b32.xlu0 %v3176, 32
      %v3227 = vpop.permute.xlu0 %3226
      %3228 = vrot.lane.b32.xlu0 %v3178, 32
      %v3229 = vpop.permute.xlu0 %3228
      %3230 = vrot.lane.b32.xlu0 %v3180, 32
      %v3231 = vpop.permute.xlu0 %3230
      %3232 = vrot.lane.b32.xlu0 %v3225, 32
      %v3233 = vpop.permute.xlu0 %3232
      %v3238 = vsel %vm1264, %v3199, %v1265
      %3239 = vrot.lane.b32.xlu0 %v3196, 40
      %v3240 = vpop.permute.xlu0 %3239
      %3241 = vrot.lane.b32.xlu0 %v3198, 40
      %v3242 = vpop.permute.xlu0 %3241
      %3243 = vrot.lane.b32.xlu0 %v3200, 40
      %v3244 = vpop.permute.xlu0 %3243
      %3245 = vrot.lane.b32.xlu0 %v3238, 40
      %v3246 = vpop.permute.xlu0 %3245
      %3251 = vrot.lane.b32.xlu0 %v3166, 48
      %v3252 = vpop.permute.xlu0 %3251
      %3253 = vrot.lane.b32.xlu0 %v3167, 48
      %v3254 = vpop.permute.xlu0 %3253
      %3255 = vrot.lane.b32.xlu0 %v3168, 48
      %v3256 = vpop.permute.xlu0 %3255
      %3260 = vrot.lane.b32.xlu0 %v3178, 56
      %v3261 = vpop.permute.xlu0 %3260
      %3262 = vrot.lane.b32.xlu0 %v3180, 56
      %v3263 = vpop.permute.xlu0 %3262
      %3264 = vrot.lane.b32.xlu0 %v3225, 56
      %v3265 = vpop.permute.xlu0 %3264
      %3269 = vrot.lane.b32.xlu0 %v3198, 64
      %v3270 = vpop.permute.xlu0 %3269
      %3271 = vrot.lane.b32.xlu0 %v3200, 64
      %v3272 = vpop.permute.xlu0 %3271
      %3273 = vrot.lane.b32.xlu0 %v3238, 64
      %v3274 = vpop.permute.xlu0 %3273
      %v3278 = vsel %vm1647, 0.0, %v3182
      %v3279 = vsel %vm1647, %v3165, %v3184
      %v3280 = vsel %vm1647, %v3166, %v3186
      %v3281 = vsel %vm1647, %v3167, %v3188
      %v3282 = vsel %vm1681, %v3278, %v3202
      %v3283 = vsel %vm1681, %v3279, %v3204
      %v3284 = vsel %vm1681, %v3280, %v3206
      %v3285 = vsel %vm1681, %v3281, %v3208
      %v3286 = vsel %vm1715, %v3282, %v3214
      %v3287 = vsel %vm1715, %v3283, %v3216
      %v3288 = vsel %vm1715, %v3284, %v3218
      %v3289 = vsel %vm1715, %v3285, %v3220
      %v3290 = vsel %vm1749, %v3286, %v3227
      %v3291 = vsel %vm1749, %v3287, %v3229
      %v3292 = vsel %vm1749, %v3288, %v3231
      %v3293 = vsel %vm1749, %v3289, %v3233
      %v3294 = vsel %vm2749, %v3290, %v3240
      %v3295 = vsel %vm2749, %v3291, %v3242
      %v3296 = vsel %vm2749, %v3292, %v3244
      %v3297 = vsel %vm2749, %v3293, %v3246
      %v3298 = vsel %vm2766, %v3294, %v3252
      %v3299 = vsel %vm2766, %v3295, %v3254
      %v3300 = vsel %vm2766, %v3296, %v3256
      %v3301 = vsel %vm2766, %v3297, %v2570
      %v3302 = vsel %vm2783, %v3298, %v3261
      %v3303 = vsel %vm2783, %v3299, %v3263
      %v3304 = vsel %vm2783, %v3300, %v3265
      %v3305 = vsel %vm2783, %v3301, %v2619
      %v3306 = vsel %vm2800, %v3302, %v3270
      %v3307 = vsel %vm2800, %v3303, %v3272
      %v3308 = vsel %vm2800, %v3304, %v3274
      %v3309 = vsel %vm2800, %v3305, %v2668
      %v3310 = vpack.c.bf16 %v3307, %v3306
      %v3311 = vpack.c.bf16 %v3309, %v3308
      %v3312 = vld [vmem:[%s5] sm:$0xf]
      %v3313 = vld [vmem:[%s5 + $0x4] sm:$0xf]
      %v3314 = vld [vmem:[%s5 + $0x8] sm:$0xf]
      %v3315 = vld [vmem:[%s5 + $0xc] sm:$0xf]
      %v3316 = vld [vmem:[%s5 + $0x10] sm:$0xf]
      %v3317 = vld [vmem:[%s5 + $0x14] sm:$0xf]
      %v3318 = vld [vmem:[%s5 + $0x18] sm:$0xf]
      %v3319 = vld [vmem:[%s5 + $0x1c] sm:$0xf]
      %v3320 = vld [vmem:[%s5 + $0x20] sm:$0xf]
      %v3321 = vld [vmem:[%s6] sm:$0x1]
      %v3323 = vperm.slane %v3321, 0
      %v3334 = vunpack.c.l.b16 %v3312
      %v3335 = vunpack.c.l.b16 %v3313
      %v3336 = vunpack.c.l.b16 %v3314
      %v3337 = vunpack.c.l.b16 %v3315
      %v3338 = vunpack.c.l.b16 %v3316
      %v3339 = vunpack.c.l.b16 %v3317
      %v3340 = vunpack.c.l.b16 %v3318
      %v3341 = vunpack.c.l.b16 %v3319
      %v3342 = vunpack.c.l.b16 %v3320
      %v3343 = vpack.c.b16 %v3335, %v3334
      %v3344 = vpack.c.b16 %v3337, %v3336
      %v3345 = vpack.c.b16 %v3339, %v3338
      %v3346 = vpack.c.b16 %v3341, %v3340
      %v3347 = vpack.c.b16 %v3342, %v3342
      %v3353 = vsel %vm2865, %v3310, 0
      %v3356 = vsel %vm2865, %v3311, 0
      %v3359 = vsel %vm2890, %v3347, 0
      %3361 = vmatpush.bf16.msra.mxu0 0
      %3362 = vmatpush.bf16.msra.mxu0 0
      %3363 = vmatpush.bf16.msra.mxu0 0
      %3364 = vmatpush.bf16.msra.mxu0 %v3359
      %3365 = vmatpush.bf16.msra.mxu0 %v3346
      %3366 = vmatpush.bf16.msra.mxu0 %v3345
      %3367 = vmatpush.bf16.msra.mxu0 %v3344
      %3368 = vmatpush.bf16.msra.mxu0 %v3343
      %3369 = vmatmul.bf16.gmra.mxu0 %v3353
      %v3370 = vpop.f32.mrf.mxu0
      %v3371 = vadd.f32 %v3323, %v3370
      %v3372 = vpop.f32.mrf.mxu0
      %v3373 = vadd.f32 %v3323, %v3372
      %3374 = vmatmul.bf16.gmra.mxu0 %v3356
      %v3375 = vpop.f32.mrf.mxu0
      %v3376 = vadd.f32 %v3323, %v3375
      %v3377 = vpop.f32.mrf.mxu0
      %v3378 = vadd.f32 %v3323, %v3377
      %3379 = vdwg.mxu0
      %v3380 = vmax.f32 %v3371, 0.0
      %v3381 = vmax.f32 %v3373, 0.0
      %v3382 = vmax.f32 %v3376, 0.0
      %v3383 = vmax.f32 %v3378, 0.0
      %vm3384 = vcmp.lt.s32.totalorder %v1893, 0
      %v3385 = vsub.s32 0, %v1893
      %v3386 = vsel %vm3384, %v3385, %v1893
      %v3387 = vshrl.u32 %v3386, 3
      %v3388 = vand.u32 %v3386, 7
      %v3389 = vsub.s32 0, %v3388
      %v3390 = vsel %vm3384, %v3389, %v3388
      %vm3391 = vcmp.lt.s32.totalorder %v1894, 0
      %v3392 = vsub.s32 0, %v1894
      %v3393 = vsel %vm3391, %v3392, %v1894
      %v3394 = vshrl.u32 %v3393, 3
      %v3395 = vand.u32 %v3393, 7
      %v3396 = vsub.s32 0, %v3395
      %v3397 = vsel %vm3391, %v3396, %v3395
      %vm3398 = vcmp.lt.s32.totalorder %v1895, 0
      %v3399 = vsub.s32 0, %v1895
      %v3400 = vsel %vm3398, %v3399, %v1895
      %v3401 = vshrl.u32 %v3400, 3
      %v3402 = vand.u32 %v3400, 7
      %v3403 = vsub.s32 0, %v3402
      %v3404 = vsel %vm3398, %v3403, %v3402
      %vm3405 = vcmp.lt.s32.totalorder %v1896, 0
      %v3406 = vsub.s32 0, %v1896
      %v3407 = vsel %vm3405, %v3406, %v1896
      %v3408 = vshrl.u32 %v3407, 3
      %v3409 = vand.u32 %v3407, 7
      %v3410 = vsub.s32 0, %v3409
      %v3411 = vsel %vm3405, %v3410, %v3409
      %vm3412 = vcmp.ne.s32.totalorder %v3390, 0
      %vm3413 = vcmp.ne.s32.totalorder %v3397, 0
      %vm3414 = vcmp.ne.s32.totalorder %v3404, 0
      %vm3415 = vcmp.ne.s32.totalorder %v3411, 0
      %vm3416 = vcmp.lt.s32.totalorder %v3390, 0
      %vm3417 = vcmp.lt.s32.totalorder %v3397, 0
      %vm3418 = vcmp.lt.s32.totalorder %v3404, 0
      %vm3419 = vcmp.lt.s32.totalorder %v3411, 0
      %vm3420 = vmand %vm3416, %vm3412
      %vm3421 = vmand %vm3417, %vm3413
      %vm3422 = vmand %vm3418, %vm3414
      %vm3423 = vmand %vm3419, %vm3415
      %v3424 = vadd.s32 %v3390, 8
      %v3425 = vadd.s32 %v3397, 8
      %v3426 = vadd.s32 %v3404, 8
      %v3427 = vadd.s32 %v3411, 8
      %v3428 = vsel %vm3420, %v3424, %v3390
      %v3429 = vsel %vm3421, %v3425, %v3397
      %v3430 = vsel %vm3422, %v3426, %v3404
      %v3431 = vsel %vm3423, %v3427, %v3411
      %vm3432 = vcmp.lt.s32.totalorder %v3428, 4
      %vm3433 = vcmp.lt.s32.totalorder %v3429, 4
      %vm3434 = vcmp.lt.s32.totalorder %v3430, 4
      %vm3435 = vcmp.lt.s32.totalorder %v3431, 4
      %v3436 = vsel %vm3432, 1, 0
      %v3437 = vsel %vm3433, 1, 0
      %v3438 = vsel %vm3434, 1, 0
      %v3439 = vsel %vm3435, 1, 0
      %vm3440 = vcmp.eq.s32.totalorder %v3436, 1
      %vm3441 = vcmp.eq.s32.totalorder %v3437, 1
      %vm3442 = vcmp.eq.s32.totalorder %v3438, 1
      %vm3443 = vcmp.eq.s32.totalorder %v3439, 1
      %v3444 = vsel %vm3440, %v3380, 0.0
      %v3445 = vsel %vm3441, %v3381, 0.0
      %v3446 = vsel %vm3442, %v3382, 0.0
      %v3447 = vsel %vm3443, %v3383, 0.0
      %v3452 = vrot.slane %v3444, 7
      %v3453 = vrot.slane %v3445, 7
      %v3454 = vsel %vm1150, %v3452, %v3453
      %v3455 = vrot.slane %v3446, 7
      %v3456 = vsel %vm1150, %v3453, %v3455
      %v3457 = vrot.slane %v3447, 7
      %v3458 = vsel %vm1150, %v3455, %v3457
      %v3463 = vsel %vm1150, 0.0, %v3452
      %v3464 = vsel %vm1150, %v3457, 0.0
      %v3466 = vrot.slane %v3463, 1
      %v3467 = vsel %vm1183, %v1184, %v3466
      %v3468 = vrot.slane %v3454, 1
      %v3469 = vsel %vm1183, %v3466, %v3468
      %v3470 = vrot.slane %v3456, 1
      %v3471 = vsel %vm1183, %v3468, %v3470
      %v3472 = vrot.slane %v3458, 1
      %v3473 = vsel %vm1183, %v3470, %v3472
      %3474 = vrot.lane.b32.xlu0 %v3467, 16
      %v3475 = vpop.permute.xlu0 %3474
      %3476 = vrot.lane.b32.xlu0 %v3469, 16
      %v3477 = vpop.permute.xlu0 %3476
      %3478 = vrot.lane.b32.xlu0 %v3471, 16
      %v3479 = vpop.permute.xlu0 %3478
      %3480 = vrot.lane.b32.xlu0 %v3473, 16
      %v3481 = vpop.permute.xlu0 %3480
      %v3486 = vrot.slane %v3463, 2
      %v3487 = vsel %vm1264, %v1265, %v3486
      %v3488 = vrot.slane %v3454, 2
      %v3489 = vsel %vm1264, %v3486, %v3488
      %v3490 = vrot.slane %v3456, 2
      %v3491 = vsel %vm1264, %v3488, %v3490
      %v3492 = vrot.slane %v3458, 2
      %v3493 = vsel %vm1264, %v3490, %v3492
      %3494 = vrot.lane.b32.xlu0 %v3487, 32
      %v3495 = vpop.permute.xlu0 %3494
      %3496 = vrot.lane.b32.xlu0 %v3489, 32
      %v3497 = vpop.permute.xlu0 %3496
      %3498 = vrot.lane.b32.xlu0 %v3491, 32
      %v3499 = vpop.permute.xlu0 %3498
      %3500 = vrot.lane.b32.xlu0 %v3493, 32
      %v3501 = vpop.permute.xlu0 %3500
      %3506 = vrot.lane.b32.xlu0 %v3463, 48
      %v3507 = vpop.permute.xlu0 %3506
      %3508 = vrot.lane.b32.xlu0 %v3454, 48
      %v3509 = vpop.permute.xlu0 %3508
      %3510 = vrot.lane.b32.xlu0 %v3456, 48
      %v3511 = vpop.permute.xlu0 %3510
      %3512 = vrot.lane.b32.xlu0 %v3458, 48
      %v3513 = vpop.permute.xlu0 %3512
      %v3519 = vrot.slane %v3464, 1
      %v3520 = vsel %vm1183, %v3472, %v3519
      %3521 = vrot.lane.b32.xlu0 %v3469, 64
      %v3522 = vpop.permute.xlu0 %3521
      %3523 = vrot.lane.b32.xlu0 %v3471, 64
      %v3524 = vpop.permute.xlu0 %3523
      %3525 = vrot.lane.b32.xlu0 %v3473, 64
      %v3526 = vpop.permute.xlu0 %3525
      %3527 = vrot.lane.b32.xlu0 %v3520, 64
      %v3528 = vpop.permute.xlu0 %3527
      %v3533 = vrot.slane %v3464, 2
      %v3534 = vsel %vm1264, %v3492, %v3533
      %3535 = vrot.lane.b32.xlu0 %v3489, 80
      %v3536 = vpop.permute.xlu0 %3535
      %3537 = vrot.lane.b32.xlu0 %v3491, 80
      %v3538 = vpop.permute.xlu0 %3537
      %3539 = vrot.lane.b32.xlu0 %v3493, 80
      %v3540 = vpop.permute.xlu0 %3539
      %3541 = vrot.lane.b32.xlu0 %v3534, 80
      %v3542 = vpop.permute.xlu0 %3541
      %3547 = vrot.lane.b32.xlu0 %v3454, 96
      %v3548 = vpop.permute.xlu0 %3547
      %3549 = vrot.lane.b32.xlu0 %v3456, 96
      %v3550 = vpop.permute.xlu0 %3549
      %3551 = vrot.lane.b32.xlu0 %v3458, 96
      %v3552 = vpop.permute.xlu0 %3551
      %3553 = vrot.lane.b32.xlu0 %v3464, 96
      %v3554 = vpop.permute.xlu0 %3553
      %v3559 = vsel %vm1183, %v3519, %v1184
      %3560 = vrot.lane.b32.xlu0 %v3471, 112
      %v3561 = vpop.permute.xlu0 %3560
      %3562 = vrot.lane.b32.xlu0 %v3473, 112
      %v3563 = vpop.permute.xlu0 %3562
      %3564 = vrot.lane.b32.xlu0 %v3520, 112
      %v3565 = vpop.permute.xlu0 %3564
      %3566 = vrot.lane.b32.xlu0 %v3559, 112
      %v3567 = vpop.permute.xlu0 %3566
      %v3572 = vsel %vm1264, %v3533, %v1265
      %v3577 = vsel %vm1681, 0.0, %v3475
      %v3578 = vsel %vm1681, %v3463, %v3477
      %v3579 = vsel %vm1681, %v3454, %v3479
      %v3580 = vsel %vm1681, %v3456, %v3481
      %v3581 = vsel %vm1749, %v3577, %v3495
      %v3582 = vsel %vm1749, %v3578, %v3497
      %v3583 = vsel %vm1749, %v3579, %v3499
      %v3584 = vsel %vm1749, %v3580, %v3501
      %v3585 = vsel %vm2766, %v3581, %v3507
      %v3586 = vsel %vm2766, %v3582, %v3509
      %v3587 = vsel %vm2766, %v3583, %v3511
      %v3588 = vsel %vm2766, %v3584, %v3513
      %v3589 = vsel %vm2800, %v3585, %v3522
      %v3590 = vsel %vm2800, %v3586, %v3524
      %v3591 = vsel %vm2800, %v3587, %v3526
      %v3592 = vsel %vm2800, %v3588, %v3528
      %vm3593 = vcmask 654336
      %v3594 = vsel %vm3593, %v3589, %v3536
      %v3595 = vsel %vm3593, %v3590, %v3538
      %v3596 = vsel %vm3593, %v3591, %v3540
      %v3597 = vsel %vm3593, %v3592, %v3542
      %vm3598 = vcmask 785408
      %v3599 = vsel %vm3598, %v3594, %v3548
      %v3600 = vsel %vm3598, %v3595, %v3550
      %v3601 = vsel %vm3598, %v3596, %v3552
      %v3602 = vsel %vm3598, %v3597, %v3554
      %vm3603 = vcmask 916480
      %v3604 = vsel %vm3603, %v3599, %v3561
      %v3605 = vsel %vm3603, %v3600, %v3563
      %v3606 = vsel %vm3603, %v3601, %v3565
      %v3607 = vsel %vm3603, %v3602, %v3567
      %v3608 = vpack.c.bf16 %v3605, %v3604
      %v3609 = vpack.c.bf16 %v3493, %v3491
      %v3610 = vpack.c.bf16 %v3607, %v3606
      %v3611 = vpack.c.bf16 %v3572, %v3534
      %v3612 = vld [vmem:[%s7] sm:$0xf]
      %v3613 = vld [vmem:[%s7 + $0x4] sm:$0xf]
      %v3614 = vld [vmem:[%s7 + $0x8] sm:$0xf]
      %v3615 = vld [vmem:[%s7 + $0xc] sm:$0xf]
      %v3616 = vld [vmem:[%s7 + $0x10] sm:$0xf]
      %v3617 = vld [vmem:[%s7 + $0x14] sm:$0xf]
      %v3618 = vld [vmem:[%s7 + $0x18] sm:$0xf]
      %v3619 = vld [vmem:[%s7 + $0x1c] sm:$0xf]
      %v3620 = vld [vmem:[%s7 + $0x20] sm:$0xf]
      %v3621 = vld [vmem:[%s7 + $0x24] sm:$0xf]
      %v3622 = vld [vmem:[%s7 + $0x28] sm:$0xf]
      %v3623 = vld [vmem:[%s7 + $0x2c] sm:$0xf]
      %v3624 = vld [vmem:[%s7 + $0x30] sm:$0xf]
      %v3625 = vld [vmem:[%s7 + $0x34] sm:$0xf]
      %v3626 = vld [vmem:[%s7 + $0x38] sm:$0xf]
      %v3627 = vld [vmem:[%s7 + $0x3c] sm:$0xf]
      %v3628 = vld [vmem:[%s7 + $0x40] sm:$0xf]
      %v3629 = vld [vmem:[%s7 + $0x44] sm:$0xf]
      %v3630 = vld [vmem:[%s8] sm:$0x1]
      %v3632 = vperm.slane %v3630, 0
      %v3652 = vunpack.c.l.b16 %v3612
      %v3653 = vunpack.c.l.b16 %v3613
      %v3654 = vunpack.c.l.b16 %v3614
      %v3655 = vunpack.c.l.b16 %v3615
      %v3656 = vunpack.c.l.b16 %v3616
      %v3657 = vunpack.c.l.b16 %v3617
      %v3658 = vunpack.c.l.b16 %v3618
      %v3659 = vunpack.c.l.b16 %v3619
      %v3660 = vunpack.c.l.b16 %v3620
      %v3661 = vunpack.c.l.b16 %v3621
      %v3662 = vunpack.c.l.b16 %v3622
      %v3663 = vunpack.c.l.b16 %v3623
      %v3664 = vunpack.c.l.b16 %v3624
      %v3665 = vunpack.c.l.b16 %v3625
      %v3666 = vunpack.c.l.b16 %v3626
      %v3667 = vunpack.c.l.b16 %v3627
      %v3668 = vunpack.c.l.b16 %v3628
      %v3669 = vunpack.c.l.b16 %v3629
      %v3670 = vpack.c.b16 %v3653, %v3652
      %v3671 = vpack.c.b16 %v3655, %v3654
      %v3672 = vpack.c.b16 %v3657, %v3656
      %v3673 = vpack.c.b16 %v3659, %v3658
      %v3674 = vpack.c.b16 %v3661, %v3660
      %v3675 = vpack.c.b16 %v3663, %v3662
      %v3676 = vpack.c.b16 %v3665, %v3664
      %v3677 = vpack.c.b16 %v3667, %v3666
      %v3678 = vpack.c.b16 %v3669, %v3668
      %v3689 = vsel %vm1681, %v3609, 0
      %v3692 = vsel %vm1681, %v3611, 0
      %3694 = vmatpush.bf16.msra.mxu0 %v3677
      %3695 = vmatpush.bf16.msra.mxu0 %v3676
      %3696 = vmatpush.bf16.msra.mxu0 %v3675
      %3697 = vmatpush.bf16.msra.mxu0 %v3674
      %3698 = vmatpush.bf16.msra.mxu0 %v3673
      %3699 = vmatpush.bf16.msra.mxu0 %v3672
      %3700 = vmatpush.bf16.msra.mxu0 %v3671
      %3701 = vmatpush.bf16.msra.mxu0 %v3670
      %3702 = vmatmul.bf16.gmra.mxu0 %v3608
      %v3703 = vpop.f32.mrf.mxu0
      %v3704 = vadd.f32 %v3632, %v3703
      %v3705 = vpop.f32.mrf.mxu0
      %v3706 = vadd.f32 %v3632, %v3705
      %3707 = vmatmul.bf16.gmra.mxu0 %v3610
      %v3708 = vpop.f32.mrf.mxu0
      %v3709 = vadd.f32 %v3632, %v3708
      %v3710 = vpop.f32.mrf.mxu0
      %v3711 = vadd.f32 %v3632, %v3710
      %3712 = vdwg.mxu0
      %3713 = vmatpush.bf16.msra.mxu0 0
      %3714 = vmatpush.bf16.msra.mxu0 0
      %3715 = vmatpush.bf16.msra.mxu0 0
      %3716 = vmatpush.bf16.msra.mxu0 0
      %3717 = vmatpush.bf16.msra.mxu0 0
      %3718 = vmatpush.bf16.msra.mxu0 0
      %3719 = vmatpush.bf16.msra.mxu0 0
      %3720 = vmatpush.bf16.msra.mxu0 %v3678
      %3721 = vmatmul.bf16.gmra.mxu0 %v3689
      %v3722 = vpop.f32.mrf.mxu0
      %v3723 = vadd.f32 %v3704, %v3722
      %v3724 = vpop.f32.mrf.mxu0
      %v3725 = vadd.f32 %v3706, %v3724
      %3726 = vmatmul.bf16.gmra.mxu0 %v3692
      %v3727 = vpop.f32.mrf.mxu0
      %v3728 = vadd.f32 %v3709, %v3727
      %v3729 = vpop.f32.mrf.mxu0
      %v3730 = vadd.f32 %v3711, %v3729
      %3731 = vdwg.mxu0
      %v3732 = vmax.f32 %v3723, 0.0
      %v3733 = vmax.f32 %v3725, 0.0
      %v3734 = vmax.f32 %v3728, 0.0
      %v3735 = vmax.f32 %v3730, 0.0
      %3736 = vst.msk [vmem:[%s372] sm:$0xff] %vm1681, %v3732
      %3737 = vst.msk [vmem:[%s372 + $0x8] sm:$0xff] %vm1681, %v3733
      %3738 = vst.msk [vmem:[%s372 + $0x10] sm:$0xff] %vm1681, %v3734
      %3739 = vst.msk [vmem:[%s372 + $0x18] sm:$0xff] %vm1681, %v3735
      %p3740 = scmp.lt.s32.totalorder %s22, 1
      %s3741 = scalar_select %p3740, %s22, 1
      %s3742 = smul.addr %s3741, 16
      %s3743 = smul.addr %s3742, 8
      %s3744 = scalar_lea.vmem %s9, %s3743
      %p3745 = scmp.lt.s32.totalorder %s22, 1
      %s3746 = scalar_select %p3745, %s22, 1
      %s3747 = smul.addr %s3746, 4
      %s3748 = smul.addr %s3747, 8
      %s3749 = scalar_lea.vmem %s10, %s3748
      // Predicated region
      $region57: #{tpu_custom_call.1} parent=55 // pred_check
        %p3750 = pneg %p234
      $region58: #{tpu_custom_call.1} parent=55 // pred_check_branch
        %3752 = sbr.rel (%p3750) target = $region60
      $region59: #{tpu_custom_call.1} parent=55 // pred_region
        _
      $region60: #{tpu_custom_call.1} parent=55 // pred_fallthru
        _
      // Predicated region
      $region61: #{tpu_custom_call.1} parent=55 // pred_check
        %p3753 = pneg %p260
      $region62: #{tpu_custom_call.1} parent=55 // pred_check_branch
        %3755 = sbr.rel (%p3753) target = $region64
      $region63: #{tpu_custom_call.1} parent=55 // pred_region
        _
      $region64: #{tpu_custom_call.1} parent=55 // pred_fallthru
        _
    $region56: #{tpu_custom_call.1} parent=5 // pred_fallthru
      _
    %p3756 = scmp.le.s32.totalorder 2, %s17
    // Predicated region
    $region65: #{tpu_custom_call.1} parent=5 // pred_check
      %p3757 = pneg %p3756
    $region66: #{tpu_custom_call.1} parent=5 // pred_check_branch
      %3759 = sbr.rel (%p3757) target = $region68
    $region67: #{tpu_custom_call.1} parent=5 // pred_region
      %s3760 = ssub.s32 %s17, 2
      // Predicated region
      $region69: #{tpu_custom_call.1} parent=67 // pred_check
        %p3761 = pneg %p240
      $region70: #{tpu_custom_call.1} parent=67 // pred_check_branch
        %3763 = sbr.rel (%p3761) target = $region72
      $region71: #{tpu_custom_call.1} parent=67 // pred_region
        %p3764 = scmp.lt.s32.totalorder %s23, 1
        %s3765 = scalar_select %p3764, %s23, 1
        %s3766 = smul.addr %s3765, 16
        %s3767 = smul.addr %s3766, 8
        %s3768 = scalar_lea.vmem %s9, %s3767
      $region72: #{tpu_custom_call.1} parent=67 // pred_fallthru
        _
      // Predicated region
      $region73: #{tpu_custom_call.1} parent=67 // pred_check
        %p3769 = pneg %p266
      $region74: #{tpu_custom_call.1} parent=67 // pred_check_branch
        %3771 = sbr.rel (%p3769) target = $region76
      $region75: #{tpu_custom_call.1} parent=67 // pred_region
        %p3772 = scmp.lt.s32.totalorder %s23, 1
        %s3773 = scalar_select %p3772, %s23, 1
        %s3774 = smul.addr %s3773, 4
        %s3775 = smul.addr %s3774, 8
        %s3776 = scalar_lea.vmem %s10, %s3775
      $region76: #{tpu_custom_call.1} parent=67 // pred_fallthru
        _
    $region68: #{tpu_custom_call.1} parent=5 // pred_fallthru
      _
  $region6: #{tpu_custom_call.1} parent=0 // loop_footer
    %s21 = sadd.s32 1, %s17
  $region7: #{tpu_custom_call.1} parent=0 // loop_footer_branch
    %16 = sbr.rel target = $region3
  $region8: #{tpu_custom_call.1} parent=0 // loop_exit
    _

</llo_original>
